<compile_context>
chip_gen: v7x
topology: tpu7x:2x2x1
jax: 0.10.0
libtpu: 0.0.40
codegen_flags: <defaults>
</compile_context>

<pallas_src>
import functools
import math

import numpy as np
import jax
import jax.numpy as jnp
from jax.experimental import pallas as pl
from jax.experimental.pallas import tpu as pltpu

HIDDEN = 32
GGNN_TIMESTEPS = 2
GGNN_EDGE_TYPES = 3            # forward / backward / self edges (_add_relation_node)
NUM_REL_KINDS = 5
NEG_INF = -9000000000000000.0  # matches the PyTorch constant
GGNN_BUCKET = 16               # node-count bucketing for the GGNN graphs
AGGR_BUCKET = 8                # node-count bucketing for the aggregation stage


def _round_up(x, m):
    return ((x + m - 1) // m) * m


def _softmax(x):
    m = jnp.max(x, axis=-1, keepdims=True)
    e = jnp.exp(x - m)
    return e / jnp.sum(e, axis=-1, keepdims=True)


# ----------------------------------------------------------------------------
# Fused SadgaLayer kernel: 2x GGNN + 2x structure-aware aggregation, one call.
# ----------------------------------------------------------------------------
def sadga_layer_kernel(feats_ref, adjw_ref, relidx_ref, adj_ref, qscale_ref,
                       kmask_ref, relk_ref, relv_ref, wmg_ref, bmg_ref,
                       wih_ref, bih_ref, wqm_ref, bqm_ref, wv1_ref, bv1_ref,
                       wql_ref, bql_ref, wlg_ref, blg_ref, wgt_ref, bgt_ref,
                       out_ref, *, num_timesteps, num_rel_kinds):
    f32 = jnp.float32
    d = feats_ref.shape[-1]
    p_sz = adj_ref.shape[-1]
    scale = 1.0 / math.sqrt(d)

    # ------------------ GatedGraphConv on both graphs ------------------
    # One (D,6D) matmul per step gives the 3 edge-type messages + the 3
    # hidden-side GRU gates; one (N,3N)x(3N,D) matmul does all 3 adjacencies.
    h_graphs = []
    for g in range(2):                         # static unroll over graphs
        h = feats_ref[g]                       # (N, D)
        adjw = adjw_ref[g]                     # (N, 3N) = [adj_f | adj_b | adj_s]
        for _ in range(num_timesteps):         # static unroll over timesteps
            hm = jnp.dot(h, wmg_ref[...], preferred_element_type=f32) + bmg_ref[...]
            m_stack = jnp.concatenate(
                [hm[:, 0:d], hm[:, d:2 * d], hm[:, 2 * d:3 * d]], axis=0)     # (3N, D)
            gh = hm[:, 3 * d:6 * d]                                           # (N, 3D)
            a = jnp.dot(adjw, m_stack, preferred_element_type=f32)            # (N, D)
            gi = jnp.dot(a, wih_ref[...], preferred_element_type=f32) + bih_ref[...]
            r = jax.nn.sigmoid(gi[:, 0:d] + gh[:, 0:d])
            z = jax.nn.sigmoid(gi[:, d:2 * d] + gh[:, d:2 * d])
            n = jnp.tanh(gi[:, 2 * d:3 * d] + r * gh[:, 2 * d:3 * d])
            h = (1.0 - z) * n + z * h
        h_graphs.append(h[:p_sz])              # only first p_sz rows feed aggregation

    relk_t = relk_ref[...]                     # (R, D)
    relv_t = relv_ref[...]                     # (R, D)

    # -------------- StructureAwareGraphAggr, both directions --------------
    for i in range(2):                         # static unroll over directions
        q_enc = h_graphs[i]                    # (P, D)
        k0 = h_graphs[1 - i]                   # (P, D)
        relidx = relidx_ref[i]                 # (P, P) int32
        adj_m = adj_ref[i]                     # (P, P) 0/1 float
        qscale = qscale_ref[i]                 # (P, 1): 1/q_count on valid rows, else 0
        kmask = kmask_ref[i]                   # (1, P): 1 on valid k columns

        # ---- global structure gating of k ----
        q_mean = jnp.sum(q_enc * qscale, axis=0, keepdims=True)               # (1, D)
        qm2 = jnp.dot(q_mean, wqm_ref[...], preferred_element_type=f32) + bqm_ref[...]
        glob = qm2[:, 0:d]                     # glob_linear(q_mean)
        g1 = qm2[:, d:2 * d]                   # glob_v_linears[0](q_mean)
        k_s = jax.nn.sigmoid(jnp.sum(k0 * glob, axis=-1, keepdims=True) * scale)
        k1 = jnp.dot(k0, wv1_ref[...], preferred_element_type=f32) + bv1_ref[...]
        k_enc = (1.0 - k_s) * k1 + k_s * g1                                   # (P, D)

        # ---- fused glob/loc query projection ----
        q_both = jnp.dot(q_enc, wql_ref[...], preferred_element_type=f32) + bql_ref[...]
        q_glob = q_both[:, 0:d]
        q_loc = q_both[:, d:2 * d]

        # ---- relation-key logits factorized through the (R,D) table ----
        #   rel_logit[q,k] = (q_proj @ relk.T)[q, rel_idx[q,k]]
        gg = jax.lax.dot_general(q_glob, relk_t, (((1,), (1,)), ((), ())),
                                 preferred_element_type=f32)                  # (P, R)
        gl = jax.lax.dot_general(q_loc, relk_t, (((1,), (1,)), ((), ())),
                                 preferred_element_type=f32)                  # (P, R)
        qk_r = jnp.zeros((p_sz, p_sz), f32)
        qnk_r = jnp.zeros((p_sz, p_sz), f32)
        for r in range(num_rel_kinds):         # static unroll, R is tiny
            sel = relidx == r
            qk_r = qk_r + jnp.where(sel, gg[:, r:r + 1], 0.0)
            qnk_r = qnk_r + jnp.where(sel, gl[:, r:r + 1], 0.0)

        qk_logit = jax.lax.dot_general(q_glob, k_enc, (((1,), (1,)), ((), ())),
                                       preferred_element_type=f32)            # (P, P)
        qnk_logit = jax.lax.dot_general(q_loc, k_enc, (((1,), (1,)), ((), ())),
                                        preferred_element_type=f32)           # (P, P)
        glob_w = jnp.tanh((qk_logit + qk_r) * scale)
        loc_attn = jnp.tanh((qnk_logit + qnk_r) * scale)

        glob_attn = _softmax(jnp.where(kmask > 0.0, glob_w, NEG_INF))         # (P, P)

        # ---- factorized adjacency-masked local softmax (no rank-3 temps) ----
        # An all-zero adjacency row would give uniform attention in the reference;
        # the module always supplies self-loops, so the Z==0 guard only covers
        # padded rows (whose glob_attn weight is exactly 0).
        rowmax = jnp.max(loc_attn, axis=-1, keepdims=True)
        e = jnp.exp(loc_attn - rowmax) * kmask                                # (Q, Kb)
        z = jax.lax.dot_general(e, adj_m, (((1,), (1,)), ((), ())),
                                preferred_element_type=f32)                   # (Q, Ka)
        z_inv = 1.0 / jnp.where(z > 0.0, z, 1.0)
        st = jax.lax.dot_general(wlg_ref[...], k_enc, (((1,), (1,)), ((), ())),
                                 preferred_element_type=f32)                  # (2, K)
        u = jax.lax.dot_general(e * st[0:1, :], adj_m, (((1,), (1,)), ((), ())),
                                preferred_element_type=f32)                   # (Q, Ka)
        loc_gate = jax.nn.sigmoid(u * z_inv + st[1:2, :] + blg_ref[...])      # (Q, Ka)

        # ---- aggregate + residual gate ----
        w1 = glob_attn * loc_gate                                             # attn * gate
        w2 = glob_attn - w1                                                   # attn * (1-gate)
        c = jnp.dot(w1 * z_inv, adj_m, preferred_element_type=f32)            # (Q, Kb)
        k_matmul = jnp.dot(c * e + w2, k_enc, preferred_element_type=f32)     # (Q, D)

        # rel_v contribution: glob_attn-weighted sum of relation-value embeddings
        k_r_matmul = jnp.zeros((p_sz, d), f32)
        for r in range(num_rel_kinds):
            wr = jnp.sum(jnp.where(relidx == r, glob_attn, 0.0),
                         axis=1, keepdims=True)                               # (Q, 1)
            k_r_matmul = k_r_matmul + wr * relv_t[r:r + 1, :]

        q_new = k_matmul + k_r_matmul
        wgt = wgt_ref[...]
        gate = jax.nn.sigmoid(
            jnp.sum(q_new * wgt[0:1, :], axis=-1, keepdims=True)
            + jnp.sum(q_enc * wgt[1:2, :], axis=-1, keepdims=True)
            + bgt_ref[...])                                                   # (Q, 1)
        out_ref[i] = gate * q_new + (1.0 - gate) * q_enc


def sadga_layer_pallas(feats_all, adjw_all, rel_idx_all, adj_all, qscale_all,
                       kmask_all, params, fused):
    _, p_sz, _ = adj_all.shape
    d = feats_all.shape[-1]
    num_rel = params["rel_k_emb"].shape[0]
    kernel = functools.partial(sadga_layer_kernel,
                               num_timesteps=GGNN_TIMESTEPS,
                               num_rel_kinds=num_rel)
    # No grid: everything (a few tens of KB at these shapes) fits in VMEM; the
    # default full-array VMEM blocks are used for every operand.
    return pl.pallas_call(
        kernel,
        out_shape=jax.ShapeDtypeStruct((2, p_sz, d), jnp.float32),
    )(feats_all, adjw_all, rel_idx_all, adj_all, qscale_all, kmask_all,
      params["rel_k_emb"], params["rel_v_emb"],
      fused["w_msg_gh"], fused["b_msg_gh"], fused["wih_all"], fused["bih_all"],
      fused["w_qm"], fused["b_qm"], params["wv1"], params["bv1"],
      fused["wql"], fused["bql"], params["wlg"], params["blg"],
      params["wgt"], params["bgt"])


# ----------------------------------------------------------------------------
# Host-side glue: vectorized graph construction with bucketed padding.
# ----------------------------------------------------------------------------
def build_graph(x_np, relation_np, rel_v_emb_np):
    num_item = x_np.shape[0]
    ii, jj = np.tril_indices(num_item, k=-1)      # same (i>j) order as itertools.product
    rids = relation_np[ii, jj]
    keep = rids != 0
    ii = ii[keep].astype(np.int32)
    jj = jj[keep].astype(np.int32)
    rids = rids[keep].astype(np.int32)
    n_rel = int(rids.shape[0])
    rel_nodes = (num_item + np.arange(n_rel)).astype(np.int32)
    num_node = num_item + n_rel
    feats = np.concatenate(
        [x_np.astype(np.float32), rel_v_emb_np[rids].astype(np.float32)], axis=0)
    return feats, (ii, jj, rel_nodes), num_node


def build_adj3(edges, num_node, n_total):
    ii, jj, rel_nodes = edges
    adj3 = np.zeros((3, n_total, n_total), np.float32)
    adj3[0, rel_nodes, ii] = 1.0   # forward: adj_t[rel, i] = 1
    adj3[0, jj, rel_nodes] = 1.0   #          adj_t[j, rel] = 1
    adj3[1, rel_nodes, jj] = 1.0   # backward
    adj3[1, ii, rel_nodes] = 1.0
    idx = np.arange(num_node)
    adj3[2, idx, idx] = 1.0        # self (only real nodes; padded rows stay zero)
    return adj3


def prepare_inputs(params, input_np, relation_np, q_len, desc):
    total = input_np.shape[1]
    num_nl = q_len
    num_db = total - q_len
    nl_x = input_np[0, :q_len]
    db_x = input_np[0, q_len:]
    nl_rel = relation_np[:num_nl, :num_nl]
    db_rel = relation_np[-num_db:, -num_db:]
    rel_v_emb_np = np.asarray(params["rel_v_emb"])

    graphs = [build_graph(x_g, r_g, rel_v_emb_np)
              for x_g, r_g in ((nl_x, nl_rel), (db_x, db_rel))]
    p_sz = max(_round_up(max(num_nl, num_db), AGGR_BUCKET), AGGR_BUCKET)
    n_total = max(_round_up(max(g[2] for g in graphs), GGNN_BUCKET),
                  GGNN_BUCKET, p_sz)

    feats_all = np.zeros((2, n_total, HIDDEN), np.float32)
    adjw_all = np.zeros((2, n_total, 3 * n_total), np.float32)
    adj3_all = np.zeros((2, 3, n_total, n_total), np.float32)
    for g, (feats, edges, num_node) in enumerate(graphs):
        feats_all[g, :num_node] = feats
        adj3 = build_adj3(edges, num_node, n_total)
        adj3_all[g] = adj3
        adjw_all[g] = np.concatenate([adj3[0], adj3[1], adj3[2]], axis=1)

    rel_nl_db = relation_np[:q_len, q_len:].astype(np.int32)
    rel_pad = np.zeros((p_sz, p_sz), np.int32)
    rel_pad[:num_nl, :num_db] = rel_nl_db
    rel_idx_all = np.stack([rel_pad, rel_pad.T], axis=0)

    db_adj = np.eye(num_db, dtype=np.float32)
    nl_adj = np.eye(num_nl, dtype=np.float32)
    db_adj[db_rel > 0] = 1.0
    nl_adj[nl_rel > 0] = 1.0
    for t in desc["word_adj_tuple"]:
        nl_adj[t[0], t[1] - 1] = 1.0
    adj_all = np.zeros((2, p_sz, p_sz), np.float32)
    adj_all[0, :num_db, :num_db] = db_adj
    adj_all[1, :num_nl, :num_nl] = nl_adj

    qscale_all = np.zeros((2, p_sz, 1), np.float32)
    qscale_all[0, :num_nl, 0] = 1.0 / num_nl
    qscale_all[1, :num_db, 0] = 1.0 / num_db
    kmask_all = np.zeros((2, 1, p_sz), np.float32)
    kmask_all[0, 0, :num_db] = 1.0
    kmask_all[1, 0, :num_nl] = 1.0

    return dict(num_nl=num_nl, num_db=num_db, n_total=n_total, p_sz=p_sz,
                feats_all=feats_all, adjw_all=adjw_all, adj3_all=adj3_all,
                rel_idx_all=rel_idx_all, rel_nl_db=rel_nl_db,
                adj_all=adj_all, db_adj=db_adj, nl_adj=nl_adj,
                qscale_all=qscale_all, kmask_all=kmask_all)


def fuse_params(p):
    f = {}
    we_all = jnp.concatenate([p["we"][e] for e in range(GGNN_EDGE_TYPES)], axis=1)
    be_all = jnp.concatenate([p["be"][e] for e in range(GGNN_EDGE_TYPES)], axis=1)
    whh_all = jnp.concatenate([p["whh"][g] for g in range(3)], axis=1)
    bhh_all = jnp.concatenate([p["bhh"][g] for g in range(3)], axis=1)
    f["w_msg_gh"] = jnp.concatenate([we_all, whh_all], axis=1)      # (D, 6D)
    f["b_msg_gh"] = jnp.concatenate([be_all, bhh_all], axis=1)      # (1, 6D)
    f["wih_all"] = jnp.concatenate([p["wih"][g] for g in range(3)], axis=1)
    f["bih_all"] = jnp.concatenate([p["bih"][g] for g in range(3)], axis=1)
    f["w_qm"] = jnp.concatenate([p["wg"], p["wv0"]], axis=1)        # (D, 2D)
    f["b_qm"] = jnp.concatenate([p["bg"], p["bv0"]], axis=1)
    f["wql"] = jnp.concatenate([p["wq"], p["wl"]], axis=1)          # (D, 2D)
    f["bql"] = jnp.concatenate([p["bq"], p["bl"]], axis=1)
    return f


@jax.jit
def _device_forward(feats_all, adjw_all, rel_idx_all, adj_all, qscale_all,
                    kmask_all, params, fused):
    return sadga_layer_pallas(feats_all, adjw_all, rel_idx_all, adj_all,
                              qscale_all, kmask_all, params, fused)


def sadga_layer_forward(params, fused, prep):
    out = _device_forward(jnp.asarray(prep["feats_all"]),
                          jnp.asarray(prep["adjw_all"]),
                          jnp.asarray(prep["rel_idx_all"]),
                          jnp.asarray(prep["adj_all"]),
                          jnp.asarray(prep["qscale_all"]),
                          jnp.asarray(prep["kmask_all"]),
                          params, fused)
    return jnp.concatenate([out[0, :prep["num_nl"]], out[1, :prep["num_db"]]], axis=0)


# ----------------------------------------------------------------------------
# Pure-JAX reference (for correctness checking of the whole layer).
# ----------------------------------------------------------------------------
def ggnn_ref(feats, adj3, p):
    h = feats
    for _ in range(GGNN_TIMESTEPS):
        a = jnp.zeros_like(h)
        for e in range(GGNN_EDGE_TYPES):
            a = a + adj3[e] @ (h @ p["we"][e] + p["be"][e])
        gi_r = a @ p["wih"][0] + p["bih"][0]
        gi_z = a @ p["wih"][1] + p["bih"][1]
        gi_n = a @ p["wih"][2] + p["bih"][2]
        gh_r = h @ p["whh"][0] + p["bhh"][0]
        gh_z = h @ p["whh"][1] + p["bhh"][1]
        gh_n = h @ p["whh"][2] + p["bhh"][2]
        r = jax.nn.sigmoid(gi_r + gh_r)
        z = jax.nn.sigmoid(gi_z + gh_z)
        n = jnp.tanh(gi_n + r * gh_n)
        h = (1.0 - z) * n + z * h
    return h


def sadga_aggr_ref(q_enc, k_enc, rel_k, rel_v, k_adj, p):
    d = q_enc.shape[-1]
    scale = 1.0 / math.sqrt(d)
    q_mean = jnp.mean(q_enc, axis=0, keepdims=True)
    glob = q_mean @ p["wg"] + p["bg"]
    k_s = jax.nn.sigmoid((k_enc @ glob.T) * scale)
    g1 = q_mean @ p["wv0"] + p["bv0"]
    k1 = k_enc @ p["wv1"] + p["bv1"]
    k_new = (1 - k_s) * k1 + k_s * g1
    q_glob = q_enc @ p["wq"] + p["bq"]
    glob_w = (q_glob @ k_new.T + jnp.einsum("qd,qkd->qk", q_glob, rel_k)) * scale
    glob_attn = _softmax(jnp.tanh(glob_w))
    q_loc = q_enc @ p["wl"] + p["bl"]
    loc_w = (q_loc @ k_new.T + jnp.einsum("qd,qkd->qk", q_loc, rel_k)) * scale
    loc_attn = jnp.tanh(loc_w)
    masked = jnp.where(k_adj[None] != 0, loc_attn[:, None, :], NEG_INF)
    attn_adj = _softmax(masked)
    k_loc = jnp.einsum("qab,bd->qad", attn_adj, k_new)
    k_self = jnp.broadcast_to(k_new[None], k_loc.shape)
    wlg = jnp.concatenate([p["wlg"][0], p["wlg"][1]])[:, None]
    loc_gate = jax.nn.sigmoid(jnp.concatenate([k_loc, k_self], -1) @ wlg + p["blg"])
    k_awr = loc_gate * k_loc + (1 - loc_gate) * k_self
    q_new = (jnp.einsum("qk,qkd->qd", glob_attn, k_awr)
             + jnp.einsum("qk,qkd->qd", glob_attn, rel_v))
    wgt = jnp.concatenate([p["wgt"][0], p["wgt"][1]])[:, None]
    gate = jax.nn.sigmoid(jnp.concatenate([q_new, q_enc], -1) @ wgt + p["bgt"])
    return gate * q_new + (1 - gate) * q_enc


def sadga_layer_ref(params, prep):
    h0 = ggnn_ref(jnp.asarray(prep["feats_all"][0]), jnp.asarray(prep["adj3_all"][0]), params)
    h1 = ggnn_ref(jnp.asarray(prep["feats_all"][1]), jnp.asarray(prep["adj3_all"][1]), params)
    nl = h0[:prep["num_nl"]]
    db = h1[:prep["num_db"]]
    rk = params["rel_k_emb"][jnp.asarray(prep["rel_nl_db"])]
    rv = params["rel_v_emb"][jnp.asarray(prep["rel_nl_db"])]
    nl_out = sadga_aggr_ref(nl, db, rk, rv, jnp.asarray(prep["db_adj"]), params)
    db_out = sadga_aggr_ref(db, nl, jnp.transpose(rk, (1, 0, 2)),
                            jnp.transpose(rv, (1, 0, 2)),
                            jnp.asarray(prep["nl_adj"]), params)
    return jnp.concatenate([nl_out, db_out], axis=0)


# ----------------------------------------------------------------------------
# Deterministic parameter init (synthetic; shapes follow the module __init__).
# ----------------------------------------------------------------------------
def init_params(key, hidden, num_rel_kinds):
    keys = iter(jax.random.split(key, 32))

    def lin(in_d, out_d):
        w = jax.random.normal(next(keys), (in_d, out_d), jnp.float32) * 0.1
        b = jax.random.normal(next(keys), (1, out_d), jnp.float32) * 0.01
        return w, b

    p = {}
    p["wg"], p["bg"] = lin(hidden, hidden)        # glob_linear
    p["wv0"], p["bv0"] = lin(hidden, hidden)      # glob_v_linears[0]
    p["wv1"], p["bv1"] = lin(hidden, hidden)      # glob_v_linears[1]
    p["wq"], p["bq"] = lin(hidden, hidden)        # glob_query_linear
    p["wl"], p["bl"] = lin(hidden, hidden)        # loc_query_linear
    p["wlg"] = jax.random.normal(next(keys), (2, hidden), jnp.float32) * 0.1   # loc_gate_linear split
    p["blg"] = jnp.zeros((1, 1), jnp.float32)
    p["wgt"] = jax.random.normal(next(keys), (2, hidden), jnp.float32) * 0.1   # gate_linear split
    p["bgt"] = jnp.zeros((1, 1), jnp.float32)
    p["we"] = jax.random.normal(next(keys), (GGNN_EDGE_TYPES, hidden, hidden), jnp.float32) * 0.1
    p["be"] = jnp.zeros((GGNN_EDGE_TYPES, 1, hidden), jnp.float32)
    p["wih"] = jax.random.normal(next(keys), (3, hidden, hidden), jnp.float32) * 0.1
    p["bih"] = jnp.zeros((3, 1, hidden), jnp.float32)
    p["whh"] = jax.random.normal(next(keys), (3, hidden, hidden), jnp.float32) * 0.1
    p["bhh"] = jnp.zeros((3, 1, hidden), jnp.float32)
    p["rel_k_emb"] = jax.random.normal(next(keys), (num_rel_kinds, hidden), jnp.float32) * 0.1
    p["rel_v_emb"] = jax.random.normal(next(keys), (num_rel_kinds, hidden), jnp.float32) * 0.1
    return p


if __name__ == "__main__":
    key = jax.random.PRNGKey(0)
    pkey, xkey, rkey = jax.random.split(key, 3)
    params = init_params(pkey, HIDDEN, NUM_REL_KINDS)
    fused = fuse_params(params)

    q_len = 8
    total = 16
    x = jax.random.normal(xkey, (1, total, HIDDEN), jnp.float32)
    relation = np.asarray(jax.random.randint(rkey, (total, total), 0, NUM_REL_KINDS))
    desc = {"word_adj_tuple": [(0, 3), (2, 5), (4, 7)]}

    prep = prepare_inputs(params, np.asarray(x), relation, q_len, desc)
    out = sadga_layer_forward(params, fused, prep)
    out = jax.block_until_ready(out)
    assert out.shape == (total, HIDDEN), out.shape

    ref = sadga_layer_ref(params, prep)
    np.testing.assert_allclose(np.asarray(out), np.asarray(ref), rtol=5e-4, atol=5e-4)

    print("KERNEL_OK")
</pallas_src>

<mosaic_0001>
module attributes {stable_mosaic.version = 11 : i64} {
  func.func @sadga_layer_kernel(%arg0: memref<2x32x32xf32, #tpu.memory_space<vmem>>, %arg1: memref<2x32x96xf32, #tpu.memory_space<vmem>>, %arg2: memref<2x8x8xi32, #tpu.memory_space<vmem>>, %arg3: memref<2x8x8xf32, #tpu.memory_space<vmem>>, %arg4: memref<2x8x1xf32, #tpu.memory_space<vmem>>, %arg5: memref<2x1x8xf32, #tpu.memory_space<vmem>>, %arg6: memref<5x32xf32, #tpu.memory_space<vmem>>, %arg7: memref<5x32xf32, #tpu.memory_space<vmem>>, %arg8: memref<32x192xf32, #tpu.memory_space<vmem>>, %arg9: memref<1x192xf32, #tpu.memory_space<vmem>>, %arg10: memref<32x96xf32, #tpu.memory_space<vmem>>, %arg11: memref<1x96xf32, #tpu.memory_space<vmem>>, %arg12: memref<32x64xf32, #tpu.memory_space<vmem>>, %arg13: memref<1x64xf32, #tpu.memory_space<vmem>>, %arg14: memref<32x32xf32, #tpu.memory_space<vmem>>, %arg15: memref<1x32xf32, #tpu.memory_space<vmem>>, %arg16: memref<32x64xf32, #tpu.memory_space<vmem>>, %arg17: memref<1x64xf32, #tpu.memory_space<vmem>>, %arg18: memref<2x32xf32, #tpu.memory_space<vmem>>, %arg19: memref<1x1xf32, #tpu.memory_space<vmem>>, %arg20: memref<2x32xf32, #tpu.memory_space<vmem>>, %arg21: memref<1x1xf32, #tpu.memory_space<vmem>>, %arg22: memref<2x8x32xf32, #tpu.memory_space<vmem>>) attributes {dimension_semantics = [], scalar_prefetch = 0 : i64, scratch_operands = 0 : i64, tpu.core_type = #tpu.core_type<tc>} {
    %c0 = arith.constant 0 : index
    %c0_0 = arith.constant 0 : index
    %c0_1 = arith.constant 0 : index
    %0 = vector.load %arg0[%c0, %c0_0, %c0_1] : memref<2x32x32xf32, #tpu.memory_space<vmem>>, vector<1x32x32xf32>
    %1 = vector.shape_cast %0 : vector<1x32x32xf32> to vector<32x32xf32>
    %c0_2 = arith.constant 0 : index
    %c0_3 = arith.constant 0 : index
    %c0_4 = arith.constant 0 : index
    %2 = vector.load %arg1[%c0_2, %c0_3, %c0_4] : memref<2x32x96xf32, #tpu.memory_space<vmem>>, vector<1x32x96xf32>
    %3 = vector.shape_cast %2 : vector<1x32x96xf32> to vector<32x96xf32>
    %c0_5 = arith.constant 0 : index
    %c0_6 = arith.constant 0 : index
    %4 = vector.load %arg8[%c0_5, %c0_6] : memref<32x192xf32, #tpu.memory_space<vmem>>, vector<32x192xf32>
    %cst = arith.constant dense<0.000000e+00> : vector<32x192xf32>
    %5 = tpu.matmul %1, %4, %cst {dimension_numbers = #tpu.dot_dimension_numbers<[1], [0], [0], [1], [0, 0, 1, 1], [], []>} : vector<32x32xf32>, vector<32x192xf32>, vector<32x192xf32> -> vector<32x192xf32>
    %c0_7 = arith.constant 0 : index
    %c0_8 = arith.constant 0 : index
    %6 = vector.load %arg9[%c0_7, %c0_8] : memref<1x192xf32, #tpu.memory_space<vmem>>, vector<1x192xf32>
    %7 = vector.broadcast %6 : vector<1x192xf32> to vector<32x192xf32>
    %8 = arith.addf %5, %7 : vector<32x192xf32>
    %9 = vector.extract_strided_slice %8 {offsets = [0, 0], sizes = [32, 32], strides = [1, 1]} : vector<32x192xf32> to vector<32x32xf32>
    %10 = vector.extract_strided_slice %8 {offsets = [0, 32], sizes = [32, 32], strides = [1, 1]} : vector<32x192xf32> to vector<32x32xf32>
    %11 = vector.extract_strided_slice %8 {offsets = [0, 64], sizes = [32, 32], strides = [1, 1]} : vector<32x192xf32> to vector<32x32xf32>
    %12 = tpu.concatenate %9, %10, %11 in 0 : vector<32x32xf32>, vector<32x32xf32>, vector<32x32xf32> -> vector<96x32xf32>
    %13 = vector.extract_strided_slice %8 {offsets = [0, 96], sizes = [32, 96], strides = [1, 1]} : vector<32x192xf32> to vector<32x96xf32>
    %cst_9 = arith.constant dense<0.000000e+00> : vector<32x32xf32>
    %14 = tpu.matmul %3, %12, %cst_9 {dimension_numbers = #tpu.dot_dimension_numbers<[1], [0], [0], [1], [0, 0, 1, 1], [], []>} : vector<32x96xf32>, vector<96x32xf32>, vector<32x32xf32> -> vector<32x32xf32>
    %c0_10 = arith.constant 0 : index
    %c0_11 = arith.constant 0 : index
    %15 = vector.load %arg10[%c0_10, %c0_11] : memref<32x96xf32, #tpu.memory_space<vmem>>, vector<32x96xf32>
    %cst_12 = arith.constant dense<0.000000e+00> : vector<32x96xf32>
    %16 = tpu.matmul %14, %15, %cst_12 {dimension_numbers = #tpu.dot_dimension_numbers<[1], [0], [0], [1], [0, 0, 1, 1], [], []>} : vector<32x32xf32>, vector<32x96xf32>, vector<32x96xf32> -> vector<32x96xf32>
    %c0_13 = arith.constant 0 : index
    %c0_14 = arith.constant 0 : index
    %17 = vector.load %arg11[%c0_13, %c0_14] : memref<1x96xf32, #tpu.memory_space<vmem>>, vector<1x96xf32>
    %18 = vector.broadcast %17 : vector<1x96xf32> to vector<32x96xf32>
    %19 = arith.addf %16, %18 : vector<32x96xf32>
    %20 = vector.extract_strided_slice %19 {offsets = [0, 0], sizes = [32, 32], strides = [1, 1]} : vector<32x96xf32> to vector<32x32xf32>
    %21 = vector.extract_strided_slice %13 {offsets = [0, 0], sizes = [32, 32], strides = [1, 1]} : vector<32x96xf32> to vector<32x32xf32>
    %22 = arith.addf %20, %21 : vector<32x32xf32>
    %23 = arith.negf %22 : vector<32x32xf32>
    %24 = math.exp %23 : vector<32x32xf32>
    %cst_15 = arith.constant 1.000000e+00 : f32
    %25 = vector.broadcast %cst_15 : f32 to vector<32x32xf32>
    %26 = arith.addf %25, %24 : vector<32x32xf32>
    %27 = arith.divf %25, %26 : vector<32x32xf32>
    %28 = vector.extract_strided_slice %19 {offsets = [0, 32], sizes = [32, 32], strides = [1, 1]} : vector<32x96xf32> to vector<32x32xf32>
    %29 = vector.extract_strided_slice %13 {offsets = [0, 32], sizes = [32, 32], strides = [1, 1]} : vector<32x96xf32> to vector<32x32xf32>
    %30 = arith.addf %28, %29 : vector<32x32xf32>
    %31 = arith.negf %30 : vector<32x32xf32>
    %32 = math.exp %31 : vector<32x32xf32>
    %cst_16 = arith.constant 1.000000e+00 : f32
    %33 = vector.broadcast %cst_16 : f32 to vector<32x32xf32>
    %34 = arith.addf %33, %32 : vector<32x32xf32>
    %35 = arith.divf %33, %34 : vector<32x32xf32>
    %36 = vector.extract_strided_slice %19 {offsets = [0, 64], sizes = [32, 32], strides = [1, 1]} : vector<32x96xf32> to vector<32x32xf32>
    %37 = vector.extract_strided_slice %13 {offsets = [0, 64], sizes = [32, 32], strides = [1, 1]} : vector<32x96xf32> to vector<32x32xf32>
    %38 = arith.mulf %27, %37 : vector<32x32xf32>
    %39 = arith.addf %36, %38 : vector<32x32xf32>
    %40 = math.tanh %39 : vector<32x32xf32>
    %cst_17 = arith.constant 1.000000e+00 : f32
    %41 = vector.broadcast %cst_17 : f32 to vector<32x32xf32>
    %42 = arith.subf %41, %35 : vector<32x32xf32>
    %43 = arith.mulf %42, %40 : vector<32x32xf32>
    %44 = arith.mulf %35, %1 : vector<32x32xf32>
    %45 = arith.addf %43, %44 : vector<32x32xf32>
    %c0_18 = arith.constant 0 : index
    %c0_19 = arith.constant 0 : index
    %46 = vector.load %arg8[%c0_18, %c0_19] : memref<32x192xf32, #tpu.memory_space<vmem>>, vector<32x192xf32>
    %cst_20 = arith.constant dense<0.000000e+00> : vector<32x192xf32>
    %47 = tpu.matmul %45, %46, %cst_20 {dimension_numbers = #tpu.dot_dimension_numbers<[1], [0], [0], [1], [0, 0, 1, 1], [], []>} : vector<32x32xf32>, vector<32x192xf32>, vector<32x192xf32> -> vector<32x192xf32>
    %c0_21 = arith.constant 0 : index
    %c0_22 = arith.constant 0 : index
    %48 = vector.load %arg9[%c0_21, %c0_22] : memref<1x192xf32, #tpu.memory_space<vmem>>, vector<1x192xf32>
    %49 = vector.broadcast %48 : vector<1x192xf32> to vector<32x192xf32>
    %50 = arith.addf %47, %49 : vector<32x192xf32>
    %51 = vector.extract_strided_slice %50 {offsets = [0, 0], sizes = [32, 32], strides = [1, 1]} : vector<32x192xf32> to vector<32x32xf32>
    %52 = vector.extract_strided_slice %50 {offsets = [0, 32], sizes = [32, 32], strides = [1, 1]} : vector<32x192xf32> to vector<32x32xf32>
    %53 = vector.extract_strided_slice %50 {offsets = [0, 64], sizes = [32, 32], strides = [1, 1]} : vector<32x192xf32> to vector<32x32xf32>
    %54 = tpu.concatenate %51, %52, %53 in 0 : vector<32x32xf32>, vector<32x32xf32>, vector<32x32xf32> -> vector<96x32xf32>
    %55 = vector.extract_strided_slice %50 {offsets = [0, 96], sizes = [32, 96], strides = [1, 1]} : vector<32x192xf32> to vector<32x96xf32>
    %cst_23 = arith.constant dense<0.000000e+00> : vector<32x32xf32>
    %56 = tpu.matmul %3, %54, %cst_23 {dimension_numbers = #tpu.dot_dimension_numbers<[1], [0], [0], [1], [0, 0, 1, 1], [], []>} : vector<32x96xf32>, vector<96x32xf32>, vector<32x32xf32> -> vector<32x32xf32>
    %c0_24 = arith.constant 0 : index
    %c0_25 = arith.constant 0 : index
    %57 = vector.load %arg10[%c0_24, %c0_25] : memref<32x96xf32, #tpu.memory_space<vmem>>, vector<32x96xf32>
    %cst_26 = arith.constant dense<0.000000e+00> : vector<32x96xf32>
    %58 = tpu.matmul %56, %57, %cst_26 {dimension_numbers = #tpu.dot_dimension_numbers<[1], [0], [0], [1], [0, 0, 1, 1], [], []>} : vector<32x32xf32>, vector<32x96xf32>, vector<32x96xf32> -> vector<32x96xf32>
    %c0_27 = arith.constant 0 : index
    %c0_28 = arith.constant 0 : index
    %59 = vector.load %arg11[%c0_27, %c0_28] : memref<1x96xf32, #tpu.memory_space<vmem>>, vector<1x96xf32>
    %60 = vector.broadcast %59 : vector<1x96xf32> to vector<32x96xf32>
    %61 = arith.addf %58, %60 : vector<32x96xf32>
    %62 = vector.extract_strided_slice %61 {offsets = [0, 0], sizes = [32, 32], strides = [1, 1]} : vector<32x96xf32> to vector<32x32xf32>
    %63 = vector.extract_strided_slice %55 {offsets = [0, 0], sizes = [32, 32], strides = [1, 1]} : vector<32x96xf32> to vector<32x32xf32>
    %64 = arith.addf %62, %63 : vector<32x32xf32>
    %65 = arith.negf %64 : vector<32x32xf32>
    %66 = math.exp %65 : vector<32x32xf32>
    %cst_29 = arith.constant 1.000000e+00 : f32
    %67 = vector.broadcast %cst_29 : f32 to vector<32x32xf32>
    %68 = arith.addf %67, %66 : vector<32x32xf32>
    %69 = arith.divf %67, %68 : vector<32x32xf32>
    %70 = vector.extract_strided_slice %61 {offsets = [0, 32], sizes = [32, 32], strides = [1, 1]} : vector<32x96xf32> to vector<32x32xf32>
    %71 = vector.extract_strided_slice %55 {offsets = [0, 32], sizes = [32, 32], strides = [1, 1]} : vector<32x96xf32> to vector<32x32xf32>
    %72 = arith.addf %70, %71 : vector<32x32xf32>
    %73 = arith.negf %72 : vector<32x32xf32>
    %74 = math.exp %73 : vector<32x32xf32>
    %cst_30 = arith.constant 1.000000e+00 : f32
    %75 = vector.broadcast %cst_30 : f32 to vector<32x32xf32>
    %76 = arith.addf %75, %74 : vector<32x32xf32>
    %77 = arith.divf %75, %76 : vector<32x32xf32>
    %78 = vector.extract_strided_slice %61 {offsets = [0, 64], sizes = [32, 32], strides = [1, 1]} : vector<32x96xf32> to vector<32x32xf32>
    %79 = vector.extract_strided_slice %55 {offsets = [0, 64], sizes = [32, 32], strides = [1, 1]} : vector<32x96xf32> to vector<32x32xf32>
    %80 = arith.mulf %69, %79 : vector<32x32xf32>
    %81 = arith.addf %78, %80 : vector<32x32xf32>
    %82 = math.tanh %81 : vector<32x32xf32>
    %cst_31 = arith.constant 1.000000e+00 : f32
    %83 = vector.broadcast %cst_31 : f32 to vector<32x32xf32>
    %84 = arith.subf %83, %77 : vector<32x32xf32>
    %85 = arith.mulf %84, %82 : vector<32x32xf32>
    %86 = arith.mulf %77, %45 : vector<32x32xf32>
    %87 = arith.addf %85, %86 : vector<32x32xf32>
    %88 = vector.extract_strided_slice %87 {offsets = [0, 0], sizes = [8, 32], strides = [1, 1]} : vector<32x32xf32> to vector<8x32xf32>
    %c1 = arith.constant 1 : index
    %c0_32 = arith.constant 0 : index
    %c0_33 = arith.constant 0 : index
    %89 = vector.load %arg0[%c1, %c0_32, %c0_33] : memref<2x32x32xf32, #tpu.memory_space<vmem>>, vector<1x32x32xf32>
    %90 = vector.shape_cast %89 : vector<1x32x32xf32> to vector<32x32xf32>
    %c1_34 = arith.constant 1 : index
    %c0_35 = arith.constant 0 : index
    %c0_36 = arith.constant 0 : index
    %91 = vector.load %arg1[%c1_34, %c0_35, %c0_36] : memref<2x32x96xf32, #tpu.memory_space<vmem>>, vector<1x32x96xf32>
    %92 = vector.shape_cast %91 : vector<1x32x96xf32> to vector<32x96xf32>
    %c0_37 = arith.constant 0 : index
    %c0_38 = arith.constant 0 : index
    %93 = vector.load %arg8[%c0_37, %c0_38] : memref<32x192xf32, #tpu.memory_space<vmem>>, vector<32x192xf32>
    %cst_39 = arith.constant dense<0.000000e+00> : vector<32x192xf32>
    %94 = tpu.matmul %90, %93, %cst_39 {dimension_numbers = #tpu.dot_dimension_numbers<[1], [0], [0], [1], [0, 0, 1, 1], [], []>} : vector<32x32xf32>, vector<32x192xf32>, vector<32x192xf32> -> vector<32x192xf32>
    %c0_40 = arith.constant 0 : index
    %c0_41 = arith.constant 0 : index
    %95 = vector.load %arg9[%c0_40, %c0_41] : memref<1x192xf32, #tpu.memory_space<vmem>>, vector<1x192xf32>
    %96 = vector.broadcast %95 : vector<1x192xf32> to vector<32x192xf32>
    %97 = arith.addf %94, %96 : vector<32x192xf32>
    %98 = vector.extract_strided_slice %97 {offsets = [0, 0], sizes = [32, 32], strides = [1, 1]} : vector<32x192xf32> to vector<32x32xf32>
    %99 = vector.extract_strided_slice %97 {offsets = [0, 32], sizes = [32, 32], strides = [1, 1]} : vector<32x192xf32> to vector<32x32xf32>
    %100 = vector.extract_strided_slice %97 {offsets = [0, 64], sizes = [32, 32], strides = [1, 1]} : vector<32x192xf32> to vector<32x32xf32>
    %101 = tpu.concatenate %98, %99, %100 in 0 : vector<32x32xf32>, vector<32x32xf32>, vector<32x32xf32> -> vector<96x32xf32>
    %102 = vector.extract_strided_slice %97 {offsets = [0, 96], sizes = [32, 96], strides = [1, 1]} : vector<32x192xf32> to vector<32x96xf32>
    %cst_42 = arith.constant dense<0.000000e+00> : vector<32x32xf32>
    %103 = tpu.matmul %92, %101, %cst_42 {dimension_numbers = #tpu.dot_dimension_numbers<[1], [0], [0], [1], [0, 0, 1, 1], [], []>} : vector<32x96xf32>, vector<96x32xf32>, vector<32x32xf32> -> vector<32x32xf32>
    %c0_43 = arith.constant 0 : index
    %c0_44 = arith.constant 0 : index
    %104 = vector.load %arg10[%c0_43, %c0_44] : memref<32x96xf32, #tpu.memory_space<vmem>>, vector<32x96xf32>
    %cst_45 = arith.constant dense<0.000000e+00> : vector<32x96xf32>
    %105 = tpu.matmul %103, %104, %cst_45 {dimension_numbers = #tpu.dot_dimension_numbers<[1], [0], [0], [1], [0, 0, 1, 1], [], []>} : vector<32x32xf32>, vector<32x96xf32>, vector<32x96xf32> -> vector<32x96xf32>
    %c0_46 = arith.constant 0 : index
    %c0_47 = arith.constant 0 : index
    %106 = vector.load %arg11[%c0_46, %c0_47] : memref<1x96xf32, #tpu.memory_space<vmem>>, vector<1x96xf32>
    %107 = vector.broadcast %106 : vector<1x96xf32> to vector<32x96xf32>
    %108 = arith.addf %105, %107 : vector<32x96xf32>
    %109 = vector.extract_strided_slice %108 {offsets = [0, 0], sizes = [32, 32], strides = [1, 1]} : vector<32x96xf32> to vector<32x32xf32>
    %110 = vector.extract_strided_slice %102 {offsets = [0, 0], sizes = [32, 32], strides = [1, 1]} : vector<32x96xf32> to vector<32x32xf32>
    %111 = arith.addf %109, %110 : vector<32x32xf32>
    %112 = arith.negf %111 : vector<32x32xf32>
    %113 = math.exp %112 : vector<32x32xf32>
    %cst_48 = arith.constant 1.000000e+00 : f32
    %114 = vector.broadcast %cst_48 : f32 to vector<32x32xf32>
    %115 = arith.addf %114, %113 : vector<32x32xf32>
    %116 = arith.divf %114, %115 : vector<32x32xf32>
    %117 = vector.extract_strided_slice %108 {offsets = [0, 32], sizes = [32, 32], strides = [1, 1]} : vector<32x96xf32> to vector<32x32xf32>
    %118 = vector.extract_strided_slice %102 {offsets = [0, 32], sizes = [32, 32], strides = [1, 1]} : vector<32x96xf32> to vector<32x32xf32>
    %119 = arith.addf %117, %118 : vector<32x32xf32>
    %120 = arith.negf %119 : vector<32x32xf32>
    %121 = math.exp %120 : vector<32x32xf32>
    %cst_49 = arith.constant 1.000000e+00 : f32
    %122 = vector.broadcast %cst_49 : f32 to vector<32x32xf32>
    %123 = arith.addf %122, %121 : vector<32x32xf32>
    %124 = arith.divf %122, %123 : vector<32x32xf32>
    %125 = vector.extract_strided_slice %108 {offsets = [0, 64], sizes = [32, 32], strides = [1, 1]} : vector<32x96xf32> to vector<32x32xf32>
    %126 = vector.extract_strided_slice %102 {offsets = [0, 64], sizes = [32, 32], strides = [1, 1]} : vector<32x96xf32> to vector<32x32xf32>
    %127 = arith.mulf %116, %126 : vector<32x32xf32>
    %128 = arith.addf %125, %127 : vector<32x32xf32>
    %129 = math.tanh %128 : vector<32x32xf32>
    %cst_50 = arith.constant 1.000000e+00 : f32
    %130 = vector.broadcast %cst_50 : f32 to vector<32x32xf32>
    %131 = arith.subf %130, %124 : vector<32x32xf32>
    %132 = arith.mulf %131, %129 : vector<32x32xf32>
    %133 = arith.mulf %124, %90 : vector<32x32xf32>
    %134 = arith.addf %132, %133 : vector<32x32xf32>
    %c0_51 = arith.constant 0 : index
    %c0_52 = arith.constant 0 : index
    %135 = vector.load %arg8[%c0_51, %c0_52] : memref<32x192xf32, #tpu.memory_space<vmem>>, vector<32x192xf32>
    %cst_53 = arith.constant dense<0.000000e+00> : vector<32x192xf32>
    %136 = tpu.matmul %134, %135, %cst_53 {dimension_numbers = #tpu.dot_dimension_numbers<[1], [0], [0], [1], [0, 0, 1, 1], [], []>} : vector<32x32xf32>, vector<32x192xf32>, vector<32x192xf32> -> vector<32x192xf32>
    %c0_54 = arith.constant 0 : index
    %c0_55 = arith.constant 0 : index
    %137 = vector.load %arg9[%c0_54, %c0_55] : memref<1x192xf32, #tpu.memory_space<vmem>>, vector<1x192xf32>
    %138 = vector.broadcast %137 : vector<1x192xf32> to vector<32x192xf32>
    %139 = arith.addf %136, %138 : vector<32x192xf32>
    %140 = vector.extract_strided_slice %139 {offsets = [0, 0], sizes = [32, 32], strides = [1, 1]} : vector<32x192xf32> to vector<32x32xf32>
    %141 = vector.extract_strided_slice %139 {offsets = [0, 32], sizes = [32, 32], strides = [1, 1]} : vector<32x192xf32> to vector<32x32xf32>
    %142 = vector.extract_strided_slice %139 {offsets = [0, 64], sizes = [32, 32], strides = [1, 1]} : vector<32x192xf32> to vector<32x32xf32>
    %143 = tpu.concatenate %140, %141, %142 in 0 : vector<32x32xf32>, vector<32x32xf32>, vector<32x32xf32> -> vector<96x32xf32>
    %144 = vector.extract_strided_slice %139 {offsets = [0, 96], sizes = [32, 96], strides = [1, 1]} : vector<32x192xf32> to vector<32x96xf32>
    %cst_56 = arith.constant dense<0.000000e+00> : vector<32x32xf32>
    %145 = tpu.matmul %92, %143, %cst_56 {dimension_numbers = #tpu.dot_dimension_numbers<[1], [0], [0], [1], [0, 0, 1, 1], [], []>} : vector<32x96xf32>, vector<96x32xf32>, vector<32x32xf32> -> vector<32x32xf32>
    %c0_57 = arith.constant 0 : index
    %c0_58 = arith.constant 0 : index
    %146 = vector.load %arg10[%c0_57, %c0_58] : memref<32x96xf32, #tpu.memory_space<vmem>>, vector<32x96xf32>
    %cst_59 = arith.constant dense<0.000000e+00> : vector<32x96xf32>
    %147 = tpu.matmul %145, %146, %cst_59 {dimension_numbers = #tpu.dot_dimension_numbers<[1], [0], [0], [1], [0, 0, 1, 1], [], []>} : vector<32x32xf32>, vector<32x96xf32>, vector<32x96xf32> -> vector<32x96xf32>
    %c0_60 = arith.constant 0 : index
    %c0_61 = arith.constant 0 : index
    %148 = vector.load %arg11[%c0_60, %c0_61] : memref<1x96xf32, #tpu.memory_space<vmem>>, vector<1x96xf32>
    %149 = vector.broadcast %148 : vector<1x96xf32> to vector<32x96xf32>
    %150 = arith.addf %147, %149 : vector<32x96xf32>
    %151 = vector.extract_strided_slice %150 {offsets = [0, 0], sizes = [32, 32], strides = [1, 1]} : vector<32x96xf32> to vector<32x32xf32>
    %152 = vector.extract_strided_slice %144 {offsets = [0, 0], sizes = [32, 32], strides = [1, 1]} : vector<32x96xf32> to vector<32x32xf32>
    %153 = arith.addf %151, %152 : vector<32x32xf32>
    %154 = arith.negf %153 : vector<32x32xf32>
    %155 = math.exp %154 : vector<32x32xf32>
    %cst_62 = arith.constant 1.000000e+00 : f32
    %156 = vector.broadcast %cst_62 : f32 to vector<32x32xf32>
    %157 = arith.addf %156, %155 : vector<32x32xf32>
    %158 = arith.divf %156, %157 : vector<32x32xf32>
    %159 = vector.extract_strided_slice %150 {offsets = [0, 32], sizes = [32, 32], strides = [1, 1]} : vector<32x96xf32> to vector<32x32xf32>
    %160 = vector.extract_strided_slice %144 {offsets = [0, 32], sizes = [32, 32], strides = [1, 1]} : vector<32x96xf32> to vector<32x32xf32>
    %161 = arith.addf %159, %160 : vector<32x32xf32>
    %162 = arith.negf %161 : vector<32x32xf32>
    %163 = math.exp %162 : vector<32x32xf32>
    %cst_63 = arith.constant 1.000000e+00 : f32
    %164 = vector.broadcast %cst_63 : f32 to vector<32x32xf32>
    %165 = arith.addf %164, %163 : vector<32x32xf32>
    %166 = arith.divf %164, %165 : vector<32x32xf32>
    %167 = vector.extract_strided_slice %150 {offsets = [0, 64], sizes = [32, 32], strides = [1, 1]} : vector<32x96xf32> to vector<32x32xf32>
    %168 = vector.extract_strided_slice %144 {offsets = [0, 64], sizes = [32, 32], strides = [1, 1]} : vector<32x96xf32> to vector<32x32xf32>
    %169 = arith.mulf %158, %168 : vector<32x32xf32>
    %170 = arith.addf %167, %169 : vector<32x32xf32>
    %171 = math.tanh %170 : vector<32x32xf32>
    %cst_64 = arith.constant 1.000000e+00 : f32
    %172 = vector.broadcast %cst_64 : f32 to vector<32x32xf32>
    %173 = arith.subf %172, %166 : vector<32x32xf32>
    %174 = arith.mulf %173, %171 : vector<32x32xf32>
    %175 = arith.mulf %166, %134 : vector<32x32xf32>
    %176 = arith.addf %174, %175 : vector<32x32xf32>
    %177 = vector.extract_strided_slice %176 {offsets = [0, 0], sizes = [8, 32], strides = [1, 1]} : vector<32x32xf32> to vector<8x32xf32>
    %c0_65 = arith.constant 0 : index
    %c0_66 = arith.constant 0 : index
    %178 = vector.load %arg6[%c0_65, %c0_66] : memref<5x32xf32, #tpu.memory_space<vmem>>, vector<5x32xf32>
    %c0_67 = arith.constant 0 : index
    %c0_68 = arith.constant 0 : index
    %179 = vector.load %arg7[%c0_67, %c0_68] : memref<5x32xf32, #tpu.memory_space<vmem>>, vector<5x32xf32>
    %c0_69 = arith.constant 0 : index
    %c0_70 = arith.constant 0 : index
    %c0_71 = arith.constant 0 : index
    %180 = vector.load %arg2[%c0_69, %c0_70, %c0_71] : memref<2x8x8xi32, #tpu.memory_space<vmem>>, vector<1x8x8xi32>
    %181 = vector.shape_cast %180 : vector<1x8x8xi32> to vector<8x8xi32>
    %c0_72 = arith.constant 0 : index
    %c0_73 = arith.constant 0 : index
    %c0_74 = arith.constant 0 : index
    %182 = vector.load %arg3[%c0_72, %c0_73, %c0_74] : memref<2x8x8xf32, #tpu.memory_space<vmem>>, vector<1x8x8xf32>
    %183 = vector.shape_cast %182 : vector<1x8x8xf32> to vector<8x8xf32>
    %c0_75 = arith.constant 0 : index
    %c0_76 = arith.constant 0 : index
    %c0_77 = arith.constant 0 : index
    %184 = vector.load %arg4[%c0_75, %c0_76, %c0_77] : memref<2x8x1xf32, #tpu.memory_space<vmem>>, vector<1x8x1xf32>
    %185 = vector.shape_cast %184 : vector<1x8x1xf32> to vector<8x1xf32>
    %c0_78 = arith.constant 0 : index
    %c0_79 = arith.constant 0 : index
    %c0_80 = arith.constant 0 : index
    %186 = vector.load %arg5[%c0_78, %c0_79, %c0_80] : memref<2x1x8xf32, #tpu.memory_space<vmem>>, vector<1x1x8xf32>
    %187 = vector.shape_cast %186 : vector<1x1x8xf32> to vector<1x8xf32>
    %188 = vector.broadcast %185 : vector<8x1xf32> to vector<8x32xf32>
    %189 = arith.mulf %88, %188 : vector<8x32xf32>
    %cst_81 = arith.constant dense<0.000000e+00> : vector<32xf32>
    %190 = vector.multi_reduction <add>, %189, %cst_81 [0] : vector<8x32xf32> to vector<32xf32>
    %191 = vector.shape_cast %190 : vector<32xf32> to vector<1x32xf32>
    %c0_82 = arith.constant 0 : index
    %c0_83 = arith.constant 0 : index
    %192 = vector.load %arg12[%c0_82, %c0_83] : memref<32x64xf32, #tpu.memory_space<vmem>>, vector<32x64xf32>
    %cst_84 = arith.constant dense<0.000000e+00> : vector<1x64xf32>
    %193 = tpu.matmul %191, %192, %cst_84 {dimension_numbers = #tpu.dot_dimension_numbers<[1], [0], [0], [1], [0, 0, 1, 1], [], []>} : vector<1x32xf32>, vector<32x64xf32>, vector<1x64xf32> -> vector<1x64xf32>
    %c0_85 = arith.constant 0 : index
    %c0_86 = arith.constant 0 : index
    %194 = vector.load %arg13[%c0_85, %c0_86] : memref<1x64xf32, #tpu.memory_space<vmem>>, vector<1x64xf32>
    %195 = arith.addf %193, %194 : vector<1x64xf32>
    %196 = vector.extract_strided_slice %195 {offsets = [0, 0], sizes = [1, 32], strides = [1, 1]} : vector<1x64xf32> to vector<1x32xf32>
    %197 = vector.extract_strided_slice %195 {offsets = [0, 32], sizes = [1, 32], strides = [1, 1]} : vector<1x64xf32> to vector<1x32xf32>
    %198 = vector.broadcast %196 : vector<1x32xf32> to vector<8x32xf32>
    %199 = arith.mulf %177, %198 : vector<8x32xf32>
    %cst_87 = arith.constant dense<0.000000e+00> : vector<8xf32>
    %200 = vector.multi_reduction <add>, %199, %cst_87 [1] : vector<8x32xf32> to vector<8xf32>
    %201 = vector.shape_cast %200 : vector<8xf32> to vector<8x1xf32>
    %cst_88 = arith.constant 0.176776692 : f32
    %202 = vector.broadcast %cst_88 : f32 to vector<8x1xf32>
    %203 = arith.mulf %201, %202 : vector<8x1xf32>
    %204 = arith.negf %203 : vector<8x1xf32>
    %205 = math.exp %204 : vector<8x1xf32>
    %cst_89 = arith.constant 1.000000e+00 : f32
    %206 = vector.broadcast %cst_89 : f32 to vector<8x1xf32>
    %207 = arith.addf %206, %205 : vector<8x1xf32>
    %208 = arith.divf %206, %207 : vector<8x1xf32>
    %c0_90 = arith.constant 0 : index
    %c0_91 = arith.constant 0 : index
    %209 = vector.load %arg14[%c0_90, %c0_91] : memref<32x32xf32, #tpu.memory_space<vmem>>, vector<32x32xf32>
    %cst_92 = arith.constant dense<0.000000e+00> : vector<8x32xf32>
    %210 = tpu.matmul %177, %209, %cst_92 {dimension_numbers = #tpu.dot_dimension_numbers<[1], [0], [0], [1], [0, 0, 1, 1], [], []>} : vector<8x32xf32>, vector<32x32xf32>, vector<8x32xf32> -> vector<8x32xf32>
    %c0_93 = arith.constant 0 : index
    %c0_94 = arith.constant 0 : index
    %211 = vector.load %arg15[%c0_93, %c0_94] : memref<1x32xf32, #tpu.memory_space<vmem>>, vector<1x32xf32>
    %212 = vector.broadcast %211 : vector<1x32xf32> to vector<8x32xf32>
    %213 = arith.addf %210, %212 : vector<8x32xf32>
    %cst_95 = arith.constant 1.000000e+00 : f32
    %214 = vector.broadcast %cst_95 : f32 to vector<8x1xf32>
    %215 = arith.subf %214, %208 : vector<8x1xf32>
    %216 = vector.broadcast %215 : vector<8x1xf32> to vector<8x32xf32>
    %217 = arith.mulf %216, %213 : vector<8x32xf32>
    %218 = vector.broadcast %208 : vector<8x1xf32> to vector<8x32xf32>
    %219 = vector.broadcast %197 : vector<1x32xf32> to vector<8x32xf32>
    %220 = arith.mulf %218, %219 : vector<8x32xf32>
    %221 = arith.addf %217, %220 : vector<8x32xf32>
    %c0_96 = arith.constant 0 : index
    %c0_97 = arith.constant 0 : index
    %222 = vector.load %arg16[%c0_96, %c0_97] : memref<32x64xf32, #tpu.memory_space<vmem>>, vector<32x64xf32>
    %cst_98 = arith.constant dense<0.000000e+00> : vector<8x64xf32>
    %223 = tpu.matmul %88, %222, %cst_98 {dimension_numbers = #tpu.dot_dimension_numbers<[1], [0], [0], [1], [0, 0, 1, 1], [], []>} : vector<8x32xf32>, vector<32x64xf32>, vector<8x64xf32> -> vector<8x64xf32>
    %c0_99 = arith.constant 0 : index
    %c0_100 = arith.constant 0 : index
    %224 = vector.load %arg17[%c0_99, %c0_100] : memref<1x64xf32, #tpu.memory_space<vmem>>, vector<1x64xf32>
    %225 = vector.broadcast %224 : vector<1x64xf32> to vector<8x64xf32>
    %226 = arith.addf %223, %225 : vector<8x64xf32>
    %227 = vector.extract_strided_slice %226 {offsets = [0, 0], sizes = [8, 32], strides = [1, 1]} : vector<8x64xf32> to vector<8x32xf32>
    %228 = vector.extract_strided_slice %226 {offsets = [0, 32], sizes = [8, 32], strides = [1, 1]} : vector<8x64xf32> to vector<8x32xf32>
    %cst_101 = arith.constant dense<0.000000e+00> : vector<8x5xf32>
    %229 = tpu.matmul %227, %178, %cst_101 {dimension_numbers = #tpu.dot_dimension_numbers<[1], [1], [0], [0], [0, 0, 1, 0], [], []>} : vector<8x32xf32>, vector<5x32xf32>, vector<8x5xf32> -> vector<8x5xf32>
    %cst_102 = arith.constant dense<0.000000e+00> : vector<8x5xf32>
    %230 = tpu.matmul %228, %178, %cst_102 {dimension_numbers = #tpu.dot_dimension_numbers<[1], [1], [0], [0], [0, 0, 1, 0], [], []>} : vector<8x32xf32>, vector<5x32xf32>, vector<8x5xf32> -> vector<8x5xf32>
    %cst_103 = arith.constant 0.000000e+00 : f32
    %231 = vector.broadcast %cst_103 : f32 to vector<8x8xf32>
    %cst_104 = arith.constant 0.000000e+00 : f32
    %232 = vector.broadcast %cst_104 : f32 to vector<8x8xf32>
    %c0_i32 = arith.constant 0 : i32
    %233 = vector.broadcast %c0_i32 : i32 to vector<8x8xi32>
    %234 = arith.cmpi eq, %181, %233 : vector<8x8xi32>
    %235 = vector.extract_strided_slice %229 {offsets = [0, 0], sizes = [8, 1], strides = [1, 1]} : vector<8x5xf32> to vector<8x1xf32>
    %cst_105 = arith.constant 0.000000e+00 : f32
    %236 = vector.shape_cast %235 : vector<8x1xf32> to vector<8x1xf32>
    %237 = vector.broadcast %236 : vector<8x1xf32> to vector<8x8xf32>
    %238 = vector.broadcast %cst_105 : f32 to vector<8x8xf32>
    %239 = arith.select %234, %237, %238 : vector<8x8xi1>, vector<8x8xf32>
    %240 = arith.addf %231, %239 : vector<8x8xf32>
    %241 = vector.extract_strided_slice %230 {offsets = [0, 0], sizes = [8, 1], strides = [1, 1]} : vector<8x5xf32> to vector<8x1xf32>
    %cst_106 = arith.constant 0.000000e+00 : f32
    %242 = vector.shape_cast %241 : vector<8x1xf32> to vector<8x1xf32>
    %243 = vector.broadcast %242 : vector<8x1xf32> to vector<8x8xf32>
    %244 = vector.broadcast %cst_106 : f32 to vector<8x8xf32>
    %245 = arith.select %234, %243, %244 : vector<8x8xi1>, vector<8x8xf32>
    %246 = arith.addf %232, %245 : vector<8x8xf32>
    %c1_i32 = arith.constant 1 : i32
    %247 = vector.broadcast %c1_i32 : i32 to vector<8x8xi32>
    %248 = arith.cmpi eq, %181, %247 : vector<8x8xi32>
    %249 = vector.extract_strided_slice %229 {offsets = [0, 1], sizes = [8, 1], strides = [1, 1]} : vector<8x5xf32> to vector<8x1xf32>
    %cst_107 = arith.constant 0.000000e+00 : f32
    %250 = vector.shape_cast %249 : vector<8x1xf32> to vector<8x1xf32>
    %251 = vector.broadcast %250 : vector<8x1xf32> to vector<8x8xf32>
    %252 = vector.broadcast %cst_107 : f32 to vector<8x8xf32>
    %253 = arith.select %248, %251, %252 : vector<8x8xi1>, vector<8x8xf32>
    %254 = arith.addf %240, %253 : vector<8x8xf32>
    %255 = vector.extract_strided_slice %230 {offsets = [0, 1], sizes = [8, 1], strides = [1, 1]} : vector<8x5xf32> to vector<8x1xf32>
    %cst_108 = arith.constant 0.000000e+00 : f32
    %256 = vector.shape_cast %255 : vector<8x1xf32> to vector<8x1xf32>
    %257 = vector.broadcast %256 : vector<8x1xf32> to vector<8x8xf32>
    %258 = vector.broadcast %cst_108 : f32 to vector<8x8xf32>
    %259 = arith.select %248, %257, %258 : vector<8x8xi1>, vector<8x8xf32>
    %260 = arith.addf %246, %259 : vector<8x8xf32>
    %c2_i32 = arith.constant 2 : i32
    %261 = vector.broadcast %c2_i32 : i32 to vector<8x8xi32>
    %262 = arith.cmpi eq, %181, %261 : vector<8x8xi32>
    %263 = vector.extract_strided_slice %229 {offsets = [0, 2], sizes = [8, 1], strides = [1, 1]} : vector<8x5xf32> to vector<8x1xf32>
    %cst_109 = arith.constant 0.000000e+00 : f32
    %264 = vector.shape_cast %263 : vector<8x1xf32> to vector<8x1xf32>
    %265 = vector.broadcast %264 : vector<8x1xf32> to vector<8x8xf32>
    %266 = vector.broadcast %cst_109 : f32 to vector<8x8xf32>
    %267 = arith.select %262, %265, %266 : vector<8x8xi1>, vector<8x8xf32>
    %268 = arith.addf %254, %267 : vector<8x8xf32>
    %269 = vector.extract_strided_slice %230 {offsets = [0, 2], sizes = [8, 1], strides = [1, 1]} : vector<8x5xf32> to vector<8x1xf32>
    %cst_110 = arith.constant 0.000000e+00 : f32
    %270 = vector.shape_cast %269 : vector<8x1xf32> to vector<8x1xf32>
    %271 = vector.broadcast %270 : vector<8x1xf32> to vector<8x8xf32>
    %272 = vector.broadcast %cst_110 : f32 to vector<8x8xf32>
    %273 = arith.select %262, %271, %272 : vector<8x8xi1>, vector<8x8xf32>
    %274 = arith.addf %260, %273 : vector<8x8xf32>
    %c3_i32 = arith.constant 3 : i32
    %275 = vector.broadcast %c3_i32 : i32 to vector<8x8xi32>
    %276 = arith.cmpi eq, %181, %275 : vector<8x8xi32>
    %277 = vector.extract_strided_slice %229 {offsets = [0, 3], sizes = [8, 1], strides = [1, 1]} : vector<8x5xf32> to vector<8x1xf32>
    %cst_111 = arith.constant 0.000000e+00 : f32
    %278 = vector.shape_cast %277 : vector<8x1xf32> to vector<8x1xf32>
    %279 = vector.broadcast %278 : vector<8x1xf32> to vector<8x8xf32>
    %280 = vector.broadcast %cst_111 : f32 to vector<8x8xf32>
    %281 = arith.select %276, %279, %280 : vector<8x8xi1>, vector<8x8xf32>
    %282 = arith.addf %268, %281 : vector<8x8xf32>
    %283 = vector.extract_strided_slice %230 {offsets = [0, 3], sizes = [8, 1], strides = [1, 1]} : vector<8x5xf32> to vector<8x1xf32>
    %cst_112 = arith.constant 0.000000e+00 : f32
    %284 = vector.shape_cast %283 : vector<8x1xf32> to vector<8x1xf32>
    %285 = vector.broadcast %284 : vector<8x1xf32> to vector<8x8xf32>
    %286 = vector.broadcast %cst_112 : f32 to vector<8x8xf32>
    %287 = arith.select %276, %285, %286 : vector<8x8xi1>, vector<8x8xf32>
    %288 = arith.addf %274, %287 : vector<8x8xf32>
    %c4_i32 = arith.constant 4 : i32
    %289 = vector.broadcast %c4_i32 : i32 to vector<8x8xi32>
    %290 = arith.cmpi eq, %181, %289 : vector<8x8xi32>
    %291 = vector.extract_strided_slice %229 {offsets = [0, 4], sizes = [8, 1], strides = [1, 1]} : vector<8x5xf32> to vector<8x1xf32>
    %cst_113 = arith.constant 0.000000e+00 : f32
    %292 = vector.shape_cast %291 : vector<8x1xf32> to vector<8x1xf32>
    %293 = vector.broadcast %292 : vector<8x1xf32> to vector<8x8xf32>
    %294 = vector.broadcast %cst_113 : f32 to vector<8x8xf32>
    %295 = arith.select %290, %293, %294 : vector<8x8xi1>, vector<8x8xf32>
    %296 = arith.addf %282, %295 : vector<8x8xf32>
    %297 = vector.extract_strided_slice %230 {offsets = [0, 4], sizes = [8, 1], strides = [1, 1]} : vector<8x5xf32> to vector<8x1xf32>
    %cst_114 = arith.constant 0.000000e+00 : f32
    %298 = vector.shape_cast %297 : vector<8x1xf32> to vector<8x1xf32>
    %299 = vector.broadcast %298 : vector<8x1xf32> to vector<8x8xf32>
    %300 = vector.broadcast %cst_114 : f32 to vector<8x8xf32>
    %301 = arith.select %290, %299, %300 : vector<8x8xi1>, vector<8x8xf32>
    %302 = arith.addf %288, %301 : vector<8x8xf32>
    %cst_115 = arith.constant dense<0.000000e+00> : vector<8x8xf32>
    %303 = tpu.matmul %227, %221, %cst_115 {dimension_numbers = #tpu.dot_dimension_numbers<[1], [1], [0], [0], [0, 0, 1, 0], [], []>} : vector<8x32xf32>, vector<8x32xf32>, vector<8x8xf32> -> vector<8x8xf32>
    %cst_116 = arith.constant dense<0.000000e+00> : vector<8x8xf32>
    %304 = tpu.matmul %228, %221, %cst_116 {dimension_numbers = #tpu.dot_dimension_numbers<[1], [1], [0], [0], [0, 0, 1, 0], [], []>} : vector<8x32xf32>, vector<8x32xf32>, vector<8x8xf32> -> vector<8x8xf32>
    %305 = arith.addf %303, %296 : vector<8x8xf32>
    %cst_117 = arith.constant 0.176776692 : f32
    %306 = vector.broadcast %cst_117 : f32 to vector<8x8xf32>
    %307 = arith.mulf %305, %306 : vector<8x8xf32>
    %308 = math.tanh %307 : vector<8x8xf32>
    %309 = arith.addf %304, %302 : vector<8x8xf32>
    %cst_118 = arith.constant 0.176776692 : f32
    %310 = vector.broadcast %cst_118 : f32 to vector<8x8xf32>
    %311 = arith.mulf %309, %310 : vector<8x8xf32>
    %312 = math.tanh %311 : vector<8x8xf32>
    %cst_119 = arith.constant 0.000000e+00 : f32
    %313 = vector.broadcast %cst_119 : f32 to vector<1x8xf32>
    %314 = arith.cmpf ogt, %187, %313 : vector<1x8xf32>
    %cst_120 = arith.constant -9.000000e+15 : f32
    %315 = vector.shape_cast %314 : vector<1x8xi1> to vector<1x8xi1>
    %316 = vector.broadcast %315 : vector<1x8xi1> to vector<8x8xi1>
    %317 = vector.broadcast %cst_120 : f32 to vector<8x8xf32>
    %318 = arith.select %316, %308, %317 : vector<8x8xi1>, vector<8x8xf32>
    %cst_121 = arith.constant dense<0xFF800000> : vector<8xf32>
    %319 = vector.multi_reduction <maximumf>, %318, %cst_121 [1] : vector<8x8xf32> to vector<8xf32>
    %320 = vector.shape_cast %319 : vector<8xf32> to vector<8x1xf32>
    %321 = vector.broadcast %320 : vector<8x1xf32> to vector<8x8xf32>
    %322 = arith.subf %318, %321 : vector<8x8xf32>
    %323 = math.exp %322 : vector<8x8xf32>
    %cst_122 = arith.constant dense<0.000000e+00> : vector<8xf32>
    %324 = vector.multi_reduction <add>, %323, %cst_122 [1] : vector<8x8xf32> to vector<8xf32>
    %325 = vector.shape_cast %324 : vector<8xf32> to vector<8x1xf32>
    %326 = vector.broadcast %325 : vector<8x1xf32> to vector<8x8xf32>
    %327 = arith.divf %323, %326 : vector<8x8xf32>
    %cst_123 = arith.constant dense<0xFF800000> : vector<8xf32>
    %328 = vector.multi_reduction <maximumf>, %312, %cst_123 [1] : vector<8x8xf32> to vector<8xf32>
    %329 = vector.shape_cast %328 : vector<8xf32> to vector<8x1xf32>
    %330 = vector.broadcast %329 : vector<8x1xf32> to vector<8x8xf32>
    %331 = arith.subf %312, %330 : vector<8x8xf32>
    %332 = math.exp %331 : vector<8x8xf32>
    %333 = vector.broadcast %187 : vector<1x8xf32> to vector<8x8xf32>
    %334 = arith.mulf %332, %333 : vector<8x8xf32>
    %cst_124 = arith.constant dense<0.000000e+00> : vector<8x8xf32>
    %335 = tpu.matmul %334, %183, %cst_124 {dimension_numbers = #tpu.dot_dimension_numbers<[1], [1], [0], [0], [0, 0, 1, 0], [], []>} : vector<8x8xf32>, vector<8x8xf32>, vector<8x8xf32> -> vector<8x8xf32>
    %cst_125 = arith.constant 0.000000e+00 : f32
    %336 = vector.broadcast %cst_125 : f32 to vector<8x8xf32>
    %337 = arith.cmpf ogt, %335, %336 : vector<8x8xf32>
    %cst_126 = arith.constant 1.000000e+00 : f32
    %338 = vector.broadcast %cst_126 : f32 to vector<8x8xf32>
    %339 = arith.select %337, %335, %338 : vector<8x8xi1>, vector<8x8xf32>
    %cst_127 = arith.constant 1.000000e+00 : f32
    %340 = vector.broadcast %cst_127 : f32 to vector<8x8xf32>
    %341 = arith.divf %340, %339 : vector<8x8xf32>
    %c0_128 = arith.constant 0 : index
    %c0_129 = arith.constant 0 : index
    %342 = vector.load %arg18[%c0_128, %c0_129] : memref<2x32xf32, #tpu.memory_space<vmem>>, vector<2x32xf32>
    %cst_130 = arith.constant dense<0.000000e+00> : vector<2x8xf32>
    %343 = tpu.matmul %342, %221, %cst_130 {dimension_numbers = #tpu.dot_dimension_numbers<[1], [1], [0], [0], [0, 0, 1, 0], [], []>} : vector<2x32xf32>, vector<8x32xf32>, vector<2x8xf32> -> vector<2x8xf32>
    %344 = vector.extract_strided_slice %343 {offsets = [0, 0], sizes = [1, 8], strides = [1, 1]} : vector<2x8xf32> to vector<1x8xf32>
    %345 = vector.broadcast %344 : vector<1x8xf32> to vector<8x8xf32>
    %346 = arith.mulf %334, %345 : vector<8x8xf32>
    %cst_131 = arith.constant dense<0.000000e+00> : vector<8x8xf32>
    %347 = tpu.matmul %346, %183, %cst_131 {dimension_numbers = #tpu.dot_dimension_numbers<[1], [1], [0], [0], [0, 0, 1, 0], [], []>} : vector<8x8xf32>, vector<8x8xf32>, vector<8x8xf32> -> vector<8x8xf32>
    %348 = arith.mulf %347, %341 : vector<8x8xf32>
    %349 = vector.extract_strided_slice %343 {offsets = [1, 0], sizes = [1, 8], strides = [1, 1]} : vector<2x8xf32> to vector<1x8xf32>
    %350 = vector.broadcast %349 : vector<1x8xf32> to vector<8x8xf32>
    %351 = arith.addf %348, %350 : vector<8x8xf32>
    %c0_132 = arith.constant 0 : index
    %c0_133 = arith.constant 0 : index
    %352 = vector.load %arg19[%c0_132, %c0_133] : memref<1x1xf32, #tpu.memory_space<vmem>>, vector<1x1xf32>
    %353 = vector.broadcast %352 : vector<1x1xf32> to vector<8x8xf32>
    %354 = arith.addf %351, %353 : vector<8x8xf32>
    %355 = arith.negf %354 : vector<8x8xf32>
    %356 = math.exp %355 : vector<8x8xf32>
    %cst_134 = arith.constant 1.000000e+00 : f32
    %357 = vector.broadcast %cst_134 : f32 to vector<8x8xf32>
    %358 = arith.addf %357, %356 : vector<8x8xf32>
    %359 = arith.divf %357, %358 : vector<8x8xf32>
    %360 = arith.mulf %327, %359 : vector<8x8xf32>
    %361 = arith.subf %327, %360 : vector<8x8xf32>
    %362 = arith.mulf %360, %341 : vector<8x8xf32>
    %cst_135 = arith.constant dense<0.000000e+00> : vector<8x8xf32>
    %363 = tpu.matmul %362, %183, %cst_135 {dimension_numbers = #tpu.dot_dimension_numbers<[1], [0], [0], [1], [0, 0, 1, 1], [], []>} : vector<8x8xf32>, vector<8x8xf32>, vector<8x8xf32> -> vector<8x8xf32>
    %364 = arith.mulf %363, %334 : vector<8x8xf32>
    %365 = arith.addf %364, %361 : vector<8x8xf32>
    %cst_136 = arith.constant dense<0.000000e+00> : vector<8x32xf32>
    %366 = tpu.matmul %365, %221, %cst_136 {dimension_numbers = #tpu.dot_dimension_numbers<[1], [0], [0], [1], [0, 0, 1, 1], [], []>} : vector<8x8xf32>, vector<8x32xf32>, vector<8x32xf32> -> vector<8x32xf32>
    %cst_137 = arith.constant 0.000000e+00 : f32
    %367 = vector.broadcast %cst_137 : f32 to vector<8x32xf32>
    %c0_i32_138 = arith.constant 0 : i32
    %368 = vector.broadcast %c0_i32_138 : i32 to vector<8x8xi32>
    %369 = arith.cmpi eq, %181, %368 : vector<8x8xi32>
    %cst_139 = arith.constant 0.000000e+00 : f32
    %370 = vector.broadcast %cst_139 : f32 to vector<8x8xf32>
    %371 = arith.select %369, %327, %370 : vector<8x8xi1>, vector<8x8xf32>
    %cst_140 = arith.constant dense<0.000000e+00> : vector<8xf32>
    %372 = vector.multi_reduction <add>, %371, %cst_140 [1] : vector<8x8xf32> to vector<8xf32>
    %373 = vector.shape_cast %372 : vector<8xf32> to vector<8x1xf32>
    %374 = vector.extract_strided_slice %179 {offsets = [0, 0], sizes = [1, 32], strides = [1, 1]} : vector<5x32xf32> to vector<1x32xf32>
    %375 = vector.broadcast %373 : vector<8x1xf32> to vector<8x32xf32>
    %376 = vector.broadcast %374 : vector<1x32xf32> to vector<8x32xf32>
    %377 = arith.mulf %375, %376 : vector<8x32xf32>
    %378 = arith.addf %367, %377 : vector<8x32xf32>
    %c1_i32_141 = arith.constant 1 : i32
    %379 = vector.broadcast %c1_i32_141 : i32 to vector<8x8xi32>
    %380 = arith.cmpi eq, %181, %379 : vector<8x8xi32>
    %cst_142 = arith.constant 0.000000e+00 : f32
    %381 = vector.broadcast %cst_142 : f32 to vector<8x8xf32>
    %382 = arith.select %380, %327, %381 : vector<8x8xi1>, vector<8x8xf32>
    %cst_143 = arith.constant dense<0.000000e+00> : vector<8xf32>
    %383 = vector.multi_reduction <add>, %382, %cst_143 [1] : vector<8x8xf32> to vector<8xf32>
    %384 = vector.shape_cast %383 : vector<8xf32> to vector<8x1xf32>
    %385 = vector.extract_strided_slice %179 {offsets = [1, 0], sizes = [1, 32], strides = [1, 1]} : vector<5x32xf32> to vector<1x32xf32>
    %386 = vector.broadcast %384 : vector<8x1xf32> to vector<8x32xf32>
    %387 = vector.broadcast %385 : vector<1x32xf32> to vector<8x32xf32>
    %388 = arith.mulf %386, %387 : vector<8x32xf32>
    %389 = arith.addf %378, %388 : vector<8x32xf32>
    %c2_i32_144 = arith.constant 2 : i32
    %390 = vector.broadcast %c2_i32_144 : i32 to vector<8x8xi32>
    %391 = arith.cmpi eq, %181, %390 : vector<8x8xi32>
    %cst_145 = arith.constant 0.000000e+00 : f32
    %392 = vector.broadcast %cst_145 : f32 to vector<8x8xf32>
    %393 = arith.select %391, %327, %392 : vector<8x8xi1>, vector<8x8xf32>
    %cst_146 = arith.constant dense<0.000000e+00> : vector<8xf32>
    %394 = vector.multi_reduction <add>, %393, %cst_146 [1] : vector<8x8xf32> to vector<8xf32>
    %395 = vector.shape_cast %394 : vector<8xf32> to vector<8x1xf32>
    %396 = vector.extract_strided_slice %179 {offsets = [2, 0], sizes = [1, 32], strides = [1, 1]} : vector<5x32xf32> to vector<1x32xf32>
    %397 = vector.broadcast %395 : vector<8x1xf32> to vector<8x32xf32>
    %398 = vector.broadcast %396 : vector<1x32xf32> to vector<8x32xf32>
    %399 = arith.mulf %397, %398 : vector<8x32xf32>
    %400 = arith.addf %389, %399 : vector<8x32xf32>
    %c3_i32_147 = arith.constant 3 : i32
    %401 = vector.broadcast %c3_i32_147 : i32 to vector<8x8xi32>
    %402 = arith.cmpi eq, %181, %401 : vector<8x8xi32>
    %cst_148 = arith.constant 0.000000e+00 : f32
    %403 = vector.broadcast %cst_148 : f32 to vector<8x8xf32>
    %404 = arith.select %402, %327, %403 : vector<8x8xi1>, vector<8x8xf32>
    %cst_149 = arith.constant dense<0.000000e+00> : vector<8xf32>
    %405 = vector.multi_reduction <add>, %404, %cst_149 [1] : vector<8x8xf32> to vector<8xf32>
    %406 = vector.shape_cast %405 : vector<8xf32> to vector<8x1xf32>
    %407 = vector.extract_strided_slice %179 {offsets = [3, 0], sizes = [1, 32], strides = [1, 1]} : vector<5x32xf32> to vector<1x32xf32>
    %408 = vector.broadcast %406 : vector<8x1xf32> to vector<8x32xf32>
    %409 = vector.broadcast %407 : vector<1x32xf32> to vector<8x32xf32>
    %410 = arith.mulf %408, %409 : vector<8x32xf32>
    %411 = arith.addf %400, %410 : vector<8x32xf32>
    %c4_i32_150 = arith.constant 4 : i32
    %412 = vector.broadcast %c4_i32_150 : i32 to vector<8x8xi32>
    %413 = arith.cmpi eq, %181, %412 : vector<8x8xi32>
    %cst_151 = arith.constant 0.000000e+00 : f32
    %414 = vector.broadcast %cst_151 : f32 to vector<8x8xf32>
    %415 = arith.select %413, %327, %414 : vector<8x8xi1>, vector<8x8xf32>
    %cst_152 = arith.constant dense<0.000000e+00> : vector<8xf32>
    %416 = vector.multi_reduction <add>, %415, %cst_152 [1] : vector<8x8xf32> to vector<8xf32>
    %417 = vector.shape_cast %416 : vector<8xf32> to vector<8x1xf32>
    %418 = vector.extract_strided_slice %179 {offsets = [4, 0], sizes = [1, 32], strides = [1, 1]} : vector<5x32xf32> to vector<1x32xf32>
    %419 = vector.broadcast %417 : vector<8x1xf32> to vector<8x32xf32>
    %420 = vector.broadcast %418 : vector<1x32xf32> to vector<8x32xf32>
    %421 = arith.mulf %419, %420 : vector<8x32xf32>
    %422 = arith.addf %411, %421 : vector<8x32xf32>
    %423 = arith.addf %366, %422 : vector<8x32xf32>
    %c0_153 = arith.constant 0 : index
    %c0_154 = arith.constant 0 : index
    %424 = vector.load %arg20[%c0_153, %c0_154] : memref<2x32xf32, #tpu.memory_space<vmem>>, vector<2x32xf32>
    %425 = vector.extract_strided_slice %424 {offsets = [0, 0], sizes = [1, 32], strides = [1, 1]} : vector<2x32xf32> to vector<1x32xf32>
    %426 = vector.broadcast %425 : vector<1x32xf32> to vector<8x32xf32>
    %427 = arith.mulf %423, %426 : vector<8x32xf32>
    %cst_155 = arith.constant dense<0.000000e+00> : vector<8xf32>
    %428 = vector.multi_reduction <add>, %427, %cst_155 [1] : vector<8x32xf32> to vector<8xf32>
    %429 = vector.shape_cast %428 : vector<8xf32> to vector<8x1xf32>
    %430 = vector.extract_strided_slice %424 {offsets = [1, 0], sizes = [1, 32], strides = [1, 1]} : vector<2x32xf32> to vector<1x32xf32>
    %431 = vector.broadcast %430 : vector<1x32xf32> to vector<8x32xf32>
    %432 = arith.mulf %88, %431 : vector<8x32xf32>
    %cst_156 = arith.constant dense<0.000000e+00> : vector<8xf32>
    %433 = vector.multi_reduction <add>, %432, %cst_156 [1] : vector<8x32xf32> to vector<8xf32>
    %434 = vector.shape_cast %433 : vector<8xf32> to vector<8x1xf32>
    %435 = arith.addf %429, %434 : vector<8x1xf32>
    %c0_157 = arith.constant 0 : index
    %c0_158 = arith.constant 0 : index
    %436 = vector.load %arg21[%c0_157, %c0_158] : memref<1x1xf32, #tpu.memory_space<vmem>>, vector<1x1xf32>
    %437 = vector.broadcast %436 : vector<1x1xf32> to vector<8x1xf32>
    %438 = arith.addf %435, %437 : vector<8x1xf32>
    %439 = arith.negf %438 : vector<8x1xf32>
    %440 = math.exp %439 : vector<8x1xf32>
    %cst_159 = arith.constant 1.000000e+00 : f32
    %441 = vector.broadcast %cst_159 : f32 to vector<8x1xf32>
    %442 = arith.addf %441, %440 : vector<8x1xf32>
    %443 = arith.divf %441, %442 : vector<8x1xf32>
    %444 = vector.broadcast %443 : vector<8x1xf32> to vector<8x32xf32>
    %445 = arith.mulf %444, %423 : vector<8x32xf32>
    %cst_160 = arith.constant 1.000000e+00 : f32
    %446 = vector.broadcast %cst_160 : f32 to vector<8x1xf32>
    %447 = arith.subf %446, %443 : vector<8x1xf32>
    %448 = vector.broadcast %447 : vector<8x1xf32> to vector<8x32xf32>
    %449 = arith.mulf %448, %88 : vector<8x32xf32>
    %450 = arith.addf %445, %449 : vector<8x32xf32>
    %c0_161 = arith.constant 0 : index
    %c0_162 = arith.constant 0 : index
    %c0_163 = arith.constant 0 : index
    %451 = vector.load %arg22[%c0_161, %c0_162, %c0_163] : memref<2x8x32xf32, #tpu.memory_space<vmem>>, vector<1x8x32xf32>
    %452 = vector.shape_cast %451 : vector<1x8x32xf32> to vector<8x32xf32>
    %453 = vector.shape_cast %450 : vector<8x32xf32> to vector<1x8x32xf32>
    tpu.vector_store %arg22[%c0_161, %c0_162, %c0_163], %453 {strides = array<i32>} : memref<2x8x32xf32, #tpu.memory_space<vmem>>, vector<1x8x32xf32>,
    %c1_164 = arith.constant 1 : index
    %c0_165 = arith.constant 0 : index
    %c0_166 = arith.constant 0 : index
    %454 = vector.load %arg2[%c1_164, %c0_165, %c0_166] : memref<2x8x8xi32, #tpu.memory_space<vmem>>, vector<1x8x8xi32>
    %455 = vector.shape_cast %454 : vector<1x8x8xi32> to vector<8x8xi32>
    %c1_167 = arith.constant 1 : index
    %c0_168 = arith.constant 0 : index
    %c0_169 = arith.constant 0 : index
    %456 = vector.load %arg3[%c1_167, %c0_168, %c0_169] : memref<2x8x8xf32, #tpu.memory_space<vmem>>, vector<1x8x8xf32>
    %457 = vector.shape_cast %456 : vector<1x8x8xf32> to vector<8x8xf32>
    %c1_170 = arith.constant 1 : index
    %c0_171 = arith.constant 0 : index
    %c0_172 = arith.constant 0 : index
    %458 = vector.load %arg4[%c1_170, %c0_171, %c0_172] : memref<2x8x1xf32, #tpu.memory_space<vmem>>, vector<1x8x1xf32>
    %459 = vector.shape_cast %458 : vector<1x8x1xf32> to vector<8x1xf32>
    %c1_173 = arith.constant 1 : index
    %c0_174 = arith.constant 0 : index
    %c0_175 = arith.constant 0 : index
    %460 = vector.load %arg5[%c1_173, %c0_174, %c0_175] : memref<2x1x8xf32, #tpu.memory_space<vmem>>, vector<1x1x8xf32>
    %461 = vector.shape_cast %460 : vector<1x1x8xf32> to vector<1x8xf32>
    %462 = vector.broadcast %459 : vector<8x1xf32> to vector<8x32xf32>
    %463 = arith.mulf %177, %462 : vector<8x32xf32>
    %cst_176 = arith.constant dense<0.000000e+00> : vector<32xf32>
    %464 = vector.multi_reduction <add>, %463, %cst_176 [0] : vector<8x32xf32> to vector<32xf32>
    %465 = vector.shape_cast %464 : vector<32xf32> to vector<1x32xf32>
    %c0_177 = arith.constant 0 : index
    %c0_178 = arith.constant 0 : index
    %466 = vector.load %arg12[%c0_177, %c0_178] : memref<32x64xf32, #tpu.memory_space<vmem>>, vector<32x64xf32>
    %cst_179 = arith.constant dense<0.000000e+00> : vector<1x64xf32>
    %467 = tpu.matmul %465, %466, %cst_179 {dimension_numbers = #tpu.dot_dimension_numbers<[1], [0], [0], [1], [0, 0, 1, 1], [], []>} : vector<1x32xf32>, vector<32x64xf32>, vector<1x64xf32> -> vector<1x64xf32>
    %c0_180 = arith.constant 0 : index
    %c0_181 = arith.constant 0 : index
    %468 = vector.load %arg13[%c0_180, %c0_181] : memref<1x64xf32, #tpu.memory_space<vmem>>, vector<1x64xf32>
    %469 = arith.addf %467, %468 : vector<1x64xf32>
    %470 = vector.extract_strided_slice %469 {offsets = [0, 0], sizes = [1, 32], strides = [1, 1]} : vector<1x64xf32> to vector<1x32xf32>
    %471 = vector.extract_strided_slice %469 {offsets = [0, 32], sizes = [1, 32], strides = [1, 1]} : vector<1x64xf32> to vector<1x32xf32>
    %472 = vector.broadcast %470 : vector<1x32xf32> to vector<8x32xf32>
    %473 = arith.mulf %88, %472 : vector<8x32xf32>
    %cst_182 = arith.constant dense<0.000000e+00> : vector<8xf32>
    %474 = vector.multi_reduction <add>, %473, %cst_182 [1] : vector<8x32xf32> to vector<8xf32>
    %475 = vector.shape_cast %474 : vector<8xf32> to vector<8x1xf32>
    %cst_183 = arith.constant 0.176776692 : f32
    %476 = vector.broadcast %cst_183 : f32 to vector<8x1xf32>
    %477 = arith.mulf %475, %476 : vector<8x1xf32>
    %478 = arith.negf %477 : vector<8x1xf32>
    %479 = math.exp %478 : vector<8x1xf32>
    %cst_184 = arith.constant 1.000000e+00 : f32
    %480 = vector.broadcast %cst_184 : f32 to vector<8x1xf32>
    %481 = arith.addf %480, %479 : vector<8x1xf32>
    %482 = arith.divf %480, %481 : vector<8x1xf32>
    %c0_185 = arith.constant 0 : index
    %c0_186 = arith.constant 0 : index
    %483 = vector.load %arg14[%c0_185, %c0_186] : memref<32x32xf32, #tpu.memory_space<vmem>>, vector<32x32xf32>
    %cst_187 = arith.constant dense<0.000000e+00> : vector<8x32xf32>
    %484 = tpu.matmul %88, %483, %cst_187 {dimension_numbers = #tpu.dot_dimension_numbers<[1], [0], [0], [1], [0, 0, 1, 1], [], []>} : vector<8x32xf32>, vector<32x32xf32>, vector<8x32xf32> -> vector<8x32xf32>
    %c0_188 = arith.constant 0 : index
    %c0_189 = arith.constant 0 : index
    %485 = vector.load %arg15[%c0_188, %c0_189] : memref<1x32xf32, #tpu.memory_space<vmem>>, vector<1x32xf32>
    %486 = vector.broadcast %485 : vector<1x32xf32> to vector<8x32xf32>
    %487 = arith.addf %484, %486 : vector<8x32xf32>
    %cst_190 = arith.constant 1.000000e+00 : f32
    %488 = vector.broadcast %cst_190 : f32 to vector<8x1xf32>
    %489 = arith.subf %488, %482 : vector<8x1xf32>
    %490 = vector.broadcast %489 : vector<8x1xf32> to vector<8x32xf32>
    %491 = arith.mulf %490, %487 : vector<8x32xf32>
    %492 = vector.broadcast %482 : vector<8x1xf32> to vector<8x32xf32>
    %493 = vector.broadcast %471 : vector<1x32xf32> to vector<8x32xf32>
    %494 = arith.mulf %492, %493 : vector<8x32xf32>
    %495 = arith.addf %491, %494 : vector<8x32xf32>
    %c0_191 = arith.constant 0 : index
    %c0_192 = arith.constant 0 : index
    %496 = vector.load %arg16[%c0_191, %c0_192] : memref<32x64xf32, #tpu.memory_space<vmem>>, vector<32x64xf32>
    %cst_193 = arith.constant dense<0.000000e+00> : vector<8x64xf32>
    %497 = tpu.matmul %177, %496, %cst_193 {dimension_numbers = #tpu.dot_dimension_numbers<[1], [0], [0], [1], [0, 0, 1, 1], [], []>} : vector<8x32xf32>, vector<32x64xf32>, vector<8x64xf32> -> vector<8x64xf32>
    %c0_194 = arith.constant 0 : index
    %c0_195 = arith.constant 0 : index
    %498 = vector.load %arg17[%c0_194, %c0_195] : memref<1x64xf32, #tpu.memory_space<vmem>>, vector<1x64xf32>
    %499 = vector.broadcast %498 : vector<1x64xf32> to vector<8x64xf32>
    %500 = arith.addf %497, %499 : vector<8x64xf32>
    %501 = vector.extract_strided_slice %500 {offsets = [0, 0], sizes = [8, 32], strides = [1, 1]} : vector<8x64xf32> to vector<8x32xf32>
    %502 = vector.extract_strided_slice %500 {offsets = [0, 32], sizes = [8, 32], strides = [1, 1]} : vector<8x64xf32> to vector<8x32xf32>
    %cst_196 = arith.constant dense<0.000000e+00> : vector<8x5xf32>
    %503 = tpu.matmul %501, %178, %cst_196 {dimension_numbers = #tpu.dot_dimension_numbers<[1], [1], [0], [0], [0, 0, 1, 0], [], []>} : vector<8x32xf32>, vector<5x32xf32>, vector<8x5xf32> -> vector<8x5xf32>
    %cst_197 = arith.constant dense<0.000000e+00> : vector<8x5xf32>
    %504 = tpu.matmul %502, %178, %cst_197 {dimension_numbers = #tpu.dot_dimension_numbers<[1], [1], [0], [0], [0, 0, 1, 0], [], []>} : vector<8x32xf32>, vector<5x32xf32>, vector<8x5xf32> -> vector<8x5xf32>
    %cst_198 = arith.constant 0.000000e+00 : f32
    %505 = vector.broadcast %cst_198 : f32 to vector<8x8xf32>
    %cst_199 = arith.constant 0.000000e+00 : f32
    %506 = vector.broadcast %cst_199 : f32 to vector<8x8xf32>
    %c0_i32_200 = arith.constant 0 : i32
    %507 = vector.broadcast %c0_i32_200 : i32 to vector<8x8xi32>
    %508 = arith.cmpi eq, %455, %507 : vector<8x8xi32>
    %509 = vector.extract_strided_slice %503 {offsets = [0, 0], sizes = [8, 1], strides = [1, 1]} : vector<8x5xf32> to vector<8x1xf32>
    %cst_201 = arith.constant 0.000000e+00 : f32
    %510 = vector.shape_cast %509 : vector<8x1xf32> to vector<8x1xf32>
    %511 = vector.broadcast %510 : vector<8x1xf32> to vector<8x8xf32>
    %512 = vector.broadcast %cst_201 : f32 to vector<8x8xf32>
    %513 = arith.select %508, %511, %512 : vector<8x8xi1>, vector<8x8xf32>
    %514 = arith.addf %505, %513 : vector<8x8xf32>
    %515 = vector.extract_strided_slice %504 {offsets = [0, 0], sizes = [8, 1], strides = [1, 1]} : vector<8x5xf32> to vector<8x1xf32>
    %cst_202 = arith.constant 0.000000e+00 : f32
    %516 = vector.shape_cast %515 : vector<8x1xf32> to vector<8x1xf32>
    %517 = vector.broadcast %516 : vector<8x1xf32> to vector<8x8xf32>
    %518 = vector.broadcast %cst_202 : f32 to vector<8x8xf32>
    %519 = arith.select %508, %517, %518 : vector<8x8xi1>, vector<8x8xf32>
    %520 = arith.addf %506, %519 : vector<8x8xf32>
    %c1_i32_203 = arith.constant 1 : i32
    %521 = vector.broadcast %c1_i32_203 : i32 to vector<8x8xi32>
    %522 = arith.cmpi eq, %455, %521 : vector<8x8xi32>
    %523 = vector.extract_strided_slice %503 {offsets = [0, 1], sizes = [8, 1], strides = [1, 1]} : vector<8x5xf32> to vector<8x1xf32>
    %cst_204 = arith.constant 0.000000e+00 : f32
    %524 = vector.shape_cast %523 : vector<8x1xf32> to vector<8x1xf32>
    %525 = vector.broadcast %524 : vector<8x1xf32> to vector<8x8xf32>
    %526 = vector.broadcast %cst_204 : f32 to vector<8x8xf32>
    %527 = arith.select %522, %525, %526 : vector<8x8xi1>, vector<8x8xf32>
    %528 = arith.addf %514, %527 : vector<8x8xf32>
    %529 = vector.extract_strided_slice %504 {offsets = [0, 1], sizes = [8, 1], strides = [1, 1]} : vector<8x5xf32> to vector<8x1xf32>
    %cst_205 = arith.constant 0.000000e+00 : f32
    %530 = vector.shape_cast %529 : vector<8x1xf32> to vector<8x1xf32>
    %531 = vector.broadcast %530 : vector<8x1xf32> to vector<8x8xf32>
    %532 = vector.broadcast %cst_205 : f32 to vector<8x8xf32>
    %533 = arith.select %522, %531, %532 : vector<8x8xi1>, vector<8x8xf32>
    %534 = arith.addf %520, %533 : vector<8x8xf32>
    %c2_i32_206 = arith.constant 2 : i32
    %535 = vector.broadcast %c2_i32_206 : i32 to vector<8x8xi32>
    %536 = arith.cmpi eq, %455, %535 : vector<8x8xi32>
    %537 = vector.extract_strided_slice %503 {offsets = [0, 2], sizes = [8, 1], strides = [1, 1]} : vector<8x5xf32> to vector<8x1xf32>
    %cst_207 = arith.constant 0.000000e+00 : f32
    %538 = vector.shape_cast %537 : vector<8x1xf32> to vector<8x1xf32>
    %539 = vector.broadcast %538 : vector<8x1xf32> to vector<8x8xf32>
    %540 = vector.broadcast %cst_207 : f32 to vector<8x8xf32>
    %541 = arith.select %536, %539, %540 : vector<8x8xi1>, vector<8x8xf32>
    %542 = arith.addf %528, %541 : vector<8x8xf32>
    %543 = vector.extract_strided_slice %504 {offsets = [0, 2], sizes = [8, 1], strides = [1, 1]} : vector<8x5xf32> to vector<8x1xf32>
    %cst_208 = arith.constant 0.000000e+00 : f32
    %544 = vector.shape_cast %543 : vector<8x1xf32> to vector<8x1xf32>
    %545 = vector.broadcast %544 : vector<8x1xf32> to vector<8x8xf32>
    %546 = vector.broadcast %cst_208 : f32 to vector<8x8xf32>
    %547 = arith.select %536, %545, %546 : vector<8x8xi1>, vector<8x8xf32>
    %548 = arith.addf %534, %547 : vector<8x8xf32>
    %c3_i32_209 = arith.constant 3 : i32
    %549 = vector.broadcast %c3_i32_209 : i32 to vector<8x8xi32>
    %550 = arith.cmpi eq, %455, %549 : vector<8x8xi32>
    %551 = vector.extract_strided_slice %503 {offsets = [0, 3], sizes = [8, 1], strides = [1, 1]} : vector<8x5xf32> to vector<8x1xf32>
    %cst_210 = arith.constant 0.000000e+00 : f32
    %552 = vector.shape_cast %551 : vector<8x1xf32> to vector<8x1xf32>
    %553 = vector.broadcast %552 : vector<8x1xf32> to vector<8x8xf32>
    %554 = vector.broadcast %cst_210 : f32 to vector<8x8xf32>
    %555 = arith.select %550, %553, %554 : vector<8x8xi1>, vector<8x8xf32>
    %556 = arith.addf %542, %555 : vector<8x8xf32>
    %557 = vector.extract_strided_slice %504 {offsets = [0, 3], sizes = [8, 1], strides = [1, 1]} : vector<8x5xf32> to vector<8x1xf32>
    %cst_211 = arith.constant 0.000000e+00 : f32
    %558 = vector.shape_cast %557 : vector<8x1xf32> to vector<8x1xf32>
    %559 = vector.broadcast %558 : vector<8x1xf32> to vector<8x8xf32>
    %560 = vector.broadcast %cst_211 : f32 to vector<8x8xf32>
    %561 = arith.select %550, %559, %560 : vector<8x8xi1>, vector<8x8xf32>
    %562 = arith.addf %548, %561 : vector<8x8xf32>
    %c4_i32_212 = arith.constant 4 : i32
    %563 = vector.broadcast %c4_i32_212 : i32 to vector<8x8xi32>
    %564 = arith.cmpi eq, %455, %563 : vector<8x8xi32>
    %565 = vector.extract_strided_slice %503 {offsets = [0, 4], sizes = [8, 1], strides = [1, 1]} : vector<8x5xf32> to vector<8x1xf32>
    %cst_213 = arith.constant 0.000000e+00 : f32
    %566 = vector.shape_cast %565 : vector<8x1xf32> to vector<8x1xf32>
    %567 = vector.broadcast %566 : vector<8x1xf32> to vector<8x8xf32>
    %568 = vector.broadcast %cst_213 : f32 to vector<8x8xf32>
    %569 = arith.select %564, %567, %568 : vector<8x8xi1>, vector<8x8xf32>
    %570 = arith.addf %556, %569 : vector<8x8xf32>
    %571 = vector.extract_strided_slice %504 {offsets = [0, 4], sizes = [8, 1], strides = [1, 1]} : vector<8x5xf32> to vector<8x1xf32>
    %cst_214 = arith.constant 0.000000e+00 : f32
    %572 = vector.shape_cast %571 : vector<8x1xf32> to vector<8x1xf32>
    %573 = vector.broadcast %572 : vector<8x1xf32> to vector<8x8xf32>
    %574 = vector.broadcast %cst_214 : f32 to vector<8x8xf32>
    %575 = arith.select %564, %573, %574 : vector<8x8xi1>, vector<8x8xf32>
    %576 = arith.addf %562, %575 : vector<8x8xf32>
    %cst_215 = arith.constant dense<0.000000e+00> : vector<8x8xf32>
    %577 = tpu.matmul %501, %495, %cst_215 {dimension_numbers = #tpu.dot_dimension_numbers<[1], [1], [0], [0], [0, 0, 1, 0], [], []>} : vector<8x32xf32>, vector<8x32xf32>, vector<8x8xf32> -> vector<8x8xf32>
    %cst_216 = arith.constant dense<0.000000e+00> : vector<8x8xf32>
    %578 = tpu.matmul %502, %495, %cst_216 {dimension_numbers = #tpu.dot_dimension_numbers<[1], [1], [0], [0], [0, 0, 1, 0], [], []>} : vector<8x32xf32>, vector<8x32xf32>, vector<8x8xf32> -> vector<8x8xf32>
    %579 = arith.addf %577, %570 : vector<8x8xf32>
    %cst_217 = arith.constant 0.176776692 : f32
    %580 = vector.broadcast %cst_217 : f32 to vector<8x8xf32>
    %581 = arith.mulf %579, %580 : vector<8x8xf32>
    %582 = math.tanh %581 : vector<8x8xf32>
    %583 = arith.addf %578, %576 : vector<8x8xf32>
    %cst_218 = arith.constant 0.176776692 : f32
    %584 = vector.broadcast %cst_218 : f32 to vector<8x8xf32>
    %585 = arith.mulf %583, %584 : vector<8x8xf32>
    %586 = math.tanh %585 : vector<8x8xf32>
    %cst_219 = arith.constant 0.000000e+00 : f32
    %587 = vector.broadcast %cst_219 : f32 to vector<1x8xf32>
    %588 = arith.cmpf ogt, %461, %587 : vector<1x8xf32>
    %cst_220 = arith.constant -9.000000e+15 : f32
    %589 = vector.shape_cast %588 : vector<1x8xi1> to vector<1x8xi1>
    %590 = vector.broadcast %589 : vector<1x8xi1> to vector<8x8xi1>
    %591 = vector.broadcast %cst_220 : f32 to vector<8x8xf32>
    %592 = arith.select %590, %582, %591 : vector<8x8xi1>, vector<8x8xf32>
    %cst_221 = arith.constant dense<0xFF800000> : vector<8xf32>
    %593 = vector.multi_reduction <maximumf>, %592, %cst_221 [1] : vector<8x8xf32> to vector<8xf32>
    %594 = vector.shape_cast %593 : vector<8xf32> to vector<8x1xf32>
    %595 = vector.broadcast %594 : vector<8x1xf32> to vector<8x8xf32>
    %596 = arith.subf %592, %595 : vector<8x8xf32>
    %597 = math.exp %596 : vector<8x8xf32>
    %cst_222 = arith.constant dense<0.000000e+00> : vector<8xf32>
    %598 = vector.multi_reduction <add>, %597, %cst_222 [1] : vector<8x8xf32> to vector<8xf32>
    %599 = vector.shape_cast %598 : vector<8xf32> to vector<8x1xf32>
    %600 = vector.broadcast %599 : vector<8x1xf32> to vector<8x8xf32>
    %601 = arith.divf %597, %600 : vector<8x8xf32>
    %cst_223 = arith.constant dense<0xFF800000> : vector<8xf32>
    %602 = vector.multi_reduction <maximumf>, %586, %cst_223 [1] : vector<8x8xf32> to vector<8xf32>
    %603 = vector.shape_cast %602 : vector<8xf32> to vector<8x1xf32>
    %604 = vector.broadcast %603 : vector<8x1xf32> to vector<8x8xf32>
    %605 = arith.subf %586, %604 : vector<8x8xf32>
    %606 = math.exp %605 : vector<8x8xf32>
    %607 = vector.broadcast %461 : vector<1x8xf32> to vector<8x8xf32>
    %608 = arith.mulf %606, %607 : vector<8x8xf32>
    %cst_224 = arith.constant dense<0.000000e+00> : vector<8x8xf32>
    %609 = tpu.matmul %608, %457, %cst_224 {dimension_numbers = #tpu.dot_dimension_numbers<[1], [1], [0], [0], [0, 0, 1, 0], [], []>} : vector<8x8xf32>, vector<8x8xf32>, vector<8x8xf32> -> vector<8x8xf32>
    %cst_225 = arith.constant 0.000000e+00 : f32
    %610 = vector.broadcast %cst_225 : f32 to vector<8x8xf32>
    %611 = arith.cmpf ogt, %609, %610 : vector<8x8xf32>
    %cst_226 = arith.constant 1.000000e+00 : f32
    %612 = vector.broadcast %cst_226 : f32 to vector<8x8xf32>
    %613 = arith.select %611, %609, %612 : vector<8x8xi1>, vector<8x8xf32>
    %cst_227 = arith.constant 1.000000e+00 : f32
    %614 = vector.broadcast %cst_227 : f32 to vector<8x8xf32>
    %615 = arith.divf %614, %613 : vector<8x8xf32>
    %c0_228 = arith.constant 0 : index
    %c0_229 = arith.constant 0 : index
    %616 = vector.load %arg18[%c0_228, %c0_229] : memref<2x32xf32, #tpu.memory_space<vmem>>, vector<2x32xf32>
    %cst_230 = arith.constant dense<0.000000e+00> : vector<2x8xf32>
    %617 = tpu.matmul %616, %495, %cst_230 {dimension_numbers = #tpu.dot_dimension_numbers<[1], [1], [0], [0], [0, 0, 1, 0], [], []>} : vector<2x32xf32>, vector<8x32xf32>, vector<2x8xf32> -> vector<2x8xf32>
    %618 = vector.extract_strided_slice %617 {offsets = [0, 0], sizes = [1, 8], strides = [1, 1]} : vector<2x8xf32> to vector<1x8xf32>
    %619 = vector.broadcast %618 : vector<1x8xf32> to vector<8x8xf32>
    %620 = arith.mulf %608, %619 : vector<8x8xf32>
    %cst_231 = arith.constant dense<0.000000e+00> : vector<8x8xf32>
    %621 = tpu.matmul %620, %457, %cst_231 {dimension_numbers = #tpu.dot_dimension_numbers<[1], [1], [0], [0], [0, 0, 1, 0], [], []>} : vector<8x8xf32>, vector<8x8xf32>, vector<8x8xf32> -> vector<8x8xf32>
    %622 = arith.mulf %621, %615 : vector<8x8xf32>
    %623 = vector.extract_strided_slice %617 {offsets = [1, 0], sizes = [1, 8], strides = [1, 1]} : vector<2x8xf32> to vector<1x8xf32>
    %624 = vector.broadcast %623 : vector<1x8xf32> to vector<8x8xf32>
    %625 = arith.addf %622, %624 : vector<8x8xf32>
    %c0_232 = arith.constant 0 : index
    %c0_233 = arith.constant 0 : index
    %626 = vector.load %arg19[%c0_232, %c0_233] : memref<1x1xf32, #tpu.memory_space<vmem>>, vector<1x1xf32>
    %627 = vector.broadcast %626 : vector<1x1xf32> to vector<8x8xf32>
    %628 = arith.addf %625, %627 : vector<8x8xf32>
    %629 = arith.negf %628 : vector<8x8xf32>
    %630 = math.exp %629 : vector<8x8xf32>
    %cst_234 = arith.constant 1.000000e+00 : f32
    %631 = vector.broadcast %cst_234 : f32 to vector<8x8xf32>
    %632 = arith.addf %631, %630 : vector<8x8xf32>
    %633 = arith.divf %631, %632 : vector<8x8xf32>
    %634 = arith.mulf %601, %633 : vector<8x8xf32>
    %635 = arith.subf %601, %634 : vector<8x8xf32>
    %636 = arith.mulf %634, %615 : vector<8x8xf32>
    %cst_235 = arith.constant dense<0.000000e+00> : vector<8x8xf32>
    %637 = tpu.matmul %636, %457, %cst_235 {dimension_numbers = #tpu.dot_dimension_numbers<[1], [0], [0], [1], [0, 0, 1, 1], [], []>} : vector<8x8xf32>, vector<8x8xf32>, vector<8x8xf32> -> vector<8x8xf32>
    %638 = arith.mulf %637, %608 : vector<8x8xf32>
    %639 = arith.addf %638, %635 : vector<8x8xf32>
    %cst_236 = arith.constant dense<0.000000e+00> : vector<8x32xf32>
    %640 = tpu.matmul %639, %495, %cst_236 {dimension_numbers = #tpu.dot_dimension_numbers<[1], [0], [0], [1], [0, 0, 1, 1], [], []>} : vector<8x8xf32>, vector<8x32xf32>, vector<8x32xf32> -> vector<8x32xf32>
    %cst_237 = arith.constant 0.000000e+00 : f32
    %641 = vector.broadcast %cst_237 : f32 to vector<8x32xf32>
    %c0_i32_238 = arith.constant 0 : i32
    %642 = vector.broadcast %c0_i32_238 : i32 to vector<8x8xi32>
    %643 = arith.cmpi eq, %455, %642 : vector<8x8xi32>
    %cst_239 = arith.constant 0.000000e+00 : f32
    %644 = vector.broadcast %cst_239 : f32 to vector<8x8xf32>
    %645 = arith.select %643, %601, %644 : vector<8x8xi1>, vector<8x8xf32>
    %cst_240 = arith.constant dense<0.000000e+00> : vector<8xf32>
    %646 = vector.multi_reduction <add>, %645, %cst_240 [1] : vector<8x8xf32> to vector<8xf32>
    %647 = vector.shape_cast %646 : vector<8xf32> to vector<8x1xf32>
    %648 = vector.extract_strided_slice %179 {offsets = [0, 0], sizes = [1, 32], strides = [1, 1]} : vector<5x32xf32> to vector<1x32xf32>
    %649 = vector.broadcast %647 : vector<8x1xf32> to vector<8x32xf32>
    %650 = vector.broadcast %648 : vector<1x32xf32> to vector<8x32xf32>
    %651 = arith.mulf %649, %650 : vector<8x32xf32>
    %652 = arith.addf %641, %651 : vector<8x32xf32>
    %c1_i32_241 = arith.constant 1 : i32
    %653 = vector.broadcast %c1_i32_241 : i32 to vector<8x8xi32>
    %654 = arith.cmpi eq, %455, %653 : vector<8x8xi32>
    %cst_242 = arith.constant 0.000000e+00 : f32
    %655 = vector.broadcast %cst_242 : f32 to vector<8x8xf32>
    %656 = arith.select %654, %601, %655 : vector<8x8xi1>, vector<8x8xf32>
    %cst_243 = arith.constant dense<0.000000e+00> : vector<8xf32>
    %657 = vector.multi_reduction <add>, %656, %cst_243 [1] : vector<8x8xf32> to vector<8xf32>
    %658 = vector.shape_cast %657 : vector<8xf32> to vector<8x1xf32>
    %659 = vector.extract_strided_slice %179 {offsets = [1, 0], sizes = [1, 32], strides = [1, 1]} : vector<5x32xf32> to vector<1x32xf32>
    %660 = vector.broadcast %658 : vector<8x1xf32> to vector<8x32xf32>
    %661 = vector.broadcast %659 : vector<1x32xf32> to vector<8x32xf32>
    %662 = arith.mulf %660, %661 : vector<8x32xf32>
    %663 = arith.addf %652, %662 : vector<8x32xf32>
    %c2_i32_244 = arith.constant 2 : i32
    %664 = vector.broadcast %c2_i32_244 : i32 to vector<8x8xi32>
    %665 = arith.cmpi eq, %455, %664 : vector<8x8xi32>
    %cst_245 = arith.constant 0.000000e+00 : f32
    %666 = vector.broadcast %cst_245 : f32 to vector<8x8xf32>
    %667 = arith.select %665, %601, %666 : vector<8x8xi1>, vector<8x8xf32>
    %cst_246 = arith.constant dense<0.000000e+00> : vector<8xf32>
    %668 = vector.multi_reduction <add>, %667, %cst_246 [1] : vector<8x8xf32> to vector<8xf32>
    %669 = vector.shape_cast %668 : vector<8xf32> to vector<8x1xf32>
    %670 = vector.extract_strided_slice %179 {offsets = [2, 0], sizes = [1, 32], strides = [1, 1]} : vector<5x32xf32> to vector<1x32xf32>
    %671 = vector.broadcast %669 : vector<8x1xf32> to vector<8x32xf32>
    %672 = vector.broadcast %670 : vector<1x32xf32> to vector<8x32xf32>
    %673 = arith.mulf %671, %672 : vector<8x32xf32>
    %674 = arith.addf %663, %673 : vector<8x32xf32>
    %c3_i32_247 = arith.constant 3 : i32
    %675 = vector.broadcast %c3_i32_247 : i32 to vector<8x8xi32>
    %676 = arith.cmpi eq, %455, %675 : vector<8x8xi32>
    %cst_248 = arith.constant 0.000000e+00 : f32
    %677 = vector.broadcast %cst_248 : f32 to vector<8x8xf32>
    %678 = arith.select %676, %601, %677 : vector<8x8xi1>, vector<8x8xf32>
    %cst_249 = arith.constant dense<0.000000e+00> : vector<8xf32>
    %679 = vector.multi_reduction <add>, %678, %cst_249 [1] : vector<8x8xf32> to vector<8xf32>
    %680 = vector.shape_cast %679 : vector<8xf32> to vector<8x1xf32>
    %681 = vector.extract_strided_slice %179 {offsets = [3, 0], sizes = [1, 32], strides = [1, 1]} : vector<5x32xf32> to vector<1x32xf32>
    %682 = vector.broadcast %680 : vector<8x1xf32> to vector<8x32xf32>
    %683 = vector.broadcast %681 : vector<1x32xf32> to vector<8x32xf32>
    %684 = arith.mulf %682, %683 : vector<8x32xf32>
    %685 = arith.addf %674, %684 : vector<8x32xf32>
    %c4_i32_250 = arith.constant 4 : i32
    %686 = vector.broadcast %c4_i32_250 : i32 to vector<8x8xi32>
    %687 = arith.cmpi eq, %455, %686 : vector<8x8xi32>
    %cst_251 = arith.constant 0.000000e+00 : f32
    %688 = vector.broadcast %cst_251 : f32 to vector<8x8xf32>
    %689 = arith.select %687, %601, %688 : vector<8x8xi1>, vector<8x8xf32>
    %cst_252 = arith.constant dense<0.000000e+00> : vector<8xf32>
    %690 = vector.multi_reduction <add>, %689, %cst_252 [1] : vector<8x8xf32> to vector<8xf32>
    %691 = vector.shape_cast %690 : vector<8xf32> to vector<8x1xf32>
    %692 = vector.extract_strided_slice %179 {offsets = [4, 0], sizes = [1, 32], strides = [1, 1]} : vector<5x32xf32> to vector<1x32xf32>
    %693 = vector.broadcast %691 : vector<8x1xf32> to vector<8x32xf32>
    %694 = vector.broadcast %692 : vector<1x32xf32> to vector<8x32xf32>
    %695 = arith.mulf %693, %694 : vector<8x32xf32>
    %696 = arith.addf %685, %695 : vector<8x32xf32>
    %697 = arith.addf %640, %696 : vector<8x32xf32>
    %c0_253 = arith.constant 0 : index
    %c0_254 = arith.constant 0 : index
    %698 = vector.load %arg20[%c0_253, %c0_254] : memref<2x32xf32, #tpu.memory_space<vmem>>, vector<2x32xf32>
    %699 = vector.extract_strided_slice %698 {offsets = [0, 0], sizes = [1, 32], strides = [1, 1]} : vector<2x32xf32> to vector<1x32xf32>
    %700 = vector.broadcast %699 : vector<1x32xf32> to vector<8x32xf32>
    %701 = arith.mulf %697, %700 : vector<8x32xf32>
    %cst_255 = arith.constant dense<0.000000e+00> : vector<8xf32>
    %702 = vector.multi_reduction <add>, %701, %cst_255 [1] : vector<8x32xf32> to vector<8xf32>
    %703 = vector.shape_cast %702 : vector<8xf32> to vector<8x1xf32>
    %704 = vector.extract_strided_slice %698 {offsets = [1, 0], sizes = [1, 32], strides = [1, 1]} : vector<2x32xf32> to vector<1x32xf32>
    %705 = vector.broadcast %704 : vector<1x32xf32> to vector<8x32xf32>
    %706 = arith.mulf %177, %705 : vector<8x32xf32>
    %cst_256 = arith.constant dense<0.000000e+00> : vector<8xf32>
    %707 = vector.multi_reduction <add>, %706, %cst_256 [1] : vector<8x32xf32> to vector<8xf32>
    %708 = vector.shape_cast %707 : vector<8xf32> to vector<8x1xf32>
    %709 = arith.addf %703, %708 : vector<8x1xf32>
    %c0_257 = arith.constant 0 : index
    %c0_258 = arith.constant 0 : index
    %710 = vector.load %arg21[%c0_257, %c0_258] : memref<1x1xf32, #tpu.memory_space<vmem>>, vector<1x1xf32>
    %711 = vector.broadcast %710 : vector<1x1xf32> to vector<8x1xf32>
    %712 = arith.addf %709, %711 : vector<8x1xf32>
    %713 = arith.negf %712 : vector<8x1xf32>
    %714 = math.exp %713 : vector<8x1xf32>
    %cst_259 = arith.constant 1.000000e+00 : f32
    %715 = vector.broadcast %cst_259 : f32 to vector<8x1xf32>
    %716 = arith.addf %715, %714 : vector<8x1xf32>
    %717 = arith.divf %715, %716 : vector<8x1xf32>
    %718 = vector.broadcast %717 : vector<8x1xf32> to vector<8x32xf32>
    %719 = arith.mulf %718, %697 : vector<8x32xf32>
    %cst_260 = arith.constant 1.000000e+00 : f32
    %720 = vector.broadcast %cst_260 : f32 to vector<8x1xf32>
    %721 = arith.subf %720, %717 : vector<8x1xf32>
    %722 = vector.broadcast %721 : vector<8x1xf32> to vector<8x32xf32>
    %723 = arith.mulf %722, %177 : vector<8x32xf32>
    %724 = arith.addf %719, %723 : vector<8x32xf32>
    %c1_261 = arith.constant 1 : index
    %c0_262 = arith.constant 0 : index
    %c0_263 = arith.constant 0 : index
    %725 = vector.load %arg22[%c1_261, %c0_262, %c0_263] : memref<2x8x32xf32, #tpu.memory_space<vmem>>, vector<1x8x32xf32>
    %726 = vector.shape_cast %725 : vector<1x8x32xf32> to vector<8x32xf32>
    %727 = vector.shape_cast %724 : vector<8x32xf32> to vector<1x8x32xf32>
    tpu.vector_store %arg22[%c1_261, %c0_262, %c0_263], %727 {strides = array<i32>} : memref<2x8x32xf32, #tpu.memory_space<vmem>>, vector<1x8x32xf32>,
    return
  }
}

</mosaic_0001>

<llo_original>
// kernel: _device_forward.1
$region0: #{_device_forward.1}
  #allocation0 [shape = 'u32[]', space=smem, size = 0x4, offset = 0x4, fixed_abs, tag = 'smem constant byte address 0x4 - core index']
  #allocation1 [shape = 'u32[144,128]{1,0:T(1,128)}', space=vmem, size = 0x12000, scoped, tag = 'internal scratch']
  #allocation2 [shape = 'f32[1,1]{1,0:T(1,128)S(1)}', space=vmem, size = 0x200, scoped, tag = 'scoped memory for _device_forward.1']
  #allocation3 [shape = 'f32[1,1]{1,0:T(1,128)S(1)}', space=vmem, size = 0x200, scoped, tag = 'scoped memory for _device_forward.1']
  %s0 = inlined_call_operand.hbm [shape: f32[2,32,32], index: 0, kind: input, shape index: {}]
  %s1 = inlined_call_operand.hbm [shape: f32[2,32,96], index: 1, kind: input, shape index: {}]
  %s2 = inlined_call_operand.hbm [shape: s32[2,8,8], index: 2, kind: input, shape index: {}]
  %s3 = inlined_call_operand.hbm [shape: f32[2,8,8], index: 3, kind: input, shape index: {}]
  %s4 = inlined_call_operand.vmem [shape: f32[2,8,1], index: 4, kind: input, shape index: {}]
  %s5 = inlined_call_operand.hbm [shape: f32[2,1,8], index: 5, kind: input, shape index: {}]
  %s6 = inlined_call_operand.hbm [shape: f32[5,32], index: 6, kind: input, shape index: {}]
  %s7 = inlined_call_operand.hbm [shape: f32[5,32], index: 7, kind: input, shape index: {}]
  %s8 = inlined_call_operand.vmem [shape: f32[32,192], index: 8, kind: input, shape index: {}]
  %s9 = inlined_call_operand.hbm [shape: f32[1,192], index: 9, kind: input, shape index: {}]
  %s10 = inlined_call_operand.hbm [shape: f32[32,96], index: 10, kind: input, shape index: {}]
  %s11 = inlined_call_operand.vmem [shape: f32[1,96], index: 11, kind: input, shape index: {}]
  %s12 = inlined_call_operand.hbm [shape: f32[32,64], index: 12, kind: input, shape index: {}]
  %s13 = inlined_call_operand.hbm [shape: f32[1,64], index: 13, kind: input, shape index: {}]
  %s14 = inlined_call_operand.hbm [shape: f32[32,32], index: 14, kind: input, shape index: {}]
  %s15 = inlined_call_operand.hbm [shape: f32[1,32], index: 15, kind: input, shape index: {}]
  %s16 = inlined_call_operand.vmem [shape: f32[32,64], index: 16, kind: input, shape index: {}]
  %s17 = inlined_call_operand.hbm [shape: f32[1,64], index: 17, kind: input, shape index: {}]
  %s18 = inlined_call_operand.hbm [shape: f32[2,32], index: 18, kind: input, shape index: {}]
  %s19 = inlined_call_operand.<no memory space> [shape: f32[1,1], index: 19, kind: input, shape index: {}]
  %s20 = inlined_call_operand.hbm [shape: f32[2,32], index: 20, kind: input, shape index: {}]
  %s21 = inlined_call_operand.<no memory space> [shape: f32[1,1], index: 21, kind: input, shape index: {}]
  %s22 = inlined_call_operand.hbm [shape: f32[2,8,32], index: 22, kind: output, shape index: {}]
  %s23 = sld [smem:[#allocation0]]
  $region162: #{_device_forward.1} parent=0
    _
  %s25 = ssub.s32 1, %s23
  %s26 = scalar_select 0, %s25, %s23
  %v27 = vstv %s19
  %28 = vst [vmem:[#allocation2] sm:$0x1] %v27
  %v29 = vstv %s21
  %30 = vst [vmem:[#allocation3] sm:$0x1] %v29
  $region1: #{_device_forward.1} parent=0
    #allocation4 [shape = 'u8[32768]{0}', space=vmem, size = 0x8000, scoped, tag = 'input window, operand 0, single buffered']
    #allocation5 [shape = 's32[1]{0}', space=sflag, size = 0x4, scoped, tag = 'scoped memory for _device_forward.1']
    #allocation6 [shape = 's32[1]{0}', space=sflag, size = 0x4, scoped, tag = 'scoped memory for _device_forward.1']
    #allocation7 [shape = 'u8[32768]{0}', space=vmem, size = 0x8000, scoped, tag = 'input window, operand 1, single buffered']
    #allocation8 [shape = 's32[1]{0}', space=sflag, size = 0x4, scoped, tag = 'scoped memory for _device_forward.1']
    #allocation9 [shape = 'u8[8192]{0}', space=vmem, size = 0x2000, scoped, tag = 'input window, operand 2, single buffered']
    #allocation10 [shape = 'u8[8192]{0}', space=vmem, size = 0x2000, scoped, tag = 'input window, operand 3, single buffered']
    #allocation11 [shape = 's32[1]{0}', space=sflag, size = 0x4, scoped, tag = 'scoped memory for _device_forward.1']
    #allocation12 [shape = 'u8[1024]{0}', space=vmem, size = 0x400, scoped, tag = 'input window, operand 5, single buffered']
    #allocation13 [shape = 'u8[4096]{0}', space=vmem, size = 0x1000, scoped, tag = 'input window, operand 6, single buffered']
    #allocation14 [shape = 's32[1]{0}', space=sflag, size = 0x4, scoped, tag = 'scoped memory for _device_forward.1']
    #allocation15 [shape = 'u8[4096]{0}', space=vmem, size = 0x1000, scoped, tag = 'input window, operand 7, single buffered']
    #allocation16 [shape = 'u8[1024]{0}', space=vmem, size = 0x400, scoped, tag = 'input window, operand 9, single buffered']
    #allocation17 [shape = 's32[1]{0}', space=sflag, size = 0x4, scoped, tag = 'scoped memory for _device_forward.1']
    #allocation18 [shape = 'u8[16384]{0}', space=vmem, size = 0x4000, scoped, tag = 'input window, operand 10, single buffered']
    #allocation19 [shape = 'u8[16384]{0}', space=vmem, size = 0x4000, scoped, tag = 'input window, operand 12, single buffered']
    #allocation20 [shape = 's32[1]{0}', space=sflag, size = 0x4, scoped, tag = 'scoped memory for _device_forward.1']
    #allocation21 [shape = 'u8[512]{0}', space=vmem, size = 0x400, scoped, tag = 'input window, operand 13, single buffered']
    #allocation22 [shape = 'u8[16384]{0}', space=vmem, size = 0x4000, scoped, tag = 'input window, operand 14, single buffered']
    #allocation23 [shape = 's32[1]{0}', space=sflag, size = 0x4, scoped, tag = 'scoped memory for _device_forward.1']
    #allocation24 [shape = 'u8[512]{0}', space=vmem, size = 0x400, scoped, tag = 'input window, operand 15, single buffered']
    #allocation25 [shape = 'u8[512]{0}', space=vmem, size = 0x400, scoped, tag = 'input window, operand 17, single buffered']
    #allocation26 [shape = 's32[1]{0}', space=sflag, size = 0x4, scoped, tag = 'scoped memory for _device_forward.1']
    #allocation27 [shape = 'u8[1024]{0}', space=vmem, size = 0x400, scoped, tag = 'input window, operand 18, single buffered']
    #allocation28 [shape = 'u8[1024]{0}', space=vmem, size = 0x400, scoped, tag = 'input window, operand 20, single buffered']
    #allocation29 [shape = 's32[1]{0}', space=sflag, size = 0x4, scoped, tag = 'scoped memory for _device_forward.1']
    #allocation30 [shape = 'u8[8192]{0}', space=vmem, size = 0x2000, scoped, tag = 'output window, operand 0, single buffered']
    %31 = vsyncpa [#allocation5], 0
    %32 = vsyncpa [#allocation8], 0
    %33 = vsyncpa [#allocation11], 0
    %34 = vsyncpa [#allocation14], 0
    %35 = vsyncpa [#allocation17], 0
    %36 = vsyncpa [#allocation20], 0
    %37 = vsyncpa [#allocation23], 0
    %38 = vsyncpa [#allocation26], 0
    %39 = vsyncpa [#allocation29], 0
    %40 = vsyncpa [#allocation6], 0
    // Predicated region
    $region2: #{_device_forward.1} parent=1 // pred_check
      _
    $region3: #{_device_forward.1} parent=1 // pred_check_branch
      %42 = sbr.rel (0) target = $region5
    $region4: #{_device_forward.1} parent=1 // pred_region
      %s44 = ssub.s32 1024, 1024
      %45 = vsyncadd [#allocation5], %s44
      %s46 = sshll.u32 [#allocation4], 4
      %s47 = int_to_ptr.vmem [resolvable:$true] %s46
      %52 = dma.hbm_to_vmem [thread:$0]  %s0, 1024, %s47, [#allocation5], 128, 128, 8
    $region5: #{_device_forward.1} parent=1 // pred_fallthru
      _
    // Predicated region
    $region6: #{_device_forward.1} parent=1 // pred_check
      _
    $region7: #{_device_forward.1} parent=1 // pred_check_branch
      %54 = sbr.rel (0) target = $region9
    $region8: #{_device_forward.1} parent=1 // pred_region
      %s56 = ssub.s32 1024, 1024
      %57 = vsyncadd [#allocation8], %s56
      %s58 = sshll.u32 [#allocation7], 4
      %s59 = int_to_ptr.vmem [resolvable:$true] %s58
      %64 = dma.hbm_to_vmem [thread:$0]  %s1, 1024, %s59, [#allocation8], 128, 128, 8
    $region9: #{_device_forward.1} parent=1 // pred_fallthru
      _
    // Predicated region
    $region10: #{_device_forward.1} parent=1 // pred_check
      _
    $region11: #{_device_forward.1} parent=1 // pred_check_branch
      %66 = sbr.rel (0) target = $region13
    $region12: #{_device_forward.1} parent=1 // pred_region
      %s68 = ssub.s32 256, 256
      %69 = vsyncadd [#allocation8], %s68
      %s70 = sshll.u32 [#allocation9], 4
      %s71 = int_to_ptr.vmem [resolvable:$true] %s70
      %76 = dma.hbm_to_vmem [thread:$0]  %s2, 256, %s71, [#allocation8], 128, 128, 8
    $region13: #{_device_forward.1} parent=1 // pred_fallthru
      _
    // Predicated region
    $region14: #{_device_forward.1} parent=1 // pred_check
      _
    $region15: #{_device_forward.1} parent=1 // pred_check_branch
      %78 = sbr.rel (0) target = $region17
    $region16: #{_device_forward.1} parent=1 // pred_region
      %s80 = ssub.s32 256, 256
      %81 = vsyncadd [#allocation11], %s80
      %s82 = sshll.u32 [#allocation10], 4
      %s83 = int_to_ptr.vmem [resolvable:$true] %s82
      %88 = dma.hbm_to_vmem [thread:$0]  %s3, 256, %s83, [#allocation11], 128, 128, 8
    $region17: #{_device_forward.1} parent=1 // pred_fallthru
      _
    // Predicated region
    $region18: #{_device_forward.1} parent=1 // pred_check
      _
    $region19: #{_device_forward.1} parent=1 // pred_check_branch
      %90 = sbr.rel (0) target = $region21
    $region20: #{_device_forward.1} parent=1 // pred_region
      _
    $region21: #{_device_forward.1} parent=1 // pred_fallthru
      _
    // Predicated region
    $region22: #{_device_forward.1} parent=1 // pred_check
      _
    $region23: #{_device_forward.1} parent=1 // pred_check_branch
      %92 = sbr.rel (0) target = $region25
    $region24: #{_device_forward.1} parent=1 // pred_region
      %s94 = ssub.s32 32, 32
      %95 = vsyncadd [#allocation11], %s94
      %s96 = sshll.u32 [#allocation12], 4
      %s97 = int_to_ptr.vmem [resolvable:$true] %s96
      %102 = dma.hbm_to_vmem [thread:$0]  %s5, 32, %s97, [#allocation11], 16, 16, 1
    $region25: #{_device_forward.1} parent=1 // pred_fallthru
      _
    // Predicated region
    $region26: #{_device_forward.1} parent=1 // pred_check
      _
    $region27: #{_device_forward.1} parent=1 // pred_check_branch
      %104 = sbr.rel (0) target = $region29
    $region28: #{_device_forward.1} parent=1 // pred_region
      %s106 = ssub.s32 128, 128
      %107 = vsyncadd [#allocation14], %s106
      %s109 = sshll.u32 [#allocation13], 4
      %s110 = int_to_ptr.vmem [resolvable:$true] %s109
      %112 = dma.hbm_to_vmem [thread:$0]  %s6, 128, %s110, [#allocation14]
    $region29: #{_device_forward.1} parent=1 // pred_fallthru
      _
    // Predicated region
    $region30: #{_device_forward.1} parent=1 // pred_check
      _
    $region31: #{_device_forward.1} parent=1 // pred_check_branch
      %114 = sbr.rel (0) target = $region33
    $region32: #{_device_forward.1} parent=1 // pred_region
      %s116 = ssub.s32 128, 128
      %117 = vsyncadd [#allocation14], %s116
      %s119 = sshll.u32 [#allocation15], 4
      %s120 = int_to_ptr.vmem [resolvable:$true] %s119
      %122 = dma.hbm_to_vmem [thread:$0]  %s7, 128, %s120, [#allocation14]
    $region33: #{_device_forward.1} parent=1 // pred_fallthru
      _
    // Predicated region
    $region34: #{_device_forward.1} parent=1 // pred_check
      _
    $region35: #{_device_forward.1} parent=1 // pred_check_branch
      %124 = sbr.rel (0) target = $region37
    $region36: #{_device_forward.1} parent=1 // pred_region
      _
    $region37: #{_device_forward.1} parent=1 // pred_fallthru
      _
    // Predicated region
    $region38: #{_device_forward.1} parent=1 // pred_check
      _
    $region39: #{_device_forward.1} parent=1 // pred_check_branch
      %126 = sbr.rel (0) target = $region41
    $region40: #{_device_forward.1} parent=1 // pred_region
      %s128 = ssub.s32 32, 32
      %129 = vsyncadd [#allocation17], %s128
      %s131 = sshll.u32 [#allocation16], 4
      %s132 = int_to_ptr.vmem [resolvable:$true] %s131
      %134 = dma.hbm_to_vmem [thread:$0]  %s9, 32, %s132, [#allocation17]
    $region41: #{_device_forward.1} parent=1 // pred_fallthru
      _
    // Predicated region
    $region42: #{_device_forward.1} parent=1 // pred_check
      _
    $region43: #{_device_forward.1} parent=1 // pred_check_branch
      %136 = sbr.rel (0) target = $region45
    $region44: #{_device_forward.1} parent=1 // pred_region
      %s138 = ssub.s32 512, 512
      %139 = vsyncadd [#allocation17], %s138
      %s140 = sshll.u32 [#allocation18], 4
      %s141 = int_to_ptr.vmem [resolvable:$true] %s140
      %146 = dma.hbm_to_vmem [thread:$0]  %s10, 512, %s141, [#allocation17], 128, 128, 8
    $region45: #{_device_forward.1} parent=1 // pred_fallthru
      _
    // Predicated region
    $region46: #{_device_forward.1} parent=1 // pred_check
      _
    $region47: #{_device_forward.1} parent=1 // pred_check_branch
      %148 = sbr.rel (0) target = $region49
    $region48: #{_device_forward.1} parent=1 // pred_region
      _
    $region49: #{_device_forward.1} parent=1 // pred_fallthru
      _
    // Predicated region
    $region50: #{_device_forward.1} parent=1 // pred_check
      _
    $region51: #{_device_forward.1} parent=1 // pred_check_branch
      %150 = sbr.rel (0) target = $region53
    $region52: #{_device_forward.1} parent=1 // pred_region
      %s152 = ssub.s32 512, 512
      %153 = vsyncadd [#allocation20], %s152
      %s154 = sshll.u32 [#allocation19], 4
      %s155 = int_to_ptr.vmem [resolvable:$true] %s154
      %160 = dma.hbm_to_vmem [thread:$0]  %s12, 512, %s155, [#allocation20], 128, 128, 8
    $region53: #{_device_forward.1} parent=1 // pred_fallthru
      _
    // Predicated region
    $region54: #{_device_forward.1} parent=1 // pred_check
      _
    $region55: #{_device_forward.1} parent=1 // pred_check_branch
      %162 = sbr.rel (0) target = $region57
    $region56: #{_device_forward.1} parent=1 // pred_region
      %s164 = ssub.s32 16, 16
      %165 = vsyncadd [#allocation20], %s164
      %s167 = sshll.u32 [#allocation21], 4
      %s168 = int_to_ptr.vmem [resolvable:$true] %s167
      %170 = dma.hbm_to_vmem [thread:$0]  %s13, 16, %s168, [#allocation20]
    $region57: #{_device_forward.1} parent=1 // pred_fallthru
      _
    // Predicated region
    $region58: #{_device_forward.1} parent=1 // pred_check
      _
    $region59: #{_device_forward.1} parent=1 // pred_check_branch
      %172 = sbr.rel (0) target = $region61
    $region60: #{_device_forward.1} parent=1 // pred_region
      %s174 = ssub.s32 512, 512
      %175 = vsyncadd [#allocation23], %s174
      %s176 = sshll.u32 [#allocation22], 4
      %s177 = int_to_ptr.vmem [resolvable:$true] %s176
      %182 = dma.hbm_to_vmem [thread:$0]  %s14, 512, %s177, [#allocation23], 128, 128, 8
    $region61: #{_device_forward.1} parent=1 // pred_fallthru
      _
    // Predicated region
    $region62: #{_device_forward.1} parent=1 // pred_check
      _
    $region63: #{_device_forward.1} parent=1 // pred_check_branch
      %184 = sbr.rel (0) target = $region65
    $region64: #{_device_forward.1} parent=1 // pred_region
      %s186 = ssub.s32 16, 16
      %187 = vsyncadd [#allocation23], %s186
      %s189 = sshll.u32 [#allocation24], 4
      %s190 = int_to_ptr.vmem [resolvable:$true] %s189
      %192 = dma.hbm_to_vmem [thread:$0]  %s15, 16, %s190, [#allocation23]
    $region65: #{_device_forward.1} parent=1 // pred_fallthru
      _
    // Predicated region
    $region66: #{_device_forward.1} parent=1 // pred_check
      _
    $region67: #{_device_forward.1} parent=1 // pred_check_branch
      %194 = sbr.rel (0) target = $region69
    $region68: #{_device_forward.1} parent=1 // pred_region
      _
    $region69: #{_device_forward.1} parent=1 // pred_fallthru
      _
    // Predicated region
    $region70: #{_device_forward.1} parent=1 // pred_check
      _
    $region71: #{_device_forward.1} parent=1 // pred_check_branch
      %196 = sbr.rel (0) target = $region73
    $region72: #{_device_forward.1} parent=1 // pred_region
      %s198 = ssub.s32 16, 16
      %199 = vsyncadd [#allocation26], %s198
      %s201 = sshll.u32 [#allocation25], 4
      %s202 = int_to_ptr.vmem [resolvable:$true] %s201
      %204 = dma.hbm_to_vmem [thread:$0]  %s17, 16, %s202, [#allocation26]
    $region73: #{_device_forward.1} parent=1 // pred_fallthru
      _
    // Predicated region
    $region74: #{_device_forward.1} parent=1 // pred_check
      _
    $region75: #{_device_forward.1} parent=1 // pred_check_branch
      %206 = sbr.rel (0) target = $region77
    $region76: #{_device_forward.1} parent=1 // pred_region
      %s208 = ssub.s32 32, 32
      %209 = vsyncadd [#allocation26], %s208
      %s211 = sshll.u32 [#allocation27], 4
      %s212 = int_to_ptr.vmem [resolvable:$true] %s211
      %214 = dma.hbm_to_vmem [thread:$0]  %s18, 32, %s212, [#allocation26]
    $region77: #{_device_forward.1} parent=1 // pred_fallthru
      _
    // Predicated region
    $region78: #{_device_forward.1} parent=1 // pred_check
      _
    $region79: #{_device_forward.1} parent=1 // pred_check_branch
      %216 = sbr.rel (0) target = $region81
    $region80: #{_device_forward.1} parent=1 // pred_region
      _
    $region81: #{_device_forward.1} parent=1 // pred_fallthru
      _
    // Predicated region
    $region82: #{_device_forward.1} parent=1 // pred_check
      _
    $region83: #{_device_forward.1} parent=1 // pred_check_branch
      %218 = sbr.rel (0) target = $region85
    $region84: #{_device_forward.1} parent=1 // pred_region
      %s220 = ssub.s32 32, 32
      %221 = vsyncadd [#allocation29], %s220
      %s223 = sshll.u32 [#allocation28], 4
      %s224 = int_to_ptr.vmem [resolvable:$true] %s223
      %226 = dma.hbm_to_vmem [thread:$0]  %s20, 32, %s224, [#allocation29]
    $region85: #{_device_forward.1} parent=1 // pred_fallthru
      _
    // Predicated region
    $region86: #{_device_forward.1} parent=1 // pred_check
      _
    $region87: #{_device_forward.1} parent=1 // pred_check_branch
      %228 = sbr.rel (0) target = $region89
    $region88: #{_device_forward.1} parent=1 // pred_region
      _
    $region89: #{_device_forward.1} parent=1 // pred_fallthru
      _
    // Predicated region
    $region90: #{_device_forward.1} parent=1 // pred_check
      _
    $region91: #{_device_forward.1} parent=1 // pred_check_branch
      %230 = sbr.rel (0) target = $region93
    $region92: #{_device_forward.1} parent=1 // pred_region
      %231 = dma.done [#allocation5], 1024
    $region93: #{_device_forward.1} parent=1 // pred_fallthru
      _
    // Predicated region
    $region94: #{_device_forward.1} parent=1 // pred_check
      _
    $region95: #{_device_forward.1} parent=1 // pred_check_branch
      %233 = sbr.rel (0) target = $region97
    $region96: #{_device_forward.1} parent=1 // pred_region
      %234 = dma.done [#allocation8], 1024
    $region97: #{_device_forward.1} parent=1 // pred_fallthru
      _
    // Predicated region
    $region98: #{_device_forward.1} parent=1 // pred_check
      _
    $region99: #{_device_forward.1} parent=1 // pred_check_branch
      %236 = sbr.rel (0) target = $region101
    $region100: #{_device_forward.1} parent=1 // pred_region
      %237 = dma.done [#allocation8], 256
    $region101: #{_device_forward.1} parent=1 // pred_fallthru
      _
    // Predicated region
    $region102: #{_device_forward.1} parent=1 // pred_check
      _
    $region103: #{_device_forward.1} parent=1 // pred_check_branch
      %239 = sbr.rel (0) target = $region105
    $region104: #{_device_forward.1} parent=1 // pred_region
      %240 = dma.done [#allocation11], 256
    $region105: #{_device_forward.1} parent=1 // pred_fallthru
      _
    // Predicated region
    $region106: #{_device_forward.1} parent=1 // pred_check
      _
    $region107: #{_device_forward.1} parent=1 // pred_check_branch
      %242 = sbr.rel (0) target = $region109
    $region108: #{_device_forward.1} parent=1 // pred_region
      %243 = dma.done [#allocation11], 32
    $region109: #{_device_forward.1} parent=1 // pred_fallthru
      _
    // Predicated region
    $region110: #{_device_forward.1} parent=1 // pred_check
      _
    $region111: #{_device_forward.1} parent=1 // pred_check_branch
      %245 = sbr.rel (0) target = $region113
    $region112: #{_device_forward.1} parent=1 // pred_region
      %246 = dma.done [#allocation14], 128
    $region113: #{_device_forward.1} parent=1 // pred_fallthru
      _
    // Predicated region
    $region114: #{_device_forward.1} parent=1 // pred_check
      _
    $region115: #{_device_forward.1} parent=1 // pred_check_branch
      %248 = sbr.rel (0) target = $region117
    $region116: #{_device_forward.1} parent=1 // pred_region
      %249 = dma.done [#allocation14], 128
    $region117: #{_device_forward.1} parent=1 // pred_fallthru
      _
    // Predicated region
    $region118: #{_device_forward.1} parent=1 // pred_check
      _
    $region119: #{_device_forward.1} parent=1 // pred_check_branch
      %251 = sbr.rel (0) target = $region121
    $region120: #{_device_forward.1} parent=1 // pred_region
      %252 = dma.done [#allocation17], 32
    $region121: #{_device_forward.1} parent=1 // pred_fallthru
      _
    // Predicated region
    $region122: #{_device_forward.1} parent=1 // pred_check
      _
    $region123: #{_device_forward.1} parent=1 // pred_check_branch
      %254 = sbr.rel (0) target = $region125
    $region124: #{_device_forward.1} parent=1 // pred_region
      %255 = dma.done [#allocation17], 512
    $region125: #{_device_forward.1} parent=1 // pred_fallthru
      _
    // Predicated region
    $region126: #{_device_forward.1} parent=1 // pred_check
      _
    $region127: #{_device_forward.1} parent=1 // pred_check_branch
      %257 = sbr.rel (0) target = $region129
    $region128: #{_device_forward.1} parent=1 // pred_region
      %258 = dma.done [#allocation20], 512
    $region129: #{_device_forward.1} parent=1 // pred_fallthru
      _
    // Predicated region
    $region130: #{_device_forward.1} parent=1 // pred_check
      _
    $region131: #{_device_forward.1} parent=1 // pred_check_branch
      %260 = sbr.rel (0) target = $region133
    $region132: #{_device_forward.1} parent=1 // pred_region
      %261 = dma.done [#allocation20], 16
    $region133: #{_device_forward.1} parent=1 // pred_fallthru
      _
    // Predicated region
    $region134: #{_device_forward.1} parent=1 // pred_check
      _
    $region135: #{_device_forward.1} parent=1 // pred_check_branch
      %263 = sbr.rel (0) target = $region137
    $region136: #{_device_forward.1} parent=1 // pred_region
      %264 = dma.done [#allocation23], 512
    $region137: #{_device_forward.1} parent=1 // pred_fallthru
      _
    // Predicated region
    $region138: #{_device_forward.1} parent=1 // pred_check
      _
    $region139: #{_device_forward.1} parent=1 // pred_check_branch
      %266 = sbr.rel (0) target = $region141
    $region140: #{_device_forward.1} parent=1 // pred_region
      %267 = dma.done [#allocation23], 16
    $region141: #{_device_forward.1} parent=1 // pred_fallthru
      _
    // Predicated region
    $region142: #{_device_forward.1} parent=1 // pred_check
      _
    $region143: #{_device_forward.1} parent=1 // pred_check_branch
      %269 = sbr.rel (0) target = $region145
    $region144: #{_device_forward.1} parent=1 // pred_region
      %270 = dma.done [#allocation26], 16
    $region145: #{_device_forward.1} parent=1 // pred_fallthru
      _
    // Predicated region
    $region146: #{_device_forward.1} parent=1 // pred_check
      _
    $region147: #{_device_forward.1} parent=1 // pred_check_branch
      %272 = sbr.rel (0) target = $region149
    $region148: #{_device_forward.1} parent=1 // pred_region
      %273 = dma.done [#allocation26], 32
    $region149: #{_device_forward.1} parent=1 // pred_fallthru
      _
    // Predicated region
    $region150: #{_device_forward.1} parent=1 // pred_check
      _
    $region151: #{_device_forward.1} parent=1 // pred_check_branch
      %275 = sbr.rel (0) target = $region153
    $region152: #{_device_forward.1} parent=1 // pred_region
      %276 = dma.done [#allocation29], 32
    $region153: #{_device_forward.1} parent=1 // pred_fallthru
      _
    %v277 = vld [vmem:[#allocation4] sm:$0xff]
    %v278 = vld [vmem:[#allocation4 + $0x8] sm:$0xff]
    %v279 = vld [vmem:[#allocation4 + $0x10] sm:$0xff]
    %v280 = vld [vmem:[#allocation4 + $0x18] sm:$0xff]
    %v281 = vld [vmem:[#allocation7] sm:$0xff]
    %v282 = vld [vmem:[#allocation7 + $0x8] sm:$0xff]
    %v283 = vld [vmem:[#allocation7 + $0x10] sm:$0xff]
    %v284 = vld [vmem:[#allocation7 + $0x18] sm:$0xff]
    %v285 = vld [vmem:[%s8] sm:$0xff]
    %v286 = vld [vmem:[%s8 + $0x8] sm:$0xff]
    %v287 = vld [vmem:[%s8 + $0x10] sm:$0xff]
    %v288 = vld [vmem:[%s8 + $0x18] sm:$0xff]
    %v289 = vld [vmem:[%s8 + $0x20] sm:$0xff]
    %v290 = vld [vmem:[%s8 + $0x28] sm:$0xff]
    %v291 = vld [vmem:[%s8 + $0x30] sm:$0xff]
    %v292 = vld [vmem:[%s8 + $0x38] sm:$0xff]
    %v293 = vld [vmem:[#allocation16] sm:$0x3]
    %v295 = vlaneseq
    %v296 = vshrl.u32 %v295, 7
    %v297 = vsub.s32 0, %v296
    %v298 = vrot.slane %v293, %v297
    %v299 = vlaneseq
    %v300 = vshrl.u32 %v299, 7
    %v301 = vsub.s32 1, %v300
    %v302 = vrot.slane %v293, %v301
    %vm305 = vcmask 261120
    %v307 = vsel %vm305, %v277, 0
    %v310 = vsel %vm305, %v278, 0
    %v313 = vsel %vm305, %v279, 0
    %v316 = vsel %vm305, %v280, 0
    %318 = vmatprep.subr.mxu0 %v286
    %319 = vmatpush1.msra.mxu0 %v285
    %320 = vmatprep.subr.mxu0 %v288
    %321 = vmatpush1.msra.mxu0 %v287
    %322 = vmatprep.subr.mxu0 %v290
    %323 = vmatpush1.msra.mxu0 %v289
    %324 = vmatprep.subr.mxu0 %v292
    %325 = vmatpush1.msra.mxu0 %v291
    %326 = vmatprep.subr.mxu0 0.0
    %327 = vmatpush1.msra.mxu0 0.0
    %328 = vmatprep.subr.mxu0 0.0
    %329 = vmatpush1.msra.mxu0 0.0
    %330 = vmatprep.subr.mxu0 0.0
    %331 = vmatpush1.msra.mxu0 0.0
    %332 = vmatprep.subr.mxu0 0.0
    %333 = vmatpush1.msra.mxu0 0.0
    %334 = vmatprep.subr.mxu0 0.0
    %335 = vmatpush1.msra.mxu0 0.0
    %336 = vmatprep.subr.mxu0 0.0
    %337 = vmatpush1.msra.mxu0 0.0
    %338 = vmatprep.subr.mxu0 0.0
    %339 = vmatpush1.msra.mxu0 0.0
    %340 = vmatprep.subr.mxu0 0.0
    %341 = vmatpush1.msra.mxu0 0.0
    %342 = vmatprep.subr.mxu0 0.0
    %343 = vmatpush1.msra.mxu0 0.0
    %344 = vmatprep.subr.mxu0 0.0
    %345 = vmatpush1.msra.mxu0 0.0
    %346 = vmatprep.subr.mxu0 0.0
    %347 = vmatpush1.msra.mxu0 0.0
    %348 = vmatprep.subr.mxu0 0.0
    %349 = vmatpush1.msra.mxu0 0.0
    %350 = vmatprep.subr.mxu0 0.0
    %351 = vmatpush1.msra.mxu0 0.0
    %352 = vmatprep.subr.mxu0 0.0
    %353 = vmatpush1.msra.mxu0 0.0
    %354 = vmatprep.subr.mxu0 0.0
    %355 = vmatpush1.msra.mxu0 0.0
    %356 = vmatprep.subr.mxu0 0.0
    %357 = vmatpush1.msra.mxu0 0.0
    %358 = vmatprep.subr.mxu0 0.0
    %359 = vmatpush1.msra.mxu0 0.0
    %360 = vmatprep.subr.mxu0 0.0
    %361 = vmatpush1.msra.mxu0 0.0
    %362 = vmatprep.subr.mxu0 0.0
    %363 = vmatpush1.msra.mxu0 0.0
    %364 = vmatprep.subr.mxu0 0.0
    %365 = vmatpush1.msra.mxu0 0.0
    %366 = vmatprep.subr.mxu0 0.0
    %367 = vmatpush1.msra.mxu0 0.0
    %368 = vmatprep.subr.mxu0 0.0
    %369 = vmatpush1.msra.mxu0 0.0
    %370 = vmatprep.subr.mxu0 0.0
    %371 = vmatpush1.msra.mxu0 0.0
    %372 = vmatprep.subr.mxu0 0.0
    %373 = vmatpush1.msra.mxu0 0.0
    %374 = vmatprep.subr.mxu0 0.0
    %375 = vmatpush1.msra.mxu0 0.0
    %376 = vmatprep.subr.mxu0 0.0
    %377 = vmatpush1.msra.mxu0 0.0
    %378 = vmatprep.subr.mxu0 0.0
    %379 = vmatpush1.msra.mxu0 0.0
    %380 = vmatprep.subr.mxu0 0.0
    %381 = vmatpush1.msra.mxu0 0.0
    %382 = vmatprep.mubr.f32.mxu0 0.0
    %383 = vmatmul.mubr.f32.gmra.mrb[0].mxu0 %v307
    %v384 = vpop.f32.mrb[0].mxu0
    %v385 = vadd.f32 %v298, %v384
    %v386 = vpop.f32.mrb[0].mxu0
    %v387 = vadd.f32 %v302, %v386
    %388 = vmatprep.mubr.f32.mxu0 0.0
    %389 = vmatmul.mubr.f32.gmra.mrb[0].mxu0 %v310
    %v390 = vpop.f32.mrb[0].mxu0
    %v391 = vadd.f32 %v298, %v390
    %v392 = vpop.f32.mrb[0].mxu0
    %v393 = vadd.f32 %v302, %v392
    %394 = vmatprep.mubr.f32.mxu0 0.0
    %395 = vmatmul.mubr.f32.gmra.mrb[0].mxu0 %v313
    %v396 = vpop.f32.mrb[0].mxu0
    %v397 = vadd.f32 %v298, %v396
    %v398 = vpop.f32.mrb[0].mxu0
    %v399 = vadd.f32 %v302, %v398
    %400 = vmatprep.mubr.f32.mxu0 0.0
    %401 = vmatmul.mubr.f32.gmra.mrb[0].mxu0 %v316
    %v402 = vpop.f32.mrb[0].mxu0
    %v403 = vadd.f32 %v298, %v402
    %v404 = vpop.f32.mrb[0].mxu0
    %v405 = vadd.f32 %v302, %v404
    %406 = vdwg.mxu0
    %411 = vrot.lane.b32.xlu0 %v385, 96
    %v412 = vpop.permute.xlu0 %411
    %413 = vrot.lane.b32.xlu0 %v391, 96
    %v414 = vpop.permute.xlu0 %413
    %415 = vrot.lane.b32.xlu0 %v397, 96
    %v416 = vpop.permute.xlu0 %415
    %417 = vrot.lane.b32.xlu0 %v403, 96
    %v418 = vpop.permute.xlu0 %417
    %423 = vrot.lane.b32.xlu0 %v385, 64
    %v424 = vpop.permute.xlu0 %423
    %425 = vrot.lane.b32.xlu0 %v391, 64
    %v426 = vpop.permute.xlu0 %425
    %427 = vrot.lane.b32.xlu0 %v397, 64
    %v428 = vpop.permute.xlu0 %427
    %429 = vrot.lane.b32.xlu0 %v403, 64
    %v430 = vpop.permute.xlu0 %429
    %vm435 = vcmask 785408
    %v437 = vsel %vm435, %v281, 0
    %v440 = vsel %vm435, %v282, 0
    %v443 = vsel %vm435, %v283, 0
    %v446 = vsel %vm435, %v284, 0
    %448 = vmatprep.subr.mxu0 0.0
    %449 = vmatpush1.msra.mxu0 %v385
    %450 = vmatprep.subr.mxu0 0.0
    %451 = vmatpush1.msra.mxu0 %v391
    %452 = vmatprep.subr.mxu0 0.0
    %453 = vmatpush1.msra.mxu0 %v397
    %454 = vmatprep.subr.mxu0 0.0
    %455 = vmatpush1.msra.mxu0 %v403
    %456 = vmatprep.subr.mxu0 0.0
    %457 = vmatpush1.msra.mxu0 %v412
    %458 = vmatprep.subr.mxu0 0.0
    %459 = vmatpush1.msra.mxu0 %v414
    %460 = vmatprep.subr.mxu0 0.0
    %461 = vmatpush1.msra.mxu0 %v416
    %462 = vmatprep.subr.mxu0 0.0
    %463 = vmatpush1.msra.mxu0 %v418
    %464 = vmatprep.subr.mxu0 0.0
    %465 = vmatpush1.msra.mxu0 %v424
    %466 = vmatprep.subr.mxu0 0.0
    %467 = vmatpush1.msra.mxu0 %v426
    %468 = vmatprep.subr.mxu0 0.0
    %469 = vmatpush1.msra.mxu0 %v428
    %470 = vmatprep.subr.mxu0 0.0
    %471 = vmatpush1.msra.mxu0 %v430
    %472 = vmatprep.subr.mxu0 0.0
    %473 = vmatpush1.msra.mxu0 0.0
    %474 = vmatprep.subr.mxu0 0.0
    %475 = vmatpush1.msra.mxu0 0.0
    %476 = vmatprep.subr.mxu0 0.0
    %477 = vmatpush1.msra.mxu0 0.0
    %478 = vmatprep.subr.mxu0 0.0
    %479 = vmatpush1.msra.mxu0 0.0
    %480 = vmatprep.subr.mxu0 0.0
    %481 = vmatpush1.msra.mxu0 0.0
    %482 = vmatprep.subr.mxu0 0.0
    %483 = vmatpush1.msra.mxu0 0.0
    %484 = vmatprep.subr.mxu0 0.0
    %485 = vmatpush1.msra.mxu0 0.0
    %486 = vmatprep.subr.mxu0 0.0
    %487 = vmatpush1.msra.mxu0 0.0
    %488 = vmatprep.subr.mxu0 0.0
    %489 = vmatpush1.msra.mxu0 0.0
    %490 = vmatprep.subr.mxu0 0.0
    %491 = vmatpush1.msra.mxu0 0.0
    %492 = vmatprep.subr.mxu0 0.0
    %493 = vmatpush1.msra.mxu0 0.0
    %494 = vmatprep.subr.mxu0 0.0
    %495 = vmatpush1.msra.mxu0 0.0
    %496 = vmatprep.subr.mxu0 0.0
    %497 = vmatpush1.msra.mxu0 0.0
    %498 = vmatprep.subr.mxu0 0.0
    %499 = vmatpush1.msra.mxu0 0.0
    %500 = vmatprep.subr.mxu0 0.0
    %501 = vmatpush1.msra.mxu0 0.0
    %502 = vmatprep.subr.mxu0 0.0
    %503 = vmatpush1.msra.mxu0 0.0
    %504 = vmatprep.subr.mxu0 0.0
    %505 = vmatpush1.msra.mxu0 0.0
    %506 = vmatprep.subr.mxu0 0.0
    %507 = vmatpush1.msra.mxu0 0.0
    %508 = vmatprep.subr.mxu0 0.0
    %509 = vmatpush1.msra.mxu0 0.0
    %510 = vmatprep.subr.mxu0 0.0
    %511 = vmatpush1.msra.mxu0 0.0
    %512 = vmatprep.mubr.f32.mxu0 0.0
    %513 = vmatmul.mubr.f32.gmra.mrb[0].mxu0 %v437
    %v514 = vpop.f32.mrb[0].mxu0
    %v515 = vadd.f32 0.0, %v514
    %v516 = vpop.f32.mrb[0].mxu0
    %517 = vmatprep.mubr.f32.mxu0 0.0
    %518 = vmatmul.mubr.f32.gmra.mrb[0].mxu0 %v440
    %v519 = vpop.f32.mrb[0].mxu0
    %v520 = vadd.f32 0.0, %v519
    %v521 = vpop.f32.mrb[0].mxu0
    %522 = vmatprep.mubr.f32.mxu0 0.0
    %523 = vmatmul.mubr.f32.gmra.mrb[0].mxu0 %v443
    %v524 = vpop.f32.mrb[0].mxu0
    %v525 = vadd.f32 0.0, %v524
    %v526 = vpop.f32.mrb[0].mxu0
    %527 = vmatprep.mubr.f32.mxu0 0.0
    %528 = vmatmul.mubr.f32.gmra.mrb[0].mxu0 %v446
    %v529 = vpop.f32.mrb[0].mxu0
    %v530 = vadd.f32 0.0, %v529
    %v531 = vpop.f32.mrb[0].mxu0
    %532 = vdwg.mxu0
    %v533 = vld [vmem:[#allocation18] sm:$0xff]
    %v534 = vld [vmem:[#allocation18 + $0x8] sm:$0xff]
    %v535 = vld [vmem:[#allocation18 + $0x10] sm:$0xff]
    %v536 = vld [vmem:[#allocation18 + $0x18] sm:$0xff]
    %v537 = vld [vmem:[%s11] sm:$0x1]
    %v539 = vlaneseq
    %v540 = vshrl.u32 %v539, 7
    %v541 = vsub.s32 0, %v540
    %v542 = vrot.slane %v537, %v541
    %v545 = vsel %vm305, %v515, 0
    %v548 = vsel %vm305, %v520, 0
    %v551 = vsel %vm305, %v525, 0
    %v554 = vsel %vm305, %v530, 0
    %556 = vmatprep.subr.mxu0 0.0
    %557 = vmatpush1.msra.mxu0 %v533
    %558 = vmatprep.subr.mxu0 0.0
    %559 = vmatpush1.msra.mxu0 %v534
    %560 = vmatprep.subr.mxu0 0.0
    %561 = vmatpush1.msra.mxu0 %v535
    %562 = vmatprep.subr.mxu0 0.0
    %563 = vmatpush1.msra.mxu0 %v536
    %564 = vmatprep.subr.mxu0 0.0
    %565 = vmatpush1.msra.mxu0 0.0
    %566 = vmatprep.subr.mxu0 0.0
    %567 = vmatpush1.msra.mxu0 0.0
    %568 = vmatprep.subr.mxu0 0.0
    %569 = vmatpush1.msra.mxu0 0.0
    %570 = vmatprep.subr.mxu0 0.0
    %571 = vmatpush1.msra.mxu0 0.0
    %572 = vmatprep.subr.mxu0 0.0
    %573 = vmatpush1.msra.mxu0 0.0
    %574 = vmatprep.subr.mxu0 0.0
    %575 = vmatpush1.msra.mxu0 0.0
    %576 = vmatprep.subr.mxu0 0.0
    %577 = vmatpush1.msra.mxu0 0.0
    %578 = vmatprep.subr.mxu0 0.0
    %579 = vmatpush1.msra.mxu0 0.0
    %580 = vmatprep.subr.mxu0 0.0
    %581 = vmatpush1.msra.mxu0 0.0
    %582 = vmatprep.subr.mxu0 0.0
    %583 = vmatpush1.msra.mxu0 0.0
    %584 = vmatprep.subr.mxu0 0.0
    %585 = vmatpush1.msra.mxu0 0.0
    %586 = vmatprep.subr.mxu0 0.0
    %587 = vmatpush1.msra.mxu0 0.0
    %588 = vmatprep.subr.mxu0 0.0
    %589 = vmatpush1.msra.mxu0 0.0
    %590 = vmatprep.subr.mxu0 0.0
    %591 = vmatpush1.msra.mxu0 0.0
    %592 = vmatprep.subr.mxu0 0.0
    %593 = vmatpush1.msra.mxu0 0.0
    %594 = vmatprep.subr.mxu0 0.0
    %595 = vmatpush1.msra.mxu0 0.0
    %596 = vmatprep.subr.mxu0 0.0
    %597 = vmatpush1.msra.mxu0 0.0
    %598 = vmatprep.subr.mxu0 0.0
    %599 = vmatpush1.msra.mxu0 0.0
    %600 = vmatprep.subr.mxu0 0.0
    %601 = vmatpush1.msra.mxu0 0.0
    %602 = vmatprep.subr.mxu0 0.0
    %603 = vmatpush1.msra.mxu0 0.0
    %604 = vmatprep.subr.mxu0 0.0
    %605 = vmatpush1.msra.mxu0 0.0
    %606 = vmatprep.subr.mxu0 0.0
    %607 = vmatpush1.msra.mxu0 0.0
    %608 = vmatprep.subr.mxu0 0.0
    %609 = vmatpush1.msra.mxu0 0.0
    %610 = vmatprep.subr.mxu0 0.0
    %611 = vmatpush1.msra.mxu0 0.0
    %612 = vmatprep.subr.mxu0 0.0
    %613 = vmatpush1.msra.mxu0 0.0
    %614 = vmatprep.subr.mxu0 0.0
    %615 = vmatpush1.msra.mxu0 0.0
    %616 = vmatprep.subr.mxu0 0.0
    %617 = vmatpush1.msra.mxu0 0.0
    %618 = vmatprep.subr.mxu0 0.0
    %619 = vmatpush1.msra.mxu0 0.0
    %620 = vmatprep.mubr.f32.mxu0 0.0
    %621 = vmatmul.mubr.f32.gmra.mrb[0].mxu0 %v545
    %v622 = vpop.f32.mrb[0].mxu0
    %v623 = vadd.f32 %v542, %v622
    %v624 = vpop.f32.mrb[0].mxu0
    %625 = vmatprep.mubr.f32.mxu0 0.0
    %626 = vmatmul.mubr.f32.gmra.mrb[0].mxu0 %v548
    %v627 = vpop.f32.mrb[0].mxu0
    %v628 = vadd.f32 %v542, %v627
    %v629 = vpop.f32.mrb[0].mxu0
    %630 = vmatprep.mubr.f32.mxu0 0.0
    %631 = vmatmul.mubr.f32.gmra.mrb[0].mxu0 %v551
    %v632 = vpop.f32.mrb[0].mxu0
    %v633 = vadd.f32 %v542, %v632
    %v634 = vpop.f32.mrb[0].mxu0
    %635 = vmatprep.mubr.f32.mxu0 0.0
    %636 = vmatmul.mubr.f32.gmra.mrb[0].mxu0 %v554
    %v637 = vpop.f32.mrb[0].mxu0
    %v638 = vadd.f32 %v542, %v637
    %v639 = vpop.f32.mrb[0].mxu0
    %640 = vdwg.mxu0
    %641 = vrot.lane.b32.xlu0 %v385, 32
    %v642 = vpop.permute.xlu0 %641
    %643 = vrot.lane.b32.xlu0 %v391, 32
    %v644 = vpop.permute.xlu0 %643
    %645 = vrot.lane.b32.xlu0 %v397, 32
    %v646 = vpop.permute.xlu0 %645
    %647 = vrot.lane.b32.xlu0 %v403, 32
    %v648 = vpop.permute.xlu0 %647
    %v653 = vadd.f32 %v623, %v642
    %v654 = vadd.f32 %v628, %v644
    %v655 = vadd.f32 %v633, %v646
    %v656 = vadd.f32 %v638, %v648
    %v657 = vxor.u32 %v653, 2147483648
    %v658 = vxor.u32 %v654, 2147483648
    %v659 = vxor.u32 %v655, 2147483648
    %v660 = vxor.u32 %v656, 2147483648
    %v661 = vmul.f32 %v657, 1.442695
    %v662 = vpow.pop %v661
    %v663 = vmul.f32 %v658, 1.442695
    %v664 = vpow.pop %v663
    %v665 = vmul.f32 %v659, 1.442695
    %v666 = vpow.pop %v665
    %v667 = vmul.f32 %v660, 1.442695
    %v668 = vpow.pop %v667
    %v669 = vadd.f32 %v662, 1.0
    %v670 = vadd.f32 %v664, 1.0
    %v671 = vadd.f32 %v666, 1.0
    %v672 = vadd.f32 %v668, 1.0
    %v673 = vrcp.pop %v669
    %v674 = vmul.f32 1.0, %v673
    %v675 = vrcp.pop %v670
    %v676 = vmul.f32 1.0, %v675
    %v677 = vrcp.pop %v671
    %v678 = vmul.f32 1.0, %v677
    %v679 = vrcp.pop %v672
    %v680 = vmul.f32 1.0, %v679
    %685 = vrot.lane.b32.xlu0 %v387, 32
    %v686 = vpop.permute.xlu0 %685
    %687 = vrot.lane.b32.xlu0 %v393, 32
    %v688 = vpop.permute.xlu0 %687
    %689 = vrot.lane.b32.xlu0 %v399, 32
    %v690 = vpop.permute.xlu0 %689
    %691 = vrot.lane.b32.xlu0 %v405, 32
    %v692 = vpop.permute.xlu0 %691
    %v697 = vadd.f32 %v623, %v686
    %v698 = vadd.f32 %v628, %v688
    %v699 = vadd.f32 %v633, %v690
    %v700 = vadd.f32 %v638, %v692
    %v701 = vxor.u32 %v697, 2147483648
    %v702 = vxor.u32 %v698, 2147483648
    %v703 = vxor.u32 %v699, 2147483648
    %v704 = vxor.u32 %v700, 2147483648
    %v705 = vmul.f32 %v701, 1.442695
    %v706 = vpow.pop %v705
    %v707 = vmul.f32 %v702, 1.442695
    %v708 = vpow.pop %v707
    %v709 = vmul.f32 %v703, 1.442695
    %v710 = vpow.pop %v709
    %v711 = vmul.f32 %v704, 1.442695
    %v712 = vpow.pop %v711
    %v713 = vadd.f32 %v706, 1.0
    %v714 = vadd.f32 %v708, 1.0
    %v715 = vadd.f32 %v710, 1.0
    %v716 = vadd.f32 %v712, 1.0
    %v717 = vrcp.pop %v713
    %v718 = vmul.f32 1.0, %v717
    %v719 = vrcp.pop %v714
    %v720 = vmul.f32 1.0, %v719
    %v721 = vrcp.pop %v715
    %v722 = vmul.f32 1.0, %v721
    %v723 = vrcp.pop %v716
    %v724 = vmul.f32 1.0, %v723
    %725 = vrot.lane.b32.xlu0 %v387, 96
    %v726 = vpop.permute.xlu0 %725
    %727 = vrot.lane.b32.xlu0 %v393, 96
    %v728 = vpop.permute.xlu0 %727
    %729 = vrot.lane.b32.xlu0 %v399, 96
    %v730 = vpop.permute.xlu0 %729
    %731 = vrot.lane.b32.xlu0 %v405, 96
    %v732 = vpop.permute.xlu0 %731
    %v737 = vmul.f32 %v674, %v726
    %v738 = vmul.f32 %v676, %v728
    %v739 = vmul.f32 %v678, %v730
    %v740 = vmul.f32 %v680, %v732
    %745 = vrot.lane.b32.xlu0 %v737, 64
    %v746 = vpop.permute.xlu0 %745
    %747 = vrot.lane.b32.xlu0 %v738, 64
    %v748 = vpop.permute.xlu0 %747
    %749 = vrot.lane.b32.xlu0 %v739, 64
    %v750 = vpop.permute.xlu0 %749
    %751 = vrot.lane.b32.xlu0 %v740, 64
    %v752 = vpop.permute.xlu0 %751
    %v757 = vadd.f32 %v623, %v746
    %v758 = vadd.f32 %v628, %v748
    %v759 = vadd.f32 %v633, %v750
    %v760 = vadd.f32 %v638, %v752
    %v761 = vtanh.pop %v757
    %v762 = vtanh.pop %v758
    %v763 = vtanh.pop %v759
    %v764 = vtanh.pop %v760
    %v765 = vsub.f32 1.0, %v718
    %v766 = vsub.f32 1.0, %v720
    %v767 = vsub.f32 1.0, %v722
    %v768 = vsub.f32 1.0, %v724
    %773 = vrot.lane.b32.xlu0 %v761, 96
    %v774 = vpop.permute.xlu0 %773
    %775 = vrot.lane.b32.xlu0 %v762, 96
    %v776 = vpop.permute.xlu0 %775
    %777 = vrot.lane.b32.xlu0 %v763, 96
    %v778 = vpop.permute.xlu0 %777
    %779 = vrot.lane.b32.xlu0 %v764, 96
    %v780 = vpop.permute.xlu0 %779
    %v785 = vmul.f32 %v765, %v774
    %v786 = vmul.f32 %v766, %v776
    %v787 = vmul.f32 %v767, %v778
    %v788 = vmul.f32 %v768, %v780
    %789 = vrot.lane.b32.xlu0 %v277, 32
    %v790 = vpop.permute.xlu0 %789
    %791 = vrot.lane.b32.xlu0 %v278, 32
    %v792 = vpop.permute.xlu0 %791
    %793 = vrot.lane.b32.xlu0 %v279, 32
    %v794 = vpop.permute.xlu0 %793
    %795 = vrot.lane.b32.xlu0 %v280, 32
    %v796 = vpop.permute.xlu0 %795
    %v801 = vmul.f32 %v718, %v790
    %v802 = vmul.f32 %v720, %v792
    %v803 = vmul.f32 %v722, %v794
    %v804 = vmul.f32 %v724, %v796
    %v805 = vadd.f32 %v785, %v801
    %v806 = vadd.f32 %v786, %v802
    %v807 = vadd.f32 %v787, %v803
    %v808 = vadd.f32 %v788, %v804
    %813 = vrot.lane.b32.xlu0 %v805, 96
    %v814 = vpop.permute.xlu0 %813
    %815 = vrot.lane.b32.xlu0 %v806, 96
    %v816 = vpop.permute.xlu0 %815
    %817 = vrot.lane.b32.xlu0 %v807, 96
    %v818 = vpop.permute.xlu0 %817
    %819 = vrot.lane.b32.xlu0 %v808, 96
    %v820 = vpop.permute.xlu0 %819
    %v821 = vsel %vm305, %v814, 0
    %v823 = vsel %vm305, %v816, 0
    %v825 = vsel %vm305, %v818, 0
    %v827 = vsel %vm305, %v820, 0
    %829 = vmatprep.subr.mxu0 %v286
    %830 = vmatpush1.msra.mxu0 %v285
    %831 = vmatprep.subr.mxu0 %v288
    %832 = vmatpush1.msra.mxu0 %v287
    %833 = vmatprep.subr.mxu0 %v290
    %834 = vmatpush1.msra.mxu0 %v289
    %835 = vmatprep.subr.mxu0 %v292
    %836 = vmatpush1.msra.mxu0 %v291
    %837 = vmatprep.subr.mxu0 0.0
    %838 = vmatpush1.msra.mxu0 0.0
    %839 = vmatprep.subr.mxu0 0.0
    %840 = vmatpush1.msra.mxu0 0.0
    %841 = vmatprep.subr.mxu0 0.0
    %842 = vmatpush1.msra.mxu0 0.0
    %843 = vmatprep.subr.mxu0 0.0
    %844 = vmatpush1.msra.mxu0 0.0
    %845 = vmatprep.subr.mxu0 0.0
    %846 = vmatpush1.msra.mxu0 0.0
    %847 = vmatprep.subr.mxu0 0.0
    %848 = vmatpush1.msra.mxu0 0.0
    %849 = vmatprep.subr.mxu0 0.0
    %850 = vmatpush1.msra.mxu0 0.0
    %851 = vmatprep.subr.mxu0 0.0
    %852 = vmatpush1.msra.mxu0 0.0
    %853 = vmatprep.subr.mxu0 0.0
    %854 = vmatpush1.msra.mxu0 0.0
    %855 = vmatprep.subr.mxu0 0.0
    %856 = vmatpush1.msra.mxu0 0.0
    %857 = vmatprep.subr.mxu0 0.0
    %858 = vmatpush1.msra.mxu0 0.0
    %859 = vmatprep.subr.mxu0 0.0
    %860 = vmatpush1.msra.mxu0 0.0
    %861 = vmatprep.subr.mxu0 0.0
    %862 = vmatpush1.msra.mxu0 0.0
    %863 = vmatprep.subr.mxu0 0.0
    %864 = vmatpush1.msra.mxu0 0.0
    %865 = vmatprep.subr.mxu0 0.0
    %866 = vmatpush1.msra.mxu0 0.0
    %867 = vmatprep.subr.mxu0 0.0
    %868 = vmatpush1.msra.mxu0 0.0
    %869 = vmatprep.subr.mxu0 0.0
    %870 = vmatpush1.msra.mxu0 0.0
    %871 = vmatprep.subr.mxu0 0.0
    %872 = vmatpush1.msra.mxu0 0.0
    %873 = vmatprep.subr.mxu0 0.0
    %874 = vmatpush1.msra.mxu0 0.0
    %875 = vmatprep.subr.mxu0 0.0
    %876 = vmatpush1.msra.mxu0 0.0
    %877 = vmatprep.subr.mxu0 0.0
    %878 = vmatpush1.msra.mxu0 0.0
    %879 = vmatprep.subr.mxu0 0.0
    %880 = vmatpush1.msra.mxu0 0.0
    %881 = vmatprep.subr.mxu0 0.0
    %882 = vmatpush1.msra.mxu0 0.0
    %883 = vmatprep.subr.mxu0 0.0
    %884 = vmatpush1.msra.mxu0 0.0
    %885 = vmatprep.subr.mxu0 0.0
    %886 = vmatpush1.msra.mxu0 0.0
    %887 = vmatprep.subr.mxu0 0.0
    %888 = vmatpush1.msra.mxu0 0.0
    %889 = vmatprep.subr.mxu0 0.0
    %890 = vmatpush1.msra.mxu0 0.0
    %891 = vmatprep.subr.mxu0 0.0
    %892 = vmatpush1.msra.mxu0 0.0
    %893 = vmatprep.mubr.f32.mxu0 0.0
    %894 = vmatmul.mubr.f32.gmra.mrb[0].mxu0 %v821
    %v895 = vpop.f32.mrb[0].mxu0
    %v896 = vadd.f32 %v298, %v895
    %v897 = vpop.f32.mrb[0].mxu0
    %v898 = vadd.f32 %v302, %v897
    %899 = vmatprep.mubr.f32.mxu0 0.0
    %900 = vmatmul.mubr.f32.gmra.mrb[0].mxu0 %v823
    %v901 = vpop.f32.mrb[0].mxu0
    %v902 = vadd.f32 %v298, %v901
    %v903 = vpop.f32.mrb[0].mxu0
    %904 = vmatprep.mubr.f32.mxu0 0.0
    %905 = vmatmul.mubr.f32.gmra.mrb[0].mxu0 %v825
    %v906 = vpop.f32.mrb[0].mxu0
    %v907 = vadd.f32 %v298, %v906
    %v908 = vpop.f32.mrb[0].mxu0
    %909 = vmatprep.mubr.f32.mxu0 0.0
    %910 = vmatmul.mubr.f32.gmra.mrb[0].mxu0 %v827
    %v911 = vpop.f32.mrb[0].mxu0
    %v912 = vadd.f32 %v298, %v911
    %v913 = vpop.f32.mrb[0].mxu0
    %914 = vdwg.mxu0
    %919 = vrot.lane.b32.xlu0 %v896, 96
    %v920 = vpop.permute.xlu0 %919
    %921 = vrot.lane.b32.xlu0 %v902, 96
    %v922 = vpop.permute.xlu0 %921
    %923 = vrot.lane.b32.xlu0 %v907, 96
    %v924 = vpop.permute.xlu0 %923
    %925 = vrot.lane.b32.xlu0 %v912, 96
    %v926 = vpop.permute.xlu0 %925
    %931 = vrot.lane.b32.xlu0 %v896, 64
    %v932 = vpop.permute.xlu0 %931
    %933 = vrot.lane.b32.xlu0 %v902, 64
    %v934 = vpop.permute.xlu0 %933
    %935 = vrot.lane.b32.xlu0 %v907, 64
    %v936 = vpop.permute.xlu0 %935
    %937 = vrot.lane.b32.xlu0 %v912, 64
    %v938 = vpop.permute.xlu0 %937
    %943 = vmatprep.subr.mxu0 0.0
    %944 = vmatpush1.msra.mxu0 %v896
    %945 = vmatprep.subr.mxu0 0.0
    %946 = vmatpush1.msra.mxu0 %v902
    %947 = vmatprep.subr.mxu0 0.0
    %948 = vmatpush1.msra.mxu0 %v907
    %949 = vmatprep.subr.mxu0 0.0
    %950 = vmatpush1.msra.mxu0 %v912
    %951 = vmatprep.subr.mxu0 0.0
    %952 = vmatpush1.msra.mxu0 %v920
    %953 = vmatprep.subr.mxu0 0.0
    %954 = vmatpush1.msra.mxu0 %v922
    %955 = vmatprep.subr.mxu0 0.0
    %956 = vmatpush1.msra.mxu0 %v924
    %957 = vmatprep.subr.mxu0 0.0
    %958 = vmatpush1.msra.mxu0 %v926
    %959 = vmatprep.subr.mxu0 0.0
    %960 = vmatpush1.msra.mxu0 %v932
    %961 = vmatprep.subr.mxu0 0.0
    %962 = vmatpush1.msra.mxu0 %v934
    %963 = vmatprep.subr.mxu0 0.0
    %964 = vmatpush1.msra.mxu0 %v936
    %965 = vmatprep.subr.mxu0 0.0
    %966 = vmatpush1.msra.mxu0 %v938
    %967 = vmatprep.subr.mxu0 0.0
    %968 = vmatpush1.msra.mxu0 0.0
    %969 = vmatprep.subr.mxu0 0.0
    %970 = vmatpush1.msra.mxu0 0.0
    %971 = vmatprep.subr.mxu0 0.0
    %972 = vmatpush1.msra.mxu0 0.0
    %973 = vmatprep.subr.mxu0 0.0
    %974 = vmatpush1.msra.mxu0 0.0
    %975 = vmatprep.subr.mxu0 0.0
    %976 = vmatpush1.msra.mxu0 0.0
    %977 = vmatprep.subr.mxu0 0.0
    %978 = vmatpush1.msra.mxu0 0.0
    %979 = vmatprep.subr.mxu0 0.0
    %980 = vmatpush1.msra.mxu0 0.0
    %981 = vmatprep.subr.mxu0 0.0
    %982 = vmatpush1.msra.mxu0 0.0
    %983 = vmatprep.subr.mxu0 0.0
    %984 = vmatpush1.msra.mxu0 0.0
    %985 = vmatprep.subr.mxu0 0.0
    %986 = vmatpush1.msra.mxu0 0.0
    %987 = vmatprep.subr.mxu0 0.0
    %988 = vmatpush1.msra.mxu0 0.0
    %989 = vmatprep.subr.mxu0 0.0
    %990 = vmatpush1.msra.mxu0 0.0
    %991 = vmatprep.subr.mxu0 0.0
    %992 = vmatpush1.msra.mxu0 0.0
    %993 = vmatprep.subr.mxu0 0.0
    %994 = vmatpush1.msra.mxu0 0.0
    %995 = vmatprep.subr.mxu0 0.0
    %996 = vmatpush1.msra.mxu0 0.0
    %997 = vmatprep.subr.mxu0 0.0
    %998 = vmatpush1.msra.mxu0 0.0
    %999 = vmatprep.subr.mxu0 0.0
    %1000 = vmatpush1.msra.mxu0 0.0
    %1001 = vmatprep.subr.mxu0 0.0
    %1002 = vmatpush1.msra.mxu0 0.0
    %1003 = vmatprep.subr.mxu0 0.0
    %1004 = vmatpush1.msra.mxu0 0.0
    %1005 = vmatprep.subr.mxu0 0.0
    %1006 = vmatpush1.msra.mxu0 0.0
    %1007 = vmatprep.mubr.f32.mxu0 0.0
    %1008 = vmatmul.mubr.f32.gmra.mrb[0].mxu0 %v437
    %v1009 = vpop.f32.mrb[0].mxu0
    %v1010 = vadd.f32 0.0, %v1009
    %v1011 = vpop.f32.mrb[0].mxu0
    %1012 = vmatprep.mubr.f32.mxu0 0.0
    %1013 = vmatmul.mubr.f32.gmra.mrb[0].mxu0 %v440
    %v1014 = vpop.f32.mrb[0].mxu0
    %v1015 = vadd.f32 0.0, %v1014
    %v1016 = vpop.f32.mrb[0].mxu0
    %1017 = vmatprep.mubr.f32.mxu0 0.0
    %1018 = vmatmul.mubr.f32.gmra.mrb[0].mxu0 %v443
    %v1019 = vpop.f32.mrb[0].mxu0
    %v1020 = vadd.f32 0.0, %v1019
    %v1021 = vpop.f32.mrb[0].mxu0
    %1022 = vmatprep.mubr.f32.mxu0 0.0
    %1023 = vmatmul.mubr.f32.gmra.mrb[0].mxu0 %v446
    %v1024 = vpop.f32.mrb[0].mxu0
    %v1025 = vadd.f32 0.0, %v1024
    %v1026 = vpop.f32.mrb[0].mxu0
    %1027 = vdwg.mxu0
    %v1029 = vsel %vm305, %v1010, 0
    %v1032 = vsel %vm305, %v1015, 0
    %v1035 = vsel %vm305, %v1020, 0
    %v1038 = vsel %vm305, %v1025, 0
    %1040 = vmatprep.subr.mxu0 0.0
    %1041 = vmatpush1.msra.mxu0 %v533
    %1042 = vmatprep.subr.mxu0 0.0
    %1043 = vmatpush1.msra.mxu0 %v534
    %1044 = vmatprep.subr.mxu0 0.0
    %1045 = vmatpush1.msra.mxu0 %v535
    %1046 = vmatprep.subr.mxu0 0.0
    %1047 = vmatpush1.msra.mxu0 %v536
    %1048 = vmatprep.subr.mxu0 0.0
    %1049 = vmatpush1.msra.mxu0 0.0
    %1050 = vmatprep.subr.mxu0 0.0
    %1051 = vmatpush1.msra.mxu0 0.0
    %1052 = vmatprep.subr.mxu0 0.0
    %1053 = vmatpush1.msra.mxu0 0.0
    %1054 = vmatprep.subr.mxu0 0.0
    %1055 = vmatpush1.msra.mxu0 0.0
    %1056 = vmatprep.subr.mxu0 0.0
    %1057 = vmatpush1.msra.mxu0 0.0
    %1058 = vmatprep.subr.mxu0 0.0
    %1059 = vmatpush1.msra.mxu0 0.0
    %1060 = vmatprep.subr.mxu0 0.0
    %1061 = vmatpush1.msra.mxu0 0.0
    %1062 = vmatprep.subr.mxu0 0.0
    %1063 = vmatpush1.msra.mxu0 0.0
    %1064 = vmatprep.subr.mxu0 0.0
    %1065 = vmatpush1.msra.mxu0 0.0
    %1066 = vmatprep.subr.mxu0 0.0
    %1067 = vmatpush1.msra.mxu0 0.0
    %1068 = vmatprep.subr.mxu0 0.0
    %1069 = vmatpush1.msra.mxu0 0.0
    %1070 = vmatprep.subr.mxu0 0.0
    %1071 = vmatpush1.msra.mxu0 0.0
    %1072 = vmatprep.subr.mxu0 0.0
    %1073 = vmatpush1.msra.mxu0 0.0
    %1074 = vmatprep.subr.mxu0 0.0
    %1075 = vmatpush1.msra.mxu0 0.0
    %1076 = vmatprep.subr.mxu0 0.0
    %1077 = vmatpush1.msra.mxu0 0.0
    %1078 = vmatprep.subr.mxu0 0.0
    %1079 = vmatpush1.msra.mxu0 0.0
    %1080 = vmatprep.subr.mxu0 0.0
    %1081 = vmatpush1.msra.mxu0 0.0
    %1082 = vmatprep.subr.mxu0 0.0
    %1083 = vmatpush1.msra.mxu0 0.0
    %1084 = vmatprep.subr.mxu0 0.0
    %1085 = vmatpush1.msra.mxu0 0.0
    %1086 = vmatprep.subr.mxu0 0.0
    %1087 = vmatpush1.msra.mxu0 0.0
    %1088 = vmatprep.subr.mxu0 0.0
    %1089 = vmatpush1.msra.mxu0 0.0
    %1090 = vmatprep.subr.mxu0 0.0
    %1091 = vmatpush1.msra.mxu0 0.0
    %1092 = vmatprep.subr.mxu0 0.0
    %1093 = vmatpush1.msra.mxu0 0.0
    %1094 = vmatprep.subr.mxu0 0.0
    %1095 = vmatpush1.msra.mxu0 0.0
    %1096 = vmatprep.subr.mxu0 0.0
    %1097 = vmatpush1.msra.mxu0 0.0
    %1098 = vmatprep.subr.mxu0 0.0
    %1099 = vmatpush1.msra.mxu0 0.0
    %1100 = vmatprep.subr.mxu0 0.0
    %1101 = vmatpush1.msra.mxu0 0.0
    %1102 = vmatprep.subr.mxu0 0.0
    %1103 = vmatpush1.msra.mxu0 0.0
    %1104 = vmatprep.mubr.f32.mxu0 0.0
    %1105 = vmatmul.mubr.f32.gmra.mrb[0].mxu0 %v1029
    %v1106 = vpop.f32.mrb[0].mxu0
    %v1107 = vadd.f32 %v542, %v1106
    %v1108 = vpop.f32.mrb[0].mxu0
    %1109 = vmatprep.mubr.f32.mxu0 0.0
    %1110 = vmatmul.mubr.f32.gmra.mrb[0].mxu0 %v1032
    %v1111 = vpop.f32.mrb[0].mxu0
    %v1112 = vpop.f32.mrb[0].mxu0
    %1113 = vmatprep.mubr.f32.mxu0 0.0
    %1114 = vmatmul.mubr.f32.gmra.mrb[0].mxu0 %v1035
    %v1115 = vpop.f32.mrb[0].mxu0
    %v1116 = vpop.f32.mrb[0].mxu0
    %1117 = vmatprep.mubr.f32.mxu0 0.0
    %1118 = vmatmul.mubr.f32.gmra.mrb[0].mxu0 %v1038
    %v1119 = vpop.f32.mrb[0].mxu0
    %v1120 = vpop.f32.mrb[0].mxu0
    %1121 = vdwg.mxu0
    %1122 = vrot.lane.b32.xlu0 %v896, 32
    %v1123 = vpop.permute.xlu0 %1122
    %v1125 = vadd.f32 %v1107, %v1123
    %v1126 = vxor.u32 %v1125, 2147483648
    %v1127 = vmul.f32 %v1126, 1.442695
    %v1128 = vpow.pop %v1127
    %v1129 = vadd.f32 %v1128, 1.0
    %v1130 = vrcp.pop %v1129
    %v1131 = vmul.f32 1.0, %v1130
    %1133 = vrot.lane.b32.xlu0 %v898, 32
    %v1134 = vpop.permute.xlu0 %1133
    %v1136 = vadd.f32 %v1107, %v1134
    %v1137 = vxor.u32 %v1136, 2147483648
    %v1138 = vmul.f32 %v1137, 1.442695
    %v1139 = vpow.pop %v1138
    %v1140 = vadd.f32 %v1139, 1.0
    %v1141 = vrcp.pop %v1140
    %v1142 = vmul.f32 1.0, %v1141
    %1143 = vrot.lane.b32.xlu0 %v898, 96
    %v1144 = vpop.permute.xlu0 %1143
    %v1146 = vmul.f32 %v1131, %v1144
    %1148 = vrot.lane.b32.xlu0 %v1146, 64
    %v1149 = vpop.permute.xlu0 %1148
    %v1151 = vadd.f32 %v1107, %v1149
    %v1152 = vtanh.pop %v1151
    %v1153 = vsub.f32 1.0, %v1142
    %1155 = vrot.lane.b32.xlu0 %v1152, 96
    %v1156 = vpop.permute.xlu0 %1155
    %v1158 = vmul.f32 %v1153, %v1156
    %v1159 = vmul.f32 %v1142, %v805
    %v1160 = vadd.f32 %v1158, %v1159
    %s1161 = scalar_lea.vmem [#allocation4], 32
    %v1162 = vld [vmem:[%s1161] sm:$0xff]
    %v1163 = vld [vmem:[%s1161 + $0x8] sm:$0xff]
    %v1164 = vld [vmem:[%s1161 + $0x10] sm:$0xff]
    %v1165 = vld [vmem:[%s1161 + $0x18] sm:$0xff]
    %s1166 = scalar_lea.vmem [#allocation7], 32
    %v1167 = vld [vmem:[%s1166] sm:$0xff]
    %v1168 = vld [vmem:[%s1166 + $0x8] sm:$0xff]
    %v1169 = vld [vmem:[%s1166 + $0x10] sm:$0xff]
    %v1170 = vld [vmem:[%s1166 + $0x18] sm:$0xff]
    %v1172 = vsel %vm305, %v1162, 0
    %v1175 = vsel %vm305, %v1163, 0
    %v1178 = vsel %vm305, %v1164, 0
    %v1181 = vsel %vm305, %v1165, 0
    %1183 = vmatprep.subr.mxu0 %v286
    %1184 = vmatpush1.msra.mxu0 %v285
    %1185 = vmatprep.subr.mxu0 %v288
    %1186 = vmatpush1.msra.mxu0 %v287
    %1187 = vmatprep.subr.mxu0 %v290
    %1188 = vmatpush1.msra.mxu0 %v289
    %1189 = vmatprep.subr.mxu0 %v292
    %1190 = vmatpush1.msra.mxu0 %v291
    %1191 = vmatprep.subr.mxu0 0.0
    %1192 = vmatpush1.msra.mxu0 0.0
    %1193 = vmatprep.subr.mxu0 0.0
    %1194 = vmatpush1.msra.mxu0 0.0
    %1195 = vmatprep.subr.mxu0 0.0
    %1196 = vmatpush1.msra.mxu0 0.0
    %1197 = vmatprep.subr.mxu0 0.0
    %1198 = vmatpush1.msra.mxu0 0.0
    %1199 = vmatprep.subr.mxu0 0.0
    %1200 = vmatpush1.msra.mxu0 0.0
    %1201 = vmatprep.subr.mxu0 0.0
    %1202 = vmatpush1.msra.mxu0 0.0
    %1203 = vmatprep.subr.mxu0 0.0
    %1204 = vmatpush1.msra.mxu0 0.0
    %1205 = vmatprep.subr.mxu0 0.0
    %1206 = vmatpush1.msra.mxu0 0.0
    %1207 = vmatprep.subr.mxu0 0.0
    %1208 = vmatpush1.msra.mxu0 0.0
    %1209 = vmatprep.subr.mxu0 0.0
    %1210 = vmatpush1.msra.mxu0 0.0
    %1211 = vmatprep.subr.mxu0 0.0
    %1212 = vmatpush1.msra.mxu0 0.0
    %1213 = vmatprep.subr.mxu0 0.0
    %1214 = vmatpush1.msra.mxu0 0.0
    %1215 = vmatprep.subr.mxu0 0.0
    %1216 = vmatpush1.msra.mxu0 0.0
    %1217 = vmatprep.subr.mxu0 0.0
    %1218 = vmatpush1.msra.mxu0 0.0
    %1219 = vmatprep.subr.mxu0 0.0
    %1220 = vmatpush1.msra.mxu0 0.0
    %1221 = vmatprep.subr.mxu0 0.0
    %1222 = vmatpush1.msra.mxu0 0.0
    %1223 = vmatprep.subr.mxu0 0.0
    %1224 = vmatpush1.msra.mxu0 0.0
    %1225 = vmatprep.subr.mxu0 0.0
    %1226 = vmatpush1.msra.mxu0 0.0
    %1227 = vmatprep.subr.mxu0 0.0
    %1228 = vmatpush1.msra.mxu0 0.0
    %1229 = vmatprep.subr.mxu0 0.0
    %1230 = vmatpush1.msra.mxu0 0.0
    %1231 = vmatprep.subr.mxu0 0.0
    %1232 = vmatpush1.msra.mxu0 0.0
    %1233 = vmatprep.subr.mxu0 0.0
    %1234 = vmatpush1.msra.mxu0 0.0
    %1235 = vmatprep.subr.mxu0 0.0
    %1236 = vmatpush1.msra.mxu0 0.0
    %1237 = vmatprep.subr.mxu0 0.0
    %1238 = vmatpush1.msra.mxu0 0.0
    %1239 = vmatprep.subr.mxu0 0.0
    %1240 = vmatpush1.msra.mxu0 0.0
    %1241 = vmatprep.subr.mxu0 0.0
    %1242 = vmatpush1.msra.mxu0 0.0
    %1243 = vmatprep.subr.mxu0 0.0
    %1244 = vmatpush1.msra.mxu0 0.0
    %1245 = vmatprep.subr.mxu0 0.0
    %1246 = vmatpush1.msra.mxu0 0.0
    %1247 = vmatprep.mubr.f32.mxu0 0.0
    %1248 = vmatmul.mubr.f32.gmra.mrb[0].mxu0 %v1172
    %v1249 = vpop.f32.mrb[0].mxu0
    %v1250 = vadd.f32 %v298, %v1249
    %v1251 = vpop.f32.mrb[0].mxu0
    %v1252 = vadd.f32 %v302, %v1251
    %1253 = vmatprep.mubr.f32.mxu0 0.0
    %1254 = vmatmul.mubr.f32.gmra.mrb[0].mxu0 %v1175
    %v1255 = vpop.f32.mrb[0].mxu0
    %v1256 = vadd.f32 %v298, %v1255
    %v1257 = vpop.f32.mrb[0].mxu0
    %v1258 = vadd.f32 %v302, %v1257
    %1259 = vmatprep.mubr.f32.mxu0 0.0
    %1260 = vmatmul.mubr.f32.gmra.mrb[0].mxu0 %v1178
    %v1261 = vpop.f32.mrb[0].mxu0
    %v1262 = vadd.f32 %v298, %v1261
    %v1263 = vpop.f32.mrb[0].mxu0
    %v1264 = vadd.f32 %v302, %v1263
    %1265 = vmatprep.mubr.f32.mxu0 0.0
    %1266 = vmatmul.mubr.f32.gmra.mrb[0].mxu0 %v1181
    %v1267 = vpop.f32.mrb[0].mxu0
    %v1268 = vadd.f32 %v298, %v1267
    %v1269 = vpop.f32.mrb[0].mxu0
    %v1270 = vadd.f32 %v302, %v1269
    %1271 = vdwg.mxu0
    %1276 = vrot.lane.b32.xlu0 %v1250, 96
    %v1277 = vpop.permute.xlu0 %1276
    %1278 = vrot.lane.b32.xlu0 %v1256, 96
    %v1279 = vpop.permute.xlu0 %1278
    %1280 = vrot.lane.b32.xlu0 %v1262, 96
    %v1281 = vpop.permute.xlu0 %1280
    %1282 = vrot.lane.b32.xlu0 %v1268, 96
    %v1283 = vpop.permute.xlu0 %1282
    %1288 = vrot.lane.b32.xlu0 %v1250, 64
    %v1289 = vpop.permute.xlu0 %1288
    %1290 = vrot.lane.b32.xlu0 %v1256, 64
    %v1291 = vpop.permute.xlu0 %1290
    %1292 = vrot.lane.b32.xlu0 %v1262, 64
    %v1293 = vpop.permute.xlu0 %1292
    %1294 = vrot.lane.b32.xlu0 %v1268, 64
    %v1295 = vpop.permute.xlu0 %1294
    %v1301 = vsel %vm435, %v1167, 0
    %v1304 = vsel %vm435, %v1168, 0
    %v1307 = vsel %vm435, %v1169, 0
    %v1310 = vsel %vm435, %v1170, 0
    %1312 = vmatprep.subr.mxu0 0.0
    %1313 = vmatpush1.msra.mxu0 %v1250
    %1314 = vmatprep.subr.mxu0 0.0
    %1315 = vmatpush1.msra.mxu0 %v1256
    %1316 = vmatprep.subr.mxu0 0.0
    %1317 = vmatpush1.msra.mxu0 %v1262
    %1318 = vmatprep.subr.mxu0 0.0
    %1319 = vmatpush1.msra.mxu0 %v1268
    %1320 = vmatprep.subr.mxu0 0.0
    %1321 = vmatpush1.msra.mxu0 %v1277
    %1322 = vmatprep.subr.mxu0 0.0
    %1323 = vmatpush1.msra.mxu0 %v1279
    %1324 = vmatprep.subr.mxu0 0.0
    %1325 = vmatpush1.msra.mxu0 %v1281
    %1326 = vmatprep.subr.mxu0 0.0
    %1327 = vmatpush1.msra.mxu0 %v1283
    %1328 = vmatprep.subr.mxu0 0.0
    %1329 = vmatpush1.msra.mxu0 %v1289
    %1330 = vmatprep.subr.mxu0 0.0
    %1331 = vmatpush1.msra.mxu0 %v1291
    %1332 = vmatprep.subr.mxu0 0.0
    %1333 = vmatpush1.msra.mxu0 %v1293
    %1334 = vmatprep.subr.mxu0 0.0
    %1335 = vmatpush1.msra.mxu0 %v1295
    %1336 = vmatprep.subr.mxu0 0.0
    %1337 = vmatpush1.msra.mxu0 0.0
    %1338 = vmatprep.subr.mxu0 0.0
    %1339 = vmatpush1.msra.mxu0 0.0
    %1340 = vmatprep.subr.mxu0 0.0
    %1341 = vmatpush1.msra.mxu0 0.0
    %1342 = vmatprep.subr.mxu0 0.0
    %1343 = vmatpush1.msra.mxu0 0.0
    %1344 = vmatprep.subr.mxu0 0.0
    %1345 = vmatpush1.msra.mxu0 0.0
    %1346 = vmatprep.subr.mxu0 0.0
    %1347 = vmatpush1.msra.mxu0 0.0
    %1348 = vmatprep.subr.mxu0 0.0
    %1349 = vmatpush1.msra.mxu0 0.0
    %1350 = vmatprep.subr.mxu0 0.0
    %1351 = vmatpush1.msra.mxu0 0.0
    %1352 = vmatprep.subr.mxu0 0.0
    %1353 = vmatpush1.msra.mxu0 0.0
    %1354 = vmatprep.subr.mxu0 0.0
    %1355 = vmatpush1.msra.mxu0 0.0
    %1356 = vmatprep.subr.mxu0 0.0
    %1357 = vmatpush1.msra.mxu0 0.0
    %1358 = vmatprep.subr.mxu0 0.0
    %1359 = vmatpush1.msra.mxu0 0.0
    %1360 = vmatprep.subr.mxu0 0.0
    %1361 = vmatpush1.msra.mxu0 0.0
    %1362 = vmatprep.subr.mxu0 0.0
    %1363 = vmatpush1.msra.mxu0 0.0
    %1364 = vmatprep.subr.mxu0 0.0
    %1365 = vmatpush1.msra.mxu0 0.0
    %1366 = vmatprep.subr.mxu0 0.0
    %1367 = vmatpush1.msra.mxu0 0.0
    %1368 = vmatprep.subr.mxu0 0.0
    %1369 = vmatpush1.msra.mxu0 0.0
    %1370 = vmatprep.subr.mxu0 0.0
    %1371 = vmatpush1.msra.mxu0 0.0
    %1372 = vmatprep.subr.mxu0 0.0
    %1373 = vmatpush1.msra.mxu0 0.0
    %1374 = vmatprep.subr.mxu0 0.0
    %1375 = vmatpush1.msra.mxu0 0.0
    %1376 = vmatprep.mubr.f32.mxu0 0.0
    %1377 = vmatmul.mubr.f32.gmra.mrb[0].mxu0 %v1301
    %v1378 = vpop.f32.mrb[0].mxu0
    %v1379 = vadd.f32 0.0, %v1378
    %v1380 = vpop.f32.mrb[0].mxu0
    %1381 = vmatprep.mubr.f32.mxu0 0.0
    %1382 = vmatmul.mubr.f32.gmra.mrb[0].mxu0 %v1304
    %v1383 = vpop.f32.mrb[0].mxu0
    %v1384 = vadd.f32 0.0, %v1383
    %v1385 = vpop.f32.mrb[0].mxu0
    %1386 = vmatprep.mubr.f32.mxu0 0.0
    %1387 = vmatmul.mubr.f32.gmra.mrb[0].mxu0 %v1307
    %v1388 = vpop.f32.mrb[0].mxu0
    %v1389 = vadd.f32 0.0, %v1388
    %v1390 = vpop.f32.mrb[0].mxu0
    %1391 = vmatprep.mubr.f32.mxu0 0.0
    %1392 = vmatmul.mubr.f32.gmra.mrb[0].mxu0 %v1310
    %v1393 = vpop.f32.mrb[0].mxu0
    %v1394 = vadd.f32 0.0, %v1393
    %v1395 = vpop.f32.mrb[0].mxu0
    %1396 = vdwg.mxu0
    %v1398 = vsel %vm305, %v1379, 0
    %v1401 = vsel %vm305, %v1384, 0
    %v1404 = vsel %vm305, %v1389, 0
    %v1407 = vsel %vm305, %v1394, 0
    %1409 = vmatprep.subr.mxu0 0.0
    %1410 = vmatpush1.msra.mxu0 %v533
    %1411 = vmatprep.subr.mxu0 0.0
    %1412 = vmatpush1.msra.mxu0 %v534
    %1413 = vmatprep.subr.mxu0 0.0
    %1414 = vmatpush1.msra.mxu0 %v535
    %1415 = vmatprep.subr.mxu0 0.0
    %1416 = vmatpush1.msra.mxu0 %v536
    %1417 = vmatprep.subr.mxu0 0.0
    %1418 = vmatpush1.msra.mxu0 0.0
    %1419 = vmatprep.subr.mxu0 0.0
    %1420 = vmatpush1.msra.mxu0 0.0
    %1421 = vmatprep.subr.mxu0 0.0
    %1422 = vmatpush1.msra.mxu0 0.0
    %1423 = vmatprep.subr.mxu0 0.0
    %1424 = vmatpush1.msra.mxu0 0.0
    %1425 = vmatprep.subr.mxu0 0.0
    %1426 = vmatpush1.msra.mxu0 0.0
    %1427 = vmatprep.subr.mxu0 0.0
    %1428 = vmatpush1.msra.mxu0 0.0
    %1429 = vmatprep.subr.mxu0 0.0
    %1430 = vmatpush1.msra.mxu0 0.0
    %1431 = vmatprep.subr.mxu0 0.0
    %1432 = vmatpush1.msra.mxu0 0.0
    %1433 = vmatprep.subr.mxu0 0.0
    %1434 = vmatpush1.msra.mxu0 0.0
    %1435 = vmatprep.subr.mxu0 0.0
    %1436 = vmatpush1.msra.mxu0 0.0
    %1437 = vmatprep.subr.mxu0 0.0
    %1438 = vmatpush1.msra.mxu0 0.0
    %1439 = vmatprep.subr.mxu0 0.0
    %1440 = vmatpush1.msra.mxu0 0.0
    %1441 = vmatprep.subr.mxu0 0.0
    %1442 = vmatpush1.msra.mxu0 0.0
    %1443 = vmatprep.subr.mxu0 0.0
    %1444 = vmatpush1.msra.mxu0 0.0
    %1445 = vmatprep.subr.mxu0 0.0
    %1446 = vmatpush1.msra.mxu0 0.0
    %1447 = vmatprep.subr.mxu0 0.0
    %1448 = vmatpush1.msra.mxu0 0.0
    %1449 = vmatprep.subr.mxu0 0.0
    %1450 = vmatpush1.msra.mxu0 0.0
    %1451 = vmatprep.subr.mxu0 0.0
    %1452 = vmatpush1.msra.mxu0 0.0
    %1453 = vmatprep.subr.mxu0 0.0
    %1454 = vmatpush1.msra.mxu0 0.0
    %1455 = vmatprep.subr.mxu0 0.0
    %1456 = vmatpush1.msra.mxu0 0.0
    %1457 = vmatprep.subr.mxu0 0.0
    %1458 = vmatpush1.msra.mxu0 0.0
    %1459 = vmatprep.subr.mxu0 0.0
    %1460 = vmatpush1.msra.mxu0 0.0
    %1461 = vmatprep.subr.mxu0 0.0
    %1462 = vmatpush1.msra.mxu0 0.0
    %1463 = vmatprep.subr.mxu0 0.0
    %1464 = vmatpush1.msra.mxu0 0.0
    %1465 = vmatprep.subr.mxu0 0.0
    %1466 = vmatpush1.msra.mxu0 0.0
    %1467 = vmatprep.subr.mxu0 0.0
    %1468 = vmatpush1.msra.mxu0 0.0
    %1469 = vmatprep.subr.mxu0 0.0
    %1470 = vmatpush1.msra.mxu0 0.0
    %1471 = vmatprep.subr.mxu0 0.0
    %1472 = vmatpush1.msra.mxu0 0.0
    %1473 = vmatprep.mubr.f32.mxu0 0.0
    %1474 = vmatmul.mubr.f32.gmra.mrb[0].mxu0 %v1398
    %v1475 = vpop.f32.mrb[0].mxu0
    %v1476 = vadd.f32 %v542, %v1475
    %v1477 = vpop.f32.mrb[0].mxu0
    %1478 = vmatprep.mubr.f32.mxu0 0.0
    %1479 = vmatmul.mubr.f32.gmra.mrb[0].mxu0 %v1401
    %v1480 = vpop.f32.mrb[0].mxu0
    %v1481 = vadd.f32 %v542, %v1480
    %v1482 = vpop.f32.mrb[0].mxu0
    %1483 = vmatprep.mubr.f32.mxu0 0.0
    %1484 = vmatmul.mubr.f32.gmra.mrb[0].mxu0 %v1404
    %v1485 = vpop.f32.mrb[0].mxu0
    %v1486 = vadd.f32 %v542, %v1485
    %v1487 = vpop.f32.mrb[0].mxu0
    %1488 = vmatprep.mubr.f32.mxu0 0.0
    %1489 = vmatmul.mubr.f32.gmra.mrb[0].mxu0 %v1407
    %v1490 = vpop.f32.mrb[0].mxu0
    %v1491 = vadd.f32 %v542, %v1490
    %v1492 = vpop.f32.mrb[0].mxu0
    %1493 = vdwg.mxu0
    %1494 = vrot.lane.b32.xlu0 %v1250, 32
    %v1495 = vpop.permute.xlu0 %1494
    %1496 = vrot.lane.b32.xlu0 %v1256, 32
    %v1497 = vpop.permute.xlu0 %1496
    %1498 = vrot.lane.b32.xlu0 %v1262, 32
    %v1499 = vpop.permute.xlu0 %1498
    %1500 = vrot.lane.b32.xlu0 %v1268, 32
    %v1501 = vpop.permute.xlu0 %1500
    %v1506 = vadd.f32 %v1476, %v1495
    %v1507 = vadd.f32 %v1481, %v1497
    %v1508 = vadd.f32 %v1486, %v1499
    %v1509 = vadd.f32 %v1491, %v1501
    %v1510 = vxor.u32 %v1506, 2147483648
    %v1511 = vxor.u32 %v1507, 2147483648
    %v1512 = vxor.u32 %v1508, 2147483648
    %v1513 = vxor.u32 %v1509, 2147483648
    %v1514 = vmul.f32 %v1510, 1.442695
    %v1515 = vpow.pop %v1514
    %v1516 = vmul.f32 %v1511, 1.442695
    %v1517 = vpow.pop %v1516
    %v1518 = vmul.f32 %v1512, 1.442695
    %v1519 = vpow.pop %v1518
    %v1520 = vmul.f32 %v1513, 1.442695
    %v1521 = vpow.pop %v1520
    %v1522 = vadd.f32 %v1515, 1.0
    %v1523 = vadd.f32 %v1517, 1.0
    %v1524 = vadd.f32 %v1519, 1.0
    %v1525 = vadd.f32 %v1521, 1.0
    %v1526 = vrcp.pop %v1522
    %v1527 = vmul.f32 1.0, %v1526
    %v1528 = vrcp.pop %v1523
    %v1529 = vmul.f32 1.0, %v1528
    %v1530 = vrcp.pop %v1524
    %v1531 = vmul.f32 1.0, %v1530
    %v1532 = vrcp.pop %v1525
    %v1533 = vmul.f32 1.0, %v1532
    %1538 = vrot.lane.b32.xlu0 %v1252, 32
    %v1539 = vpop.permute.xlu0 %1538
    %1540 = vrot.lane.b32.xlu0 %v1258, 32
    %v1541 = vpop.permute.xlu0 %1540
    %1542 = vrot.lane.b32.xlu0 %v1264, 32
    %v1543 = vpop.permute.xlu0 %1542
    %1544 = vrot.lane.b32.xlu0 %v1270, 32
    %v1545 = vpop.permute.xlu0 %1544
    %v1550 = vadd.f32 %v1476, %v1539
    %v1551 = vadd.f32 %v1481, %v1541
    %v1552 = vadd.f32 %v1486, %v1543
    %v1553 = vadd.f32 %v1491, %v1545
    %v1554 = vxor.u32 %v1550, 2147483648
    %v1555 = vxor.u32 %v1551, 2147483648
    %v1556 = vxor.u32 %v1552, 2147483648
    %v1557 = vxor.u32 %v1553, 2147483648
    %v1558 = vmul.f32 %v1554, 1.442695
    %v1559 = vpow.pop %v1558
    %v1560 = vmul.f32 %v1555, 1.442695
    %v1561 = vpow.pop %v1560
    %v1562 = vmul.f32 %v1556, 1.442695
    %v1563 = vpow.pop %v1562
    %v1564 = vmul.f32 %v1557, 1.442695
    %v1565 = vpow.pop %v1564
    %v1566 = vadd.f32 %v1559, 1.0
    %v1567 = vadd.f32 %v1561, 1.0
    %v1568 = vadd.f32 %v1563, 1.0
    %v1569 = vadd.f32 %v1565, 1.0
    %v1570 = vrcp.pop %v1566
    %v1571 = vmul.f32 1.0, %v1570
    %v1572 = vrcp.pop %v1567
    %v1573 = vmul.f32 1.0, %v1572
    %v1574 = vrcp.pop %v1568
    %v1575 = vmul.f32 1.0, %v1574
    %v1576 = vrcp.pop %v1569
    %v1577 = vmul.f32 1.0, %v1576
    %1578 = vrot.lane.b32.xlu0 %v1252, 96
    %v1579 = vpop.permute.xlu0 %1578
    %1580 = vrot.lane.b32.xlu0 %v1258, 96
    %v1581 = vpop.permute.xlu0 %1580
    %1582 = vrot.lane.b32.xlu0 %v1264, 96
    %v1583 = vpop.permute.xlu0 %1582
    %1584 = vrot.lane.b32.xlu0 %v1270, 96
    %v1585 = vpop.permute.xlu0 %1584
    %v1590 = vmul.f32 %v1527, %v1579
    %v1591 = vmul.f32 %v1529, %v1581
    %v1592 = vmul.f32 %v1531, %v1583
    %v1593 = vmul.f32 %v1533, %v1585
    %1598 = vrot.lane.b32.xlu0 %v1590, 64
    %v1599 = vpop.permute.xlu0 %1598
    %1600 = vrot.lane.b32.xlu0 %v1591, 64
    %v1601 = vpop.permute.xlu0 %1600
    %1602 = vrot.lane.b32.xlu0 %v1592, 64
    %v1603 = vpop.permute.xlu0 %1602
    %1604 = vrot.lane.b32.xlu0 %v1593, 64
    %v1605 = vpop.permute.xlu0 %1604
    %v1610 = vadd.f32 %v1476, %v1599
    %v1611 = vadd.f32 %v1481, %v1601
    %v1612 = vadd.f32 %v1486, %v1603
    %v1613 = vadd.f32 %v1491, %v1605
    %v1614 = vtanh.pop %v1610
    %v1615 = vtanh.pop %v1611
    %v1616 = vtanh.pop %v1612
    %v1617 = vtanh.pop %v1613
    %v1618 = vsub.f32 1.0, %v1571
    %v1619 = vsub.f32 1.0, %v1573
    %v1620 = vsub.f32 1.0, %v1575
    %v1621 = vsub.f32 1.0, %v1577
    %1626 = vrot.lane.b32.xlu0 %v1614, 96
    %v1627 = vpop.permute.xlu0 %1626
    %1628 = vrot.lane.b32.xlu0 %v1615, 96
    %v1629 = vpop.permute.xlu0 %1628
    %1630 = vrot.lane.b32.xlu0 %v1616, 96
    %v1631 = vpop.permute.xlu0 %1630
    %1632 = vrot.lane.b32.xlu0 %v1617, 96
    %v1633 = vpop.permute.xlu0 %1632
    %v1638 = vmul.f32 %v1618, %v1627
    %v1639 = vmul.f32 %v1619, %v1629
    %v1640 = vmul.f32 %v1620, %v1631
    %v1641 = vmul.f32 %v1621, %v1633
    %1642 = vrot.lane.b32.xlu0 %v1162, 32
    %v1643 = vpop.permute.xlu0 %1642
    %1644 = vrot.lane.b32.xlu0 %v1163, 32
    %v1645 = vpop.permute.xlu0 %1644
    %1646 = vrot.lane.b32.xlu0 %v1164, 32
    %v1647 = vpop.permute.xlu0 %1646
    %1648 = vrot.lane.b32.xlu0 %v1165, 32
    %v1649 = vpop.permute.xlu0 %1648
    %v1654 = vmul.f32 %v1571, %v1643
    %v1655 = vmul.f32 %v1573, %v1645
    %v1656 = vmul.f32 %v1575, %v1647
    %v1657 = vmul.f32 %v1577, %v1649
    %v1658 = vadd.f32 %v1638, %v1654
    %v1659 = vadd.f32 %v1639, %v1655
    %v1660 = vadd.f32 %v1640, %v1656
    %v1661 = vadd.f32 %v1641, %v1657
    %1666 = vrot.lane.b32.xlu0 %v1658, 96
    %v1667 = vpop.permute.xlu0 %1666
    %1668 = vrot.lane.b32.xlu0 %v1659, 96
    %v1669 = vpop.permute.xlu0 %1668
    %1670 = vrot.lane.b32.xlu0 %v1660, 96
    %v1671 = vpop.permute.xlu0 %1670
    %1672 = vrot.lane.b32.xlu0 %v1661, 96
    %v1673 = vpop.permute.xlu0 %1672
    %v1674 = vsel %vm305, %v1667, 0
    %v1676 = vsel %vm305, %v1669, 0
    %v1678 = vsel %vm305, %v1671, 0
    %v1680 = vsel %vm305, %v1673, 0
    %1682 = vmatprep.subr.mxu0 %v286
    %1683 = vmatpush1.msra.mxu0 %v285
    %1684 = vmatprep.subr.mxu0 %v288
    %1685 = vmatpush1.msra.mxu0 %v287
    %1686 = vmatprep.subr.mxu0 %v290
    %1687 = vmatpush1.msra.mxu0 %v289
    %1688 = vmatprep.subr.mxu0 %v292
    %1689 = vmatpush1.msra.mxu0 %v291
    %1690 = vmatprep.subr.mxu0 0.0
    %1691 = vmatpush1.msra.mxu0 0.0
    %1692 = vmatprep.subr.mxu0 0.0
    %1693 = vmatpush1.msra.mxu0 0.0
    %1694 = vmatprep.subr.mxu0 0.0
    %1695 = vmatpush1.msra.mxu0 0.0
    %1696 = vmatprep.subr.mxu0 0.0
    %1697 = vmatpush1.msra.mxu0 0.0
    %1698 = vmatprep.subr.mxu0 0.0
    %1699 = vmatpush1.msra.mxu0 0.0
    %1700 = vmatprep.subr.mxu0 0.0
    %1701 = vmatpush1.msra.mxu0 0.0
    %1702 = vmatprep.subr.mxu0 0.0
    %1703 = vmatpush1.msra.mxu0 0.0
    %1704 = vmatprep.subr.mxu0 0.0
    %1705 = vmatpush1.msra.mxu0 0.0
    %1706 = vmatprep.subr.mxu0 0.0
    %1707 = vmatpush1.msra.mxu0 0.0
    %1708 = vmatprep.subr.mxu0 0.0
    %1709 = vmatpush1.msra.mxu0 0.0
    %1710 = vmatprep.subr.mxu0 0.0
    %1711 = vmatpush1.msra.mxu0 0.0
    %1712 = vmatprep.subr.mxu0 0.0
    %1713 = vmatpush1.msra.mxu0 0.0
    %1714 = vmatprep.subr.mxu0 0.0
    %1715 = vmatpush1.msra.mxu0 0.0
    %1716 = vmatprep.subr.mxu0 0.0
    %1717 = vmatpush1.msra.mxu0 0.0
    %1718 = vmatprep.subr.mxu0 0.0
    %1719 = vmatpush1.msra.mxu0 0.0
    %1720 = vmatprep.subr.mxu0 0.0
    %1721 = vmatpush1.msra.mxu0 0.0
    %1722 = vmatprep.subr.mxu0 0.0
    %1723 = vmatpush1.msra.mxu0 0.0
    %1724 = vmatprep.subr.mxu0 0.0
    %1725 = vmatpush1.msra.mxu0 0.0
    %1726 = vmatprep.subr.mxu0 0.0
    %1727 = vmatpush1.msra.mxu0 0.0
    %1728 = vmatprep.subr.mxu0 0.0
    %1729 = vmatpush1.msra.mxu0 0.0
    %1730 = vmatprep.subr.mxu0 0.0
    %1731 = vmatpush1.msra.mxu0 0.0
    %1732 = vmatprep.subr.mxu0 0.0
    %1733 = vmatpush1.msra.mxu0 0.0
    %1734 = vmatprep.subr.mxu0 0.0
    %1735 = vmatpush1.msra.mxu0 0.0
    %1736 = vmatprep.subr.mxu0 0.0
    %1737 = vmatpush1.msra.mxu0 0.0
    %1738 = vmatprep.subr.mxu0 0.0
    %1739 = vmatpush1.msra.mxu0 0.0
    %1740 = vmatprep.subr.mxu0 0.0
    %1741 = vmatpush1.msra.mxu0 0.0
    %1742 = vmatprep.subr.mxu0 0.0
    %1743 = vmatpush1.msra.mxu0 0.0
    %1744 = vmatprep.subr.mxu0 0.0
    %1745 = vmatpush1.msra.mxu0 0.0
    %1746 = vmatprep.mubr.f32.mxu0 0.0
    %1747 = vmatmul.mubr.f32.gmra.mrb[0].mxu0 %v1674
    %v1748 = vpop.f32.mrb[0].mxu0
    %v1749 = vadd.f32 %v298, %v1748
    %v1750 = vpop.f32.mrb[0].mxu0
    %v1751 = vadd.f32 %v302, %v1750
    %1752 = vmatprep.mubr.f32.mxu0 0.0
    %1753 = vmatmul.mubr.f32.gmra.mrb[0].mxu0 %v1676
    %v1754 = vpop.f32.mrb[0].mxu0
    %v1755 = vadd.f32 %v298, %v1754
    %v1756 = vpop.f32.mrb[0].mxu0
    %1757 = vmatprep.mubr.f32.mxu0 0.0
    %1758 = vmatmul.mubr.f32.gmra.mrb[0].mxu0 %v1678
    %v1759 = vpop.f32.mrb[0].mxu0
    %v1760 = vadd.f32 %v298, %v1759
    %v1761 = vpop.f32.mrb[0].mxu0
    %1762 = vmatprep.mubr.f32.mxu0 0.0
    %1763 = vmatmul.mubr.f32.gmra.mrb[0].mxu0 %v1680
    %v1764 = vpop.f32.mrb[0].mxu0
    %v1765 = vadd.f32 %v298, %v1764
    %v1766 = vpop.f32.mrb[0].mxu0
    %1767 = vdwg.mxu0
    %1772 = vrot.lane.b32.xlu0 %v1749, 96
    %v1773 = vpop.permute.xlu0 %1772
    %1774 = vrot.lane.b32.xlu0 %v1755, 96
    %v1775 = vpop.permute.xlu0 %1774
    %1776 = vrot.lane.b32.xlu0 %v1760, 96
    %v1777 = vpop.permute.xlu0 %1776
    %1778 = vrot.lane.b32.xlu0 %v1765, 96
    %v1779 = vpop.permute.xlu0 %1778
    %1784 = vrot.lane.b32.xlu0 %v1749, 64
    %v1785 = vpop.permute.xlu0 %1784
    %1786 = vrot.lane.b32.xlu0 %v1755, 64
    %v1787 = vpop.permute.xlu0 %1786
    %1788 = vrot.lane.b32.xlu0 %v1760, 64
    %v1789 = vpop.permute.xlu0 %1788
    %1790 = vrot.lane.b32.xlu0 %v1765, 64
    %v1791 = vpop.permute.xlu0 %1790
    %1796 = vmatprep.subr.mxu0 0.0
    %1797 = vmatpush1.msra.mxu0 %v1749
    %1798 = vmatprep.subr.mxu0 0.0
    %1799 = vmatpush1.msra.mxu0 %v1755
    %1800 = vmatprep.subr.mxu0 0.0
    %1801 = vmatpush1.msra.mxu0 %v1760
    %1802 = vmatprep.subr.mxu0 0.0
    %1803 = vmatpush1.msra.mxu0 %v1765
    %1804 = vmatprep.subr.mxu0 0.0
    %1805 = vmatpush1.msra.mxu0 %v1773
    %1806 = vmatprep.subr.mxu0 0.0
    %1807 = vmatpush1.msra.mxu0 %v1775
    %1808 = vmatprep.subr.mxu0 0.0
    %1809 = vmatpush1.msra.mxu0 %v1777
    %1810 = vmatprep.subr.mxu0 0.0
    %1811 = vmatpush1.msra.mxu0 %v1779
    %1812 = vmatprep.subr.mxu0 0.0
    %1813 = vmatpush1.msra.mxu0 %v1785
    %1814 = vmatprep.subr.mxu0 0.0
    %1815 = vmatpush1.msra.mxu0 %v1787
    %1816 = vmatprep.subr.mxu0 0.0
    %1817 = vmatpush1.msra.mxu0 %v1789
    %1818 = vmatprep.subr.mxu0 0.0
    %1819 = vmatpush1.msra.mxu0 %v1791
    %1820 = vmatprep.subr.mxu0 0.0
    %1821 = vmatpush1.msra.mxu0 0.0
    %1822 = vmatprep.subr.mxu0 0.0
    %1823 = vmatpush1.msra.mxu0 0.0
    %1824 = vmatprep.subr.mxu0 0.0
    %1825 = vmatpush1.msra.mxu0 0.0
    %1826 = vmatprep.subr.mxu0 0.0
    %1827 = vmatpush1.msra.mxu0 0.0
    %1828 = vmatprep.subr.mxu0 0.0
    %1829 = vmatpush1.msra.mxu0 0.0
    %1830 = vmatprep.subr.mxu0 0.0
    %1831 = vmatpush1.msra.mxu0 0.0
    %1832 = vmatprep.subr.mxu0 0.0
    %1833 = vmatpush1.msra.mxu0 0.0
    %1834 = vmatprep.subr.mxu0 0.0
    %1835 = vmatpush1.msra.mxu0 0.0
    %1836 = vmatprep.subr.mxu0 0.0
    %1837 = vmatpush1.msra.mxu0 0.0
    %1838 = vmatprep.subr.mxu0 0.0
    %1839 = vmatpush1.msra.mxu0 0.0
    %1840 = vmatprep.subr.mxu0 0.0
    %1841 = vmatpush1.msra.mxu0 0.0
    %1842 = vmatprep.subr.mxu0 0.0
    %1843 = vmatpush1.msra.mxu0 0.0
    %1844 = vmatprep.subr.mxu0 0.0
    %1845 = vmatpush1.msra.mxu0 0.0
    %1846 = vmatprep.subr.mxu0 0.0
    %1847 = vmatpush1.msra.mxu0 0.0
    %1848 = vmatprep.subr.mxu0 0.0
    %1849 = vmatpush1.msra.mxu0 0.0
    %1850 = vmatprep.subr.mxu0 0.0
    %1851 = vmatpush1.msra.mxu0 0.0
    %1852 = vmatprep.subr.mxu0 0.0
    %1853 = vmatpush1.msra.mxu0 0.0
    %1854 = vmatprep.subr.mxu0 0.0
    %1855 = vmatpush1.msra.mxu0 0.0
    %1856 = vmatprep.subr.mxu0 0.0
    %1857 = vmatpush1.msra.mxu0 0.0
    %1858 = vmatprep.subr.mxu0 0.0
    %1859 = vmatpush1.msra.mxu0 0.0
    %1860 = vmatprep.mubr.f32.mxu0 0.0
    %1861 = vmatmul.mubr.f32.gmra.mrb[0].mxu0 %v1301
    %v1862 = vpop.f32.mrb[0].mxu0
    %v1863 = vadd.f32 0.0, %v1862
    %v1864 = vpop.f32.mrb[0].mxu0
    %1865 = vmatprep.mubr.f32.mxu0 0.0
    %1866 = vmatmul.mubr.f32.gmra.mrb[0].mxu0 %v1304
    %v1867 = vpop.f32.mrb[0].mxu0
    %v1868 = vadd.f32 0.0, %v1867
    %v1869 = vpop.f32.mrb[0].mxu0
    %1870 = vmatprep.mubr.f32.mxu0 0.0
    %1871 = vmatmul.mubr.f32.gmra.mrb[0].mxu0 %v1307
    %v1872 = vpop.f32.mrb[0].mxu0
    %v1873 = vadd.f32 0.0, %v1872
    %v1874 = vpop.f32.mrb[0].mxu0
    %1875 = vmatprep.mubr.f32.mxu0 0.0
    %1876 = vmatmul.mubr.f32.gmra.mrb[0].mxu0 %v1310
    %v1877 = vpop.f32.mrb[0].mxu0
    %v1878 = vadd.f32 0.0, %v1877
    %v1879 = vpop.f32.mrb[0].mxu0
    %1880 = vdwg.mxu0
    %v1882 = vsel %vm305, %v1863, 0
    %v1885 = vsel %vm305, %v1868, 0
    %v1888 = vsel %vm305, %v1873, 0
    %v1891 = vsel %vm305, %v1878, 0
    %1893 = vmatprep.subr.mxu0 0.0
    %1894 = vmatpush1.msra.mxu0 %v533
    %1895 = vmatprep.subr.mxu0 0.0
    %1896 = vmatpush1.msra.mxu0 %v534
    %1897 = vmatprep.subr.mxu0 0.0
    %1898 = vmatpush1.msra.mxu0 %v535
    %1899 = vmatprep.subr.mxu0 0.0
    %1900 = vmatpush1.msra.mxu0 %v536
    %1901 = vmatprep.subr.mxu0 0.0
    %1902 = vmatpush1.msra.mxu0 0.0
    %1903 = vmatprep.subr.mxu0 0.0
    %1904 = vmatpush1.msra.mxu0 0.0
    %1905 = vmatprep.subr.mxu0 0.0
    %1906 = vmatpush1.msra.mxu0 0.0
    %1907 = vmatprep.subr.mxu0 0.0
    %1908 = vmatpush1.msra.mxu0 0.0
    %1909 = vmatprep.subr.mxu0 0.0
    %1910 = vmatpush1.msra.mxu0 0.0
    %1911 = vmatprep.subr.mxu0 0.0
    %1912 = vmatpush1.msra.mxu0 0.0
    %1913 = vmatprep.subr.mxu0 0.0
    %1914 = vmatpush1.msra.mxu0 0.0
    %1915 = vmatprep.subr.mxu0 0.0
    %1916 = vmatpush1.msra.mxu0 0.0
    %1917 = vmatprep.subr.mxu0 0.0
    %1918 = vmatpush1.msra.mxu0 0.0
    %1919 = vmatprep.subr.mxu0 0.0
    %1920 = vmatpush1.msra.mxu0 0.0
    %1921 = vmatprep.subr.mxu0 0.0
    %1922 = vmatpush1.msra.mxu0 0.0
    %1923 = vmatprep.subr.mxu0 0.0
    %1924 = vmatpush1.msra.mxu0 0.0
    %1925 = vmatprep.subr.mxu0 0.0
    %1926 = vmatpush1.msra.mxu0 0.0
    %1927 = vmatprep.subr.mxu0 0.0
    %1928 = vmatpush1.msra.mxu0 0.0
    %1929 = vmatprep.subr.mxu0 0.0
    %1930 = vmatpush1.msra.mxu0 0.0
    %1931 = vmatprep.subr.mxu0 0.0
    %1932 = vmatpush1.msra.mxu0 0.0
    %1933 = vmatprep.subr.mxu0 0.0
    %1934 = vmatpush1.msra.mxu0 0.0
    %1935 = vmatprep.subr.mxu0 0.0
    %1936 = vmatpush1.msra.mxu0 0.0
    %1937 = vmatprep.subr.mxu0 0.0
    %1938 = vmatpush1.msra.mxu0 0.0
    %1939 = vmatprep.subr.mxu0 0.0
    %1940 = vmatpush1.msra.mxu0 0.0
    %1941 = vmatprep.subr.mxu0 0.0
    %1942 = vmatpush1.msra.mxu0 0.0
    %1943 = vmatprep.subr.mxu0 0.0
    %1944 = vmatpush1.msra.mxu0 0.0
    %1945 = vmatprep.subr.mxu0 0.0
    %1946 = vmatpush1.msra.mxu0 0.0
    %1947 = vmatprep.subr.mxu0 0.0
    %1948 = vmatpush1.msra.mxu0 0.0
    %1949 = vmatprep.subr.mxu0 0.0
    %1950 = vmatpush1.msra.mxu0 0.0
    %1951 = vmatprep.subr.mxu0 0.0
    %1952 = vmatpush1.msra.mxu0 0.0
    %1953 = vmatprep.subr.mxu0 0.0
    %1954 = vmatpush1.msra.mxu0 0.0
    %1955 = vmatprep.subr.mxu0 0.0
    %1956 = vmatpush1.msra.mxu0 0.0
    %1957 = vmatprep.mubr.f32.mxu0 0.0
    %1958 = vmatmul.mubr.f32.gmra.mrb[0].mxu0 %v1882
    %v1959 = vpop.f32.mrb[0].mxu0
    %v1960 = vadd.f32 %v542, %v1959
    %v1961 = vpop.f32.mrb[0].mxu0
    %1962 = vmatprep.mubr.f32.mxu0 0.0
    %1963 = vmatmul.mubr.f32.gmra.mrb[0].mxu0 %v1885
    %v1964 = vpop.f32.mrb[0].mxu0
    %v1965 = vpop.f32.mrb[0].mxu0
    %1966 = vmatprep.mubr.f32.mxu0 0.0
    %1967 = vmatmul.mubr.f32.gmra.mrb[0].mxu0 %v1888
    %v1968 = vpop.f32.mrb[0].mxu0
    %v1969 = vpop.f32.mrb[0].mxu0
    %1970 = vmatprep.mubr.f32.mxu0 0.0
    %1971 = vmatmul.mubr.f32.gmra.mrb[0].mxu0 %v1891
    %v1972 = vpop.f32.mrb[0].mxu0
    %v1973 = vpop.f32.mrb[0].mxu0
    %1974 = vdwg.mxu0
    %1975 = vrot.lane.b32.xlu0 %v1749, 32
    %v1976 = vpop.permute.xlu0 %1975
    %v1978 = vadd.f32 %v1960, %v1976
    %v1979 = vxor.u32 %v1978, 2147483648
    %v1980 = vmul.f32 %v1979, 1.442695
    %v1981 = vpow.pop %v1980
    %v1982 = vadd.f32 %v1981, 1.0
    %v1983 = vrcp.pop %v1982
    %v1984 = vmul.f32 1.0, %v1983
    %1986 = vrot.lane.b32.xlu0 %v1751, 32
    %v1987 = vpop.permute.xlu0 %1986
    %v1989 = vadd.f32 %v1960, %v1987
    %v1990 = vxor.u32 %v1989, 2147483648
    %v1991 = vmul.f32 %v1990, 1.442695
    %v1992 = vpow.pop %v1991
    %v1993 = vadd.f32 %v1992, 1.0
    %v1994 = vrcp.pop %v1993
    %v1995 = vmul.f32 1.0, %v1994
    %1996 = vrot.lane.b32.xlu0 %v1751, 96
    %v1997 = vpop.permute.xlu0 %1996
    %v1999 = vmul.f32 %v1984, %v1997
    %2001 = vrot.lane.b32.xlu0 %v1999, 64
    %v2002 = vpop.permute.xlu0 %2001
    %v2004 = vadd.f32 %v1960, %v2002
    %v2005 = vtanh.pop %v2004
    %v2006 = vsub.f32 1.0, %v1995
    %2008 = vrot.lane.b32.xlu0 %v2005, 96
    %v2009 = vpop.permute.xlu0 %2008
    %v2011 = vmul.f32 %v2006, %v2009
    %v2012 = vmul.f32 %v1995, %v1658
    %v2013 = vadd.f32 %v2011, %v2012
    %v2014 = vld [vmem:[#allocation13] sm:$0x1f]
    %v2015 = vld [vmem:[#allocation15] sm:$0x1f]
    %v2016 = vld [vmem:[#allocation9] sm:$0xff]
    %v2017 = vld [vmem:[#allocation10] sm:$0xff]
    %v2018 = vld [vmem:[%s4] sm:$0xff]
    %v2019 = vld [vmem:[#allocation12] sm:$0x1]
    %2021 = vset.pattern.permute.xlu0 0
    %2022 = vperm.xlu0 %2021, %v2018
    %v2023 = vpop.permute.xlu0 %2022
    %v2025 = vmul.f32 %v1160, %v2023
    %vm2026 = vcmask 523520
    %v2027 = vsel %vm2026, %v2025, 0.0
    %v2028 = vrot.slane %v2027, 4
    %v2029 = vadd.f32 %v2027, %v2028
    %v2030 = vrot.slane %v2029, 2
    %v2031 = vadd.f32 %v2029, %v2030
    %v2032 = vrot.slane %v2031, 1
    %v2033 = vadd.f32 %v2031, %v2032
    %v2034 = vld [vmem:[#allocation19] sm:$0xff]
    %v2035 = vld [vmem:[#allocation19 + $0x8] sm:$0xff]
    %v2036 = vld [vmem:[#allocation19 + $0x10] sm:$0xff]
    %v2037 = vld [vmem:[#allocation19 + $0x18] sm:$0xff]
    %v2038 = vld [vmem:[#allocation21] sm:$0x1]
    %2040 = vrot.lane.b32.xlu0 %v2033, 96
    %v2041 = vpop.permute.xlu0 %2040
    %v2042 = vsel %vm305, %v2041, 0
    %2044 = vmatprep.subr.mxu0 0.0
    %2045 = vmatpush1.msra.mxu0 %v2034
    %2046 = vmatprep.subr.mxu0 0.0
    %2047 = vmatpush1.msra.mxu0 %v2035
    %2048 = vmatprep.subr.mxu0 0.0
    %2049 = vmatpush1.msra.mxu0 %v2036
    %2050 = vmatprep.subr.mxu0 0.0
    %2051 = vmatpush1.msra.mxu0 %v2037
    %2052 = vmatprep.subr.mxu0 0.0
    %2053 = vmatpush1.msra.mxu0 0.0
    %2054 = vmatprep.subr.mxu0 0.0
    %2055 = vmatpush1.msra.mxu0 0.0
    %2056 = vmatprep.subr.mxu0 0.0
    %2057 = vmatpush1.msra.mxu0 0.0
    %2058 = vmatprep.subr.mxu0 0.0
    %2059 = vmatpush1.msra.mxu0 0.0
    %2060 = vmatprep.subr.mxu0 0.0
    %2061 = vmatpush1.msra.mxu0 0.0
    %2062 = vmatprep.subr.mxu0 0.0
    %2063 = vmatpush1.msra.mxu0 0.0
    %2064 = vmatprep.subr.mxu0 0.0
    %2065 = vmatpush1.msra.mxu0 0.0
    %2066 = vmatprep.subr.mxu0 0.0
    %2067 = vmatpush1.msra.mxu0 0.0
    %2068 = vmatprep.subr.mxu0 0.0
    %2069 = vmatpush1.msra.mxu0 0.0
    %2070 = vmatprep.subr.mxu0 0.0
    %2071 = vmatpush1.msra.mxu0 0.0
    %2072 = vmatprep.subr.mxu0 0.0
    %2073 = vmatpush1.msra.mxu0 0.0
    %2074 = vmatprep.subr.mxu0 0.0
    %2075 = vmatpush1.msra.mxu0 0.0
    %2076 = vmatprep.subr.mxu0 0.0
    %2077 = vmatpush1.msra.mxu0 0.0
    %2078 = vmatprep.subr.mxu0 0.0
    %2079 = vmatpush1.msra.mxu0 0.0
    %2080 = vmatprep.subr.mxu0 0.0
    %2081 = vmatpush1.msra.mxu0 0.0
    %2082 = vmatprep.subr.mxu0 0.0
    %2083 = vmatpush1.msra.mxu0 0.0
    %2084 = vmatprep.subr.mxu0 0.0
    %2085 = vmatpush1.msra.mxu0 0.0
    %2086 = vmatprep.subr.mxu0 0.0
    %2087 = vmatpush1.msra.mxu0 0.0
    %2088 = vmatprep.subr.mxu0 0.0
    %2089 = vmatpush1.msra.mxu0 0.0
    %2090 = vmatprep.subr.mxu0 0.0
    %2091 = vmatpush1.msra.mxu0 0.0
    %2092 = vmatprep.subr.mxu0 0.0
    %2093 = vmatpush1.msra.mxu0 0.0
    %2094 = vmatprep.subr.mxu0 0.0
    %2095 = vmatpush1.msra.mxu0 0.0
    %2096 = vmatprep.subr.mxu0 0.0
    %2097 = vmatpush1.msra.mxu0 0.0
    %2098 = vmatprep.subr.mxu0 0.0
    %2099 = vmatpush1.msra.mxu0 0.0
    %2100 = vmatprep.subr.mxu0 0.0
    %2101 = vmatpush1.msra.mxu0 0.0
    %2102 = vmatprep.subr.mxu0 0.0
    %2103 = vmatpush1.msra.mxu0 0.0
    %2104 = vmatprep.subr.mxu0 0.0
    %2105 = vmatpush1.msra.mxu0 0.0
    %2106 = vmatprep.subr.mxu0 0.0
    %2107 = vmatpush1.msra.mxu0 0.0
    %2108 = vmatprep.mubr.f32.mxu0 0.0
    %2109 = vmatmul.mubr.f32.gmra.mrb[0].mxu0 %v2042
    %v2110 = vpop.f32.mrb[0].mxu0
    %v2111 = vadd.f32 %v2038, %v2110
    %v2112 = vpop.f32.mrb[0].mxu0
    %2113 = vdwg.mxu0
    %v2114 = vlaneseq
    %v2115 = vshrl.u32 %v2114, 7
    %v2116 = vsub.s32 0, %v2115
    %v2117 = vrot.slane %v2111, %v2116
    %2119 = vrot.lane.b32.xlu0 %v2117, 32
    %v2120 = vpop.permute.xlu0 %2119
    %v2122 = vmul.f32 %v2013, %v2120
    %2124 = vrot.lane.b32.xlu0 %v2122, 96
    %v2125 = vpop.permute.xlu0 %2124
    %v2127 = vsel %vm305, %v2125, 0.0
    %2128 = vadd.xlane.f32.xlu0 %v2127
    %v2129 = vpop.xlane.xlu0 %2128
    %v2130 = vmul.f32 %v2129, 0.17677669
    %v2131 = vxor.u32 %v2130, 2147483648
    %v2132 = vmul.f32 %v2131, 1.442695
    %v2133 = vpow.pop %v2132
    %v2134 = vadd.f32 %v2133, 1.0
    %v2135 = vrcp.pop %v2134
    %v2136 = vmul.f32 1.0, %v2135
    %v2137 = vld [vmem:[#allocation22] sm:$0xff]
    %v2138 = vld [vmem:[#allocation22 + $0x8] sm:$0xff]
    %v2139 = vld [vmem:[#allocation22 + $0x10] sm:$0xff]
    %v2140 = vld [vmem:[#allocation22 + $0x18] sm:$0xff]
    %v2141 = vld [vmem:[#allocation24] sm:$0x1]
    %v2143 = vlaneseq
    %v2144 = vshrl.u32 %v2143, 7
    %v2145 = vsub.s32 0, %v2144
    %v2146 = vrot.slane %v2141, %v2145
    %2149 = vrot.lane.b32.xlu0 %v2013, 96
    %v2150 = vpop.permute.xlu0 %2149
    %v2151 = vsel %vm305, %v2150, 0
    %2153 = vmatprep.subr.mxu0 0.0
    %2154 = vmatpush1.msra.mxu0 %v2137
    %2155 = vmatprep.subr.mxu0 0.0
    %2156 = vmatpush1.msra.mxu0 %v2138
    %2157 = vmatprep.subr.mxu0 0.0
    %2158 = vmatpush1.msra.mxu0 %v2139
    %2159 = vmatprep.subr.mxu0 0.0
    %2160 = vmatpush1.msra.mxu0 %v2140
    %2161 = vmatprep.subr.mxu0 0.0
    %2162 = vmatpush1.msra.mxu0 0.0
    %2163 = vmatprep.subr.mxu0 0.0
    %2164 = vmatpush1.msra.mxu0 0.0
    %2165 = vmatprep.subr.mxu0 0.0
    %2166 = vmatpush1.msra.mxu0 0.0
    %2167 = vmatprep.subr.mxu0 0.0
    %2168 = vmatpush1.msra.mxu0 0.0
    %2169 = vmatprep.subr.mxu0 0.0
    %2170 = vmatpush1.msra.mxu0 0.0
    %2171 = vmatprep.subr.mxu0 0.0
    %2172 = vmatpush1.msra.mxu0 0.0
    %2173 = vmatprep.subr.mxu0 0.0
    %2174 = vmatpush1.msra.mxu0 0.0
    %2175 = vmatprep.subr.mxu0 0.0
    %2176 = vmatpush1.msra.mxu0 0.0
    %2177 = vmatprep.subr.mxu0 0.0
    %2178 = vmatpush1.msra.mxu0 0.0
    %2179 = vmatprep.subr.mxu0 0.0
    %2180 = vmatpush1.msra.mxu0 0.0
    %2181 = vmatprep.subr.mxu0 0.0
    %2182 = vmatpush1.msra.mxu0 0.0
    %2183 = vmatprep.subr.mxu0 0.0
    %2184 = vmatpush1.msra.mxu0 0.0
    %2185 = vmatprep.subr.mxu0 0.0
    %2186 = vmatpush1.msra.mxu0 0.0
    %2187 = vmatprep.subr.mxu0 0.0
    %2188 = vmatpush1.msra.mxu0 0.0
    %2189 = vmatprep.subr.mxu0 0.0
    %2190 = vmatpush1.msra.mxu0 0.0
    %2191 = vmatprep.subr.mxu0 0.0
    %2192 = vmatpush1.msra.mxu0 0.0
    %2193 = vmatprep.subr.mxu0 0.0
    %2194 = vmatpush1.msra.mxu0 0.0
    %2195 = vmatprep.subr.mxu0 0.0
    %2196 = vmatpush1.msra.mxu0 0.0
    %2197 = vmatprep.subr.mxu0 0.0
    %2198 = vmatpush1.msra.mxu0 0.0
    %2199 = vmatprep.subr.mxu0 0.0
    %2200 = vmatpush1.msra.mxu0 0.0
    %2201 = vmatprep.subr.mxu0 0.0
    %2202 = vmatpush1.msra.mxu0 0.0
    %2203 = vmatprep.subr.mxu0 0.0
    %2204 = vmatpush1.msra.mxu0 0.0
    %2205 = vmatprep.subr.mxu0 0.0
    %2206 = vmatpush1.msra.mxu0 0.0
    %2207 = vmatprep.subr.mxu0 0.0
    %2208 = vmatpush1.msra.mxu0 0.0
    %2209 = vmatprep.subr.mxu0 0.0
    %2210 = vmatpush1.msra.mxu0 0.0
    %2211 = vmatprep.subr.mxu0 0.0
    %2212 = vmatpush1.msra.mxu0 0.0
    %2213 = vmatprep.subr.mxu0 0.0
    %2214 = vmatpush1.msra.mxu0 0.0
    %2215 = vmatprep.subr.mxu0 0.0
    %2216 = vmatpush1.msra.mxu0 0.0
    %2217 = vmatprep.mubr.f32.mxu0 0.0
    %2218 = vmatmul.mubr.f32.gmra.mrb[0].mxu0 %v2151
    %v2219 = vpop.f32.mrb[0].mxu0
    %v2220 = vadd.f32 %v2146, %v2219
    %v2221 = vpop.f32.mrb[0].mxu0
    %2222 = vdwg.mxu0
    %v2223 = vsub.f32 1.0, %v2136
    %v2224 = vmul.f32 %v2223, %v2220
    %v2225 = vmul.f32 %v2136, %v2117
    %2227 = vrot.lane.b32.xlu0 %v2225, 96
    %v2228 = vpop.permute.xlu0 %2227
    %v2230 = vadd.f32 %v2224, %v2228
    %v2231 = vld [vmem:[%s16] sm:$0xff]
    %v2232 = vld [vmem:[%s16 + $0x8] sm:$0xff]
    %v2233 = vld [vmem:[%s16 + $0x10] sm:$0xff]
    %v2234 = vld [vmem:[%s16 + $0x18] sm:$0xff]
    %v2235 = vld [vmem:[#allocation25] sm:$0x1]
    %v2237 = vlaneseq
    %v2238 = vshrl.u32 %v2237, 7
    %v2239 = vsub.s32 0, %v2238
    %v2240 = vrot.slane %v2235, %v2239
    %2243 = vrot.lane.b32.xlu0 %v1160, 96
    %v2244 = vpop.permute.xlu0 %2243
    %v2245 = vsel %vm305, %v2244, 0
    %2247 = vmatprep.subr.mxu0 0.0
    %2248 = vmatpush1.msra.mxu0 %v2231
    %2249 = vmatprep.subr.mxu0 0.0
    %2250 = vmatpush1.msra.mxu0 %v2232
    %2251 = vmatprep.subr.mxu0 0.0
    %2252 = vmatpush1.msra.mxu0 %v2233
    %2253 = vmatprep.subr.mxu0 0.0
    %2254 = vmatpush1.msra.mxu0 %v2234
    %2255 = vmatprep.subr.mxu0 0.0
    %2256 = vmatpush1.msra.mxu0 0.0
    %2257 = vmatprep.subr.mxu0 0.0
    %2258 = vmatpush1.msra.mxu0 0.0
    %2259 = vmatprep.subr.mxu0 0.0
    %2260 = vmatpush1.msra.mxu0 0.0
    %2261 = vmatprep.subr.mxu0 0.0
    %2262 = vmatpush1.msra.mxu0 0.0
    %2263 = vmatprep.subr.mxu0 0.0
    %2264 = vmatpush1.msra.mxu0 0.0
    %2265 = vmatprep.subr.mxu0 0.0
    %2266 = vmatpush1.msra.mxu0 0.0
    %2267 = vmatprep.subr.mxu0 0.0
    %2268 = vmatpush1.msra.mxu0 0.0
    %2269 = vmatprep.subr.mxu0 0.0
    %2270 = vmatpush1.msra.mxu0 0.0
    %2271 = vmatprep.subr.mxu0 0.0
    %2272 = vmatpush1.msra.mxu0 0.0
    %2273 = vmatprep.subr.mxu0 0.0
    %2274 = vmatpush1.msra.mxu0 0.0
    %2275 = vmatprep.subr.mxu0 0.0
    %2276 = vmatpush1.msra.mxu0 0.0
    %2277 = vmatprep.subr.mxu0 0.0
    %2278 = vmatpush1.msra.mxu0 0.0
    %2279 = vmatprep.subr.mxu0 0.0
    %2280 = vmatpush1.msra.mxu0 0.0
    %2281 = vmatprep.subr.mxu0 0.0
    %2282 = vmatpush1.msra.mxu0 0.0
    %2283 = vmatprep.subr.mxu0 0.0
    %2284 = vmatpush1.msra.mxu0 0.0
    %2285 = vmatprep.subr.mxu0 0.0
    %2286 = vmatpush1.msra.mxu0 0.0
    %2287 = vmatprep.subr.mxu0 0.0
    %2288 = vmatpush1.msra.mxu0 0.0
    %2289 = vmatprep.subr.mxu0 0.0
    %2290 = vmatpush1.msra.mxu0 0.0
    %2291 = vmatprep.subr.mxu0 0.0
    %2292 = vmatpush1.msra.mxu0 0.0
    %2293 = vmatprep.subr.mxu0 0.0
    %2294 = vmatpush1.msra.mxu0 0.0
    %2295 = vmatprep.subr.mxu0 0.0
    %2296 = vmatpush1.msra.mxu0 0.0
    %2297 = vmatprep.subr.mxu0 0.0
    %2298 = vmatpush1.msra.mxu0 0.0
    %2299 = vmatprep.subr.mxu0 0.0
    %2300 = vmatpush1.msra.mxu0 0.0
    %2301 = vmatprep.subr.mxu0 0.0
    %2302 = vmatpush1.msra.mxu0 0.0
    %2303 = vmatprep.subr.mxu0 0.0
    %2304 = vmatpush1.msra.mxu0 0.0
    %2305 = vmatprep.subr.mxu0 0.0
    %2306 = vmatpush1.msra.mxu0 0.0
    %2307 = vmatprep.subr.mxu0 0.0
    %2308 = vmatpush1.msra.mxu0 0.0
    %2309 = vmatprep.subr.mxu0 0.0
    %2310 = vmatpush1.msra.mxu0 0.0
    %2311 = vmatprep.mubr.f32.mxu0 0.0
    %2312 = vmatmul.mubr.f32.gmra.mrb[0].mxu0 %v2245
    %v2313 = vpop.f32.mrb[0].mxu0
    %v2314 = vadd.f32 %v2240, %v2313
    %v2315 = vpop.f32.mrb[0].mxu0
    %2316 = vdwg.mxu0
    %v2318 = vsel %vm305, %v2314, 0
    %v2321 = vsel %vm305, %v2014, 0
    %2323 = vmatprep.subr.mxu0 0.0
    %2324 = vmatpush1.xpose.msra.mxu0 %v2321
    %2325 = vmatprep.subr.mxu0 0.0
    %2326 = vmatpush1.xpose.msra.mxu0 0.0
    %2327 = vmatprep.subr.mxu0 0.0
    %2328 = vmatpush1.xpose.msra.mxu0 0.0
    %2329 = vmatprep.subr.mxu0 0.0
    %2330 = vmatpush1.xpose.msra.mxu0 0.0
    %2331 = vmatprep.subr.mxu0 0.0
    %2332 = vmatpush1.xpose.msra.mxu0 0.0
    %2333 = vmatprep.subr.mxu0 0.0
    %2334 = vmatpush1.xpose.msra.mxu0 0.0
    %2335 = vmatprep.subr.mxu0 0.0
    %2336 = vmatpush1.xpose.msra.mxu0 0.0
    %2337 = vmatprep.subr.mxu0 0.0
    %2338 = vmatpush1.xpose.msra.mxu0 0.0
    %2339 = vmatprep.subr.mxu0 0.0
    %2340 = vmatpush1.xpose.msra.mxu0 0.0
    %2341 = vmatprep.subr.mxu0 0.0
    %2342 = vmatpush1.xpose.msra.mxu0 0.0
    %2343 = vmatprep.subr.mxu0 0.0
    %2344 = vmatpush1.xpose.msra.mxu0 0.0
    %2345 = vmatprep.subr.mxu0 0.0
    %2346 = vmatpush1.xpose.msra.mxu0 0.0
    %2347 = vmatprep.subr.mxu0 0.0
    %2348 = vmatpush1.xpose.msra.mxu0 0.0
    %2349 = vmatprep.subr.mxu0 0.0
    %2350 = vmatpush1.xpose.msra.mxu0 0.0
    %2351 = vmatprep.subr.mxu0 0.0
    %2352 = vmatpush1.xpose.msra.mxu0 0.0
    %2353 = vmatprep.subr.mxu0 0.0
    %2354 = vmatpush1.xpose.msra.mxu0 0.0
    %2355 = vmatprep.subr.mxu0 0.0
    %2356 = vmatpush1.xpose.msra.mxu0 0.0
    %2357 = vmatprep.subr.mxu0 0.0
    %2358 = vmatpush1.xpose.msra.mxu0 0.0
    %2359 = vmatprep.subr.mxu0 0.0
    %2360 = vmatpush1.xpose.msra.mxu0 0.0
    %2361 = vmatprep.subr.mxu0 0.0
    %2362 = vmatpush1.xpose.msra.mxu0 0.0
    %2363 = vmatprep.subr.mxu0 0.0
    %2364 = vmatpush1.xpose.msra.mxu0 0.0
    %2365 = vmatprep.subr.mxu0 0.0
    %2366 = vmatpush1.xpose.msra.mxu0 0.0
    %2367 = vmatprep.subr.mxu0 0.0
    %2368 = vmatpush1.xpose.msra.mxu0 0.0
    %2369 = vmatprep.subr.mxu0 0.0
    %2370 = vmatpush1.xpose.msra.mxu0 0.0
    %2371 = vmatprep.subr.mxu0 0.0
    %2372 = vmatpush1.xpose.msra.mxu0 0.0
    %2373 = vmatprep.subr.mxu0 0.0
    %2374 = vmatpush1.xpose.msra.mxu0 0.0
    %2375 = vmatprep.subr.mxu0 0.0
    %2376 = vmatpush1.xpose.msra.mxu0 0.0
    %2377 = vmatprep.subr.mxu0 0.0
    %2378 = vmatpush1.xpose.msra.mxu0 0.0
    %2379 = vmatprep.subr.mxu0 0.0
    %2380 = vmatpush1.xpose.msra.mxu0 0.0
    %2381 = vmatprep.subr.mxu0 0.0
    %2382 = vmatpush1.xpose.msra.mxu0 0.0
    %2383 = vmatprep.subr.mxu0 0.0
    %2384 = vmatpush1.xpose.msra.mxu0 0.0
    %2385 = vmatprep.subr.mxu0 0.0
    %2386 = vmatpush1.xpose.msra.mxu0 0.0
    %2387 = vmatprep.mubr.f32.mxu0 0.0
    %2388 = vmatmul.mubr.f32.gmra.mrb[0].mxu0 %v2318
    %v2389 = vpop.f32.mrb[0].mxu0
    %v2390 = vadd.f32 0.0, %v2389
    %v2391 = vpop.f32.mrb[0].mxu0
    %2392 = vdwg.mxu0
    %2393 = vrot.lane.b32.xlu0 %v2314, 96
    %v2394 = vpop.permute.xlu0 %2393
    %v2395 = vsel %vm305, %v2394, 0
    %2397 = vmatprep.subr.mxu0 0.0
    %2398 = vmatpush1.xpose.msra.mxu0 %v2321
    %2399 = vmatprep.subr.mxu0 0.0
    %2400 = vmatpush1.xpose.msra.mxu0 0.0
    %2401 = vmatprep.subr.mxu0 0.0
    %2402 = vmatpush1.xpose.msra.mxu0 0.0
    %2403 = vmatprep.subr.mxu0 0.0
    %2404 = vmatpush1.xpose.msra.mxu0 0.0
    %2405 = vmatprep.subr.mxu0 0.0
    %2406 = vmatpush1.xpose.msra.mxu0 0.0
    %2407 = vmatprep.subr.mxu0 0.0
    %2408 = vmatpush1.xpose.msra.mxu0 0.0
    %2409 = vmatprep.subr.mxu0 0.0
    %2410 = vmatpush1.xpose.msra.mxu0 0.0
    %2411 = vmatprep.subr.mxu0 0.0
    %2412 = vmatpush1.xpose.msra.mxu0 0.0
    %2413 = vmatprep.subr.mxu0 0.0
    %2414 = vmatpush1.xpose.msra.mxu0 0.0
    %2415 = vmatprep.subr.mxu0 0.0
    %2416 = vmatpush1.xpose.msra.mxu0 0.0
    %2417 = vmatprep.subr.mxu0 0.0
    %2418 = vmatpush1.xpose.msra.mxu0 0.0
    %2419 = vmatprep.subr.mxu0 0.0
    %2420 = vmatpush1.xpose.msra.mxu0 0.0
    %2421 = vmatprep.subr.mxu0 0.0
    %2422 = vmatpush1.xpose.msra.mxu0 0.0
    %2423 = vmatprep.subr.mxu0 0.0
    %2424 = vmatpush1.xpose.msra.mxu0 0.0
    %2425 = vmatprep.subr.mxu0 0.0
    %2426 = vmatpush1.xpose.msra.mxu0 0.0
    %2427 = vmatprep.subr.mxu0 0.0
    %2428 = vmatpush1.xpose.msra.mxu0 0.0
    %2429 = vmatprep.subr.mxu0 0.0
    %2430 = vmatpush1.xpose.msra.mxu0 0.0
    %2431 = vmatprep.subr.mxu0 0.0
    %2432 = vmatpush1.xpose.msra.mxu0 0.0
    %2433 = vmatprep.subr.mxu0 0.0
    %2434 = vmatpush1.xpose.msra.mxu0 0.0
    %2435 = vmatprep.subr.mxu0 0.0
    %2436 = vmatpush1.xpose.msra.mxu0 0.0
    %2437 = vmatprep.subr.mxu0 0.0
    %2438 = vmatpush1.xpose.msra.mxu0 0.0
    %2439 = vmatprep.subr.mxu0 0.0
    %2440 = vmatpush1.xpose.msra.mxu0 0.0
    %2441 = vmatprep.subr.mxu0 0.0
    %2442 = vmatpush1.xpose.msra.mxu0 0.0
    %2443 = vmatprep.subr.mxu0 0.0
    %2444 = vmatpush1.xpose.msra.mxu0 0.0
    %2445 = vmatprep.subr.mxu0 0.0
    %2446 = vmatpush1.xpose.msra.mxu0 0.0
    %2447 = vmatprep.subr.mxu0 0.0
    %2448 = vmatpush1.xpose.msra.mxu0 0.0
    %2449 = vmatprep.subr.mxu0 0.0
    %2450 = vmatpush1.xpose.msra.mxu0 0.0
    %2451 = vmatprep.subr.mxu0 0.0
    %2452 = vmatpush1.xpose.msra.mxu0 0.0
    %2453 = vmatprep.subr.mxu0 0.0
    %2454 = vmatpush1.xpose.msra.mxu0 0.0
    %2455 = vmatprep.subr.mxu0 0.0
    %2456 = vmatpush1.xpose.msra.mxu0 0.0
    %2457 = vmatprep.subr.mxu0 0.0
    %2458 = vmatpush1.xpose.msra.mxu0 0.0
    %2459 = vmatprep.subr.mxu0 0.0
    %2460 = vmatpush1.xpose.msra.mxu0 0.0
    %2461 = vmatprep.mubr.f32.mxu0 0.0
    %2462 = vmatmul.mubr.f32.gmra.mrb[0].mxu0 %v2395
    %v2463 = vpop.f32.mrb[0].mxu0
    %v2464 = vadd.f32 0.0, %v2463
    %v2465 = vpop.f32.mrb[0].mxu0
    %2466 = vdwg.mxu0
    %vm2467 = vcmp.eq.s32.totalorder %v2016, 0
    %2469 = vset.pattern.permute.xlu0 0
    %2470 = vperm.xlu0 %2469, %v2390
    %v2471 = vpop.permute.xlu0 %2470
    %v2473 = vsel %vm2467, %v2471, 0.0
    %v2474 = vadd.f32 %v2473, 0.0
    %2476 = vset.pattern.permute.xlu0 0
    %2477 = vperm.xlu0 %2476, %v2464
    %v2478 = vpop.permute.xlu0 %2477
    %v2480 = vsel %vm2467, %v2478, 0.0
    %v2481 = vadd.f32 %v2480, 0.0
    %vm2482 = vcmp.eq.s32.totalorder %v2016, 1
    %2483 = vset.pattern.permute.xlu0 1
    %2484 = vperm.xlu0 %2483, %v2390
    %v2485 = vpop.permute.xlu0 %2484
    %v2487 = vsel %vm2482, %v2485, 0.0
    %v2488 = vadd.f32 %v2474, %v2487
    %2489 = vset.pattern.permute.xlu0 1
    %2490 = vperm.xlu0 %2489, %v2464
    %v2491 = vpop.permute.xlu0 %2490
    %v2493 = vsel %vm2482, %v2491, 0.0
    %v2494 = vadd.f32 %v2481, %v2493
    %vm2495 = vcmp.eq.s32.totalorder %v2016, 2
    %2496 = vset.pattern.permute.xlu0 2
    %2497 = vperm.xlu0 %2496, %v2390
    %v2498 = vpop.permute.xlu0 %2497
    %v2500 = vsel %vm2495, %v2498, 0.0
    %v2501 = vadd.f32 %v2488, %v2500
    %2502 = vset.pattern.permute.xlu0 2
    %2503 = vperm.xlu0 %2502, %v2464
    %v2504 = vpop.permute.xlu0 %2503
    %v2506 = vsel %vm2495, %v2504, 0.0
    %v2507 = vadd.f32 %v2494, %v2506
    %vm2508 = vcmp.eq.s32.totalorder %v2016, 3
    %2509 = vset.pattern.permute.xlu0 3
    %2510 = vperm.xlu0 %2509, %v2390
    %v2511 = vpop.permute.xlu0 %2510
    %v2513 = vsel %vm2508, %v2511, 0.0
    %v2514 = vadd.f32 %v2501, %v2513
    %2515 = vset.pattern.permute.xlu0 3
    %2516 = vperm.xlu0 %2515, %v2464
    %v2517 = vpop.permute.xlu0 %2516
    %v2519 = vsel %vm2508, %v2517, 0.0
    %v2520 = vadd.f32 %v2507, %v2519
    %vm2521 = vcmp.eq.s32.totalorder %v2016, 4
    %2522 = vset.pattern.permute.xlu0 4
    %2523 = vperm.xlu0 %2522, %v2390
    %v2524 = vpop.permute.xlu0 %2523
    %v2526 = vsel %vm2521, %v2524, 0.0
    %v2527 = vadd.f32 %v2514, %v2526
    %2528 = vset.pattern.permute.xlu0 4
    %2529 = vperm.xlu0 %2528, %v2464
    %v2530 = vpop.permute.xlu0 %2529
    %v2532 = vsel %vm2521, %v2530, 0.0
    %v2533 = vadd.f32 %v2520, %v2532
    %v2535 = vsel %vm305, %v2230, 0
    %2537 = vmatprep.subr.mxu0 0.0
    %2538 = vmatpush1.xpose.msra.mxu0 %v2535
    %2539 = vmatprep.subr.mxu0 0.0
    %2540 = vmatpush1.xpose.msra.mxu0 0.0
    %2541 = vmatprep.subr.mxu0 0.0
    %2542 = vmatpush1.xpose.msra.mxu0 0.0
    %2543 = vmatprep.subr.mxu0 0.0
    %2544 = vmatpush1.xpose.msra.mxu0 0.0
    %2545 = vmatprep.subr.mxu0 0.0
    %2546 = vmatpush1.xpose.msra.mxu0 0.0
    %2547 = vmatprep.subr.mxu0 0.0
    %2548 = vmatpush1.xpose.msra.mxu0 0.0
    %2549 = vmatprep.subr.mxu0 0.0
    %2550 = vmatpush1.xpose.msra.mxu0 0.0
    %2551 = vmatprep.subr.mxu0 0.0
    %2552 = vmatpush1.xpose.msra.mxu0 0.0
    %2553 = vmatprep.subr.mxu0 0.0
    %2554 = vmatpush1.xpose.msra.mxu0 0.0
    %2555 = vmatprep.subr.mxu0 0.0
    %2556 = vmatpush1.xpose.msra.mxu0 0.0
    %2557 = vmatprep.subr.mxu0 0.0
    %2558 = vmatpush1.xpose.msra.mxu0 0.0
    %2559 = vmatprep.subr.mxu0 0.0
    %2560 = vmatpush1.xpose.msra.mxu0 0.0
    %2561 = vmatprep.subr.mxu0 0.0
    %2562 = vmatpush1.xpose.msra.mxu0 0.0
    %2563 = vmatprep.subr.mxu0 0.0
    %2564 = vmatpush1.xpose.msra.mxu0 0.0
    %2565 = vmatprep.subr.mxu0 0.0
    %2566 = vmatpush1.xpose.msra.mxu0 0.0
    %2567 = vmatprep.subr.mxu0 0.0
    %2568 = vmatpush1.xpose.msra.mxu0 0.0
    %2569 = vmatprep.subr.mxu0 0.0
    %2570 = vmatpush1.xpose.msra.mxu0 0.0
    %2571 = vmatprep.subr.mxu0 0.0
    %2572 = vmatpush1.xpose.msra.mxu0 0.0
    %2573 = vmatprep.subr.mxu0 0.0
    %2574 = vmatpush1.xpose.msra.mxu0 0.0
    %2575 = vmatprep.subr.mxu0 0.0
    %2576 = vmatpush1.xpose.msra.mxu0 0.0
    %2577 = vmatprep.subr.mxu0 0.0
    %2578 = vmatpush1.xpose.msra.mxu0 0.0
    %2579 = vmatprep.subr.mxu0 0.0
    %2580 = vmatpush1.xpose.msra.mxu0 0.0
    %2581 = vmatprep.subr.mxu0 0.0
    %2582 = vmatpush1.xpose.msra.mxu0 0.0
    %2583 = vmatprep.subr.mxu0 0.0
    %2584 = vmatpush1.xpose.msra.mxu0 0.0
    %2585 = vmatprep.subr.mxu0 0.0
    %2586 = vmatpush1.xpose.msra.mxu0 0.0
    %2587 = vmatprep.subr.mxu0 0.0
    %2588 = vmatpush1.xpose.msra.mxu0 0.0
    %2589 = vmatprep.subr.mxu0 0.0
    %2590 = vmatpush1.xpose.msra.mxu0 0.0
    %2591 = vmatprep.subr.mxu0 0.0
    %2592 = vmatpush1.xpose.msra.mxu0 0.0
    %2593 = vmatprep.subr.mxu0 0.0
    %2594 = vmatpush1.xpose.msra.mxu0 0.0
    %2595 = vmatprep.subr.mxu0 0.0
    %2596 = vmatpush1.xpose.msra.mxu0 0.0
    %2597 = vmatprep.subr.mxu0 0.0
    %2598 = vmatpush1.xpose.msra.mxu0 0.0
    %2599 = vmatprep.subr.mxu0 0.0
    %2600 = vmatpush1.xpose.msra.mxu0 0.0
    %2601 = vmatprep.mubr.f32.mxu0 0.0
    %2602 = vmatmul.mubr.f32.gmra.mrb[0].mxu0 %v2318
    %v2603 = vpop.f32.mrb[0].mxu0
    %v2604 = vadd.f32 %v2527, %v2603
    %v2605 = vpop.f32.mrb[0].mxu0
    %2606 = vdwg.mxu0
    %v2607 = vmul.f32 %v2604, 0.17677669
    %v2608 = vtanh.pop %v2607
    %2609 = vmatprep.subr.mxu0 0.0
    %2610 = vmatpush1.xpose.msra.mxu0 %v2535
    %2611 = vmatprep.subr.mxu0 0.0
    %2612 = vmatpush1.xpose.msra.mxu0 0.0
    %2613 = vmatprep.subr.mxu0 0.0
    %2614 = vmatpush1.xpose.msra.mxu0 0.0
    %2615 = vmatprep.subr.mxu0 0.0
    %2616 = vmatpush1.xpose.msra.mxu0 0.0
    %2617 = vmatprep.subr.mxu0 0.0
    %2618 = vmatpush1.xpose.msra.mxu0 0.0
    %2619 = vmatprep.subr.mxu0 0.0
    %2620 = vmatpush1.xpose.msra.mxu0 0.0
    %2621 = vmatprep.subr.mxu0 0.0
    %2622 = vmatpush1.xpose.msra.mxu0 0.0
    %2623 = vmatprep.subr.mxu0 0.0
    %2624 = vmatpush1.xpose.msra.mxu0 0.0
    %2625 = vmatprep.subr.mxu0 0.0
    %2626 = vmatpush1.xpose.msra.mxu0 0.0
    %2627 = vmatprep.subr.mxu0 0.0
    %2628 = vmatpush1.xpose.msra.mxu0 0.0
    %2629 = vmatprep.subr.mxu0 0.0
    %2630 = vmatpush1.xpose.msra.mxu0 0.0
    %2631 = vmatprep.subr.mxu0 0.0
    %2632 = vmatpush1.xpose.msra.mxu0 0.0
    %2633 = vmatprep.subr.mxu0 0.0
    %2634 = vmatpush1.xpose.msra.mxu0 0.0
    %2635 = vmatprep.subr.mxu0 0.0
    %2636 = vmatpush1.xpose.msra.mxu0 0.0
    %2637 = vmatprep.subr.mxu0 0.0
    %2638 = vmatpush1.xpose.msra.mxu0 0.0
    %2639 = vmatprep.subr.mxu0 0.0
    %2640 = vmatpush1.xpose.msra.mxu0 0.0
    %2641 = vmatprep.subr.mxu0 0.0
    %2642 = vmatpush1.xpose.msra.mxu0 0.0
    %2643 = vmatprep.subr.mxu0 0.0
    %2644 = vmatpush1.xpose.msra.mxu0 0.0
    %2645 = vmatprep.subr.mxu0 0.0
    %2646 = vmatpush1.xpose.msra.mxu0 0.0
    %2647 = vmatprep.subr.mxu0 0.0
    %2648 = vmatpush1.xpose.msra.mxu0 0.0
    %2649 = vmatprep.subr.mxu0 0.0
    %2650 = vmatpush1.xpose.msra.mxu0 0.0
    %2651 = vmatprep.subr.mxu0 0.0
    %2652 = vmatpush1.xpose.msra.mxu0 0.0
    %2653 = vmatprep.subr.mxu0 0.0
    %2654 = vmatpush1.xpose.msra.mxu0 0.0
    %2655 = vmatprep.subr.mxu0 0.0
    %2656 = vmatpush1.xpose.msra.mxu0 0.0
    %2657 = vmatprep.subr.mxu0 0.0
    %2658 = vmatpush1.xpose.msra.mxu0 0.0
    %2659 = vmatprep.subr.mxu0 0.0
    %2660 = vmatpush1.xpose.msra.mxu0 0.0
    %2661 = vmatprep.subr.mxu0 0.0
    %2662 = vmatpush1.xpose.msra.mxu0 0.0
    %2663 = vmatprep.subr.mxu0 0.0
    %2664 = vmatpush1.xpose.msra.mxu0 0.0
    %2665 = vmatprep.subr.mxu0 0.0
    %2666 = vmatpush1.xpose.msra.mxu0 0.0
    %2667 = vmatprep.subr.mxu0 0.0
    %2668 = vmatpush1.xpose.msra.mxu0 0.0
    %2669 = vmatprep.subr.mxu0 0.0
    %2670 = vmatpush1.xpose.msra.mxu0 0.0
    %2671 = vmatprep.subr.mxu0 0.0
    %2672 = vmatpush1.xpose.msra.mxu0 0.0
    %2673 = vmatprep.mubr.f32.mxu0 0.0
    %2674 = vmatmul.mubr.f32.gmra.mrb[0].mxu0 %v2395
    %v2675 = vpop.f32.mrb[0].mxu0
    %v2676 = vadd.f32 %v2533, %v2675
    %v2677 = vpop.f32.mrb[0].mxu0
    %2678 = vdwg.mxu0
    %v2679 = vmul.f32 %v2676, 0.17677669
    %v2680 = vtanh.pop %v2679
    %vm2681 = vcmp.gt.f32.partialorder %v2019, 0.0
    %v2682 = vsel %vm2681, 1, 0
    %v2683 = vlaneseq
    %v2684 = vshrl.u32 %v2683, 7
    %v2685 = vsub.s32 0, %v2684
    %v2686 = vrot.slane %v2682, %v2685
    %vm2687 = vcmp.eq.s32.totalorder %v2686, 1
    %v2688 = vsel %vm2687, %v2608, -9e+15
    %vm2689 = vcmask 64512
    %v2690 = vsel %vm2689, %v2688, -inf
    %2691 = vmax.xlane.f32.xlu0 %v2690
    %v2692 = vpop.xlane.xlu0 %2691
    %v2693 = vsub.f32 %v2688, %v2692
    %v2694 = vmul.f32 %v2693, 1.442695
    %v2695 = vpow.pop %v2694
    %v2696 = vsel %vm2689, %v2695, 0.0
    %2697 = vadd.xlane.f32.xlu0 %v2696
    %v2698 = vpop.xlane.xlu0 %2697
    %v2699 = vrcp.pop %v2698
    %v2700 = vmul.f32 %v2695, %v2699
    %v2701 = vsel %vm2689, %v2680, -inf
    %2702 = vmax.xlane.f32.xlu0 %v2701
    %v2703 = vpop.xlane.xlu0 %2702
    %v2704 = vsub.f32 %v2680, %v2703
    %v2705 = vmul.f32 %v2704, 1.442695
    %v2706 = vpow.pop %v2705
    %v2708 = vlaneseq
    %v2709 = vshrl.u32 %v2708, 7
    %v2710 = vsub.s32 0, %v2709
    %v2711 = vrot.slane %v2019, %v2710
    %v2713 = vmul.f32 %v2706, %v2711
    %v2715 = vsel %vm2689, %v2713, 0
    %v2718 = vsel %vm2689, %v2017, 0
    %2720 = vmatprep.subr.mxu0 0.0
    %2721 = vmatpush1.xpose.msra.mxu0 %v2718
    %2722 = vmatprep.subr.mxu0 0.0
    %2723 = vmatpush1.xpose.msra.mxu0 0.0
    %2724 = vmatprep.subr.mxu0 0.0
    %2725 = vmatpush1.xpose.msra.mxu0 0.0
    %2726 = vmatprep.subr.mxu0 0.0
    %2727 = vmatpush1.xpose.msra.mxu0 0.0
    %2728 = vmatprep.subr.mxu0 0.0
    %2729 = vmatpush1.xpose.msra.mxu0 0.0
    %2730 = vmatprep.subr.mxu0 0.0
    %2731 = vmatpush1.xpose.msra.mxu0 0.0
    %2732 = vmatprep.subr.mxu0 0.0
    %2733 = vmatpush1.xpose.msra.mxu0 0.0
    %2734 = vmatprep.subr.mxu0 0.0
    %2735 = vmatpush1.xpose.msra.mxu0 0.0
    %2736 = vmatprep.subr.mxu0 0.0
    %2737 = vmatpush1.xpose.msra.mxu0 0.0
    %2738 = vmatprep.subr.mxu0 0.0
    %2739 = vmatpush1.xpose.msra.mxu0 0.0
    %2740 = vmatprep.subr.mxu0 0.0
    %2741 = vmatpush1.xpose.msra.mxu0 0.0
    %2742 = vmatprep.subr.mxu0 0.0
    %2743 = vmatpush1.xpose.msra.mxu0 0.0
    %2744 = vmatprep.subr.mxu0 0.0
    %2745 = vmatpush1.xpose.msra.mxu0 0.0
    %2746 = vmatprep.subr.mxu0 0.0
    %2747 = vmatpush1.xpose.msra.mxu0 0.0
    %2748 = vmatprep.subr.mxu0 0.0
    %2749 = vmatpush1.xpose.msra.mxu0 0.0
    %2750 = vmatprep.subr.mxu0 0.0
    %2751 = vmatpush1.xpose.msra.mxu0 0.0
    %2752 = vmatprep.subr.mxu0 0.0
    %2753 = vmatpush1.xpose.msra.mxu0 0.0
    %2754 = vmatprep.subr.mxu0 0.0
    %2755 = vmatpush1.xpose.msra.mxu0 0.0
    %2756 = vmatprep.subr.mxu0 0.0
    %2757 = vmatpush1.xpose.msra.mxu0 0.0
    %2758 = vmatprep.subr.mxu0 0.0
    %2759 = vmatpush1.xpose.msra.mxu0 0.0
    %2760 = vmatprep.subr.mxu0 0.0
    %2761 = vmatpush1.xpose.msra.mxu0 0.0
    %2762 = vmatprep.subr.mxu0 0.0
    %2763 = vmatpush1.xpose.msra.mxu0 0.0
    %2764 = vmatprep.subr.mxu0 0.0
    %2765 = vmatpush1.xpose.msra.mxu0 0.0
    %2766 = vmatprep.subr.mxu0 0.0
    %2767 = vmatpush1.xpose.msra.mxu0 0.0
    %2768 = vmatprep.subr.mxu0 0.0
    %2769 = vmatpush1.xpose.msra.mxu0 0.0
    %2770 = vmatprep.subr.mxu0 0.0
    %2771 = vmatpush1.xpose.msra.mxu0 0.0
    %2772 = vmatprep.subr.mxu0 0.0
    %2773 = vmatpush1.xpose.msra.mxu0 0.0
    %2774 = vmatprep.subr.mxu0 0.0
    %2775 = vmatpush1.xpose.msra.mxu0 0.0
    %2776 = vmatprep.subr.mxu0 0.0
    %2777 = vmatpush1.xpose.msra.mxu0 0.0
    %2778 = vmatprep.subr.mxu0 0.0
    %2779 = vmatpush1.xpose.msra.mxu0 0.0
    %2780 = vmatprep.subr.mxu0 0.0
    %2781 = vmatpush1.xpose.msra.mxu0 0.0
    %2782 = vmatprep.subr.mxu0 0.0
    %2783 = vmatpush1.xpose.msra.mxu0 0.0
    %2784 = vmatprep.mubr.f32.mxu0 0.0
    %2785 = vmatmul.mubr.f32.gmra.mrb[0].mxu0 %v2715
    %v2786 = vpop.f32.mrb[0].mxu0
    %v2787 = vadd.f32 0.0, %v2786
    %v2788 = vpop.f32.mrb[0].mxu0
    %2789 = vdwg.mxu0
    %vm2790 = vcmp.gt.f32.partialorder %v2787, 0.0
    %v2791 = vsel %vm2790, %v2787, 1.0
    %v2792 = vrcp.pop %v2791
    %v2793 = vmul.f32 1.0, %v2792
    %v2794 = vld [vmem:[#allocation27] sm:$0x3]
    %v2796 = vsel %vm305, %v2794, 0
    %2798 = vmatprep.subr.mxu0 0.0
    %2799 = vmatpush1.xpose.msra.mxu0 %v2535
    %2800 = vmatprep.subr.mxu0 0.0
    %2801 = vmatpush1.xpose.msra.mxu0 0.0
    %2802 = vmatprep.subr.mxu0 0.0
    %2803 = vmatpush1.xpose.msra.mxu0 0.0
    %2804 = vmatprep.subr.mxu0 0.0
    %2805 = vmatpush1.xpose.msra.mxu0 0.0
    %2806 = vmatprep.subr.mxu0 0.0
    %2807 = vmatpush1.xpose.msra.mxu0 0.0
    %2808 = vmatprep.subr.mxu0 0.0
    %2809 = vmatpush1.xpose.msra.mxu0 0.0
    %2810 = vmatprep.subr.mxu0 0.0
    %2811 = vmatpush1.xpose.msra.mxu0 0.0
    %2812 = vmatprep.subr.mxu0 0.0
    %2813 = vmatpush1.xpose.msra.mxu0 0.0
    %2814 = vmatprep.subr.mxu0 0.0
    %2815 = vmatpush1.xpose.msra.mxu0 0.0
    %2816 = vmatprep.subr.mxu0 0.0
    %2817 = vmatpush1.xpose.msra.mxu0 0.0
    %2818 = vmatprep.subr.mxu0 0.0
    %2819 = vmatpush1.xpose.msra.mxu0 0.0
    %2820 = vmatprep.subr.mxu0 0.0
    %2821 = vmatpush1.xpose.msra.mxu0 0.0
    %2822 = vmatprep.subr.mxu0 0.0
    %2823 = vmatpush1.xpose.msra.mxu0 0.0
    %2824 = vmatprep.subr.mxu0 0.0
    %2825 = vmatpush1.xpose.msra.mxu0 0.0
    %2826 = vmatprep.subr.mxu0 0.0
    %2827 = vmatpush1.xpose.msra.mxu0 0.0
    %2828 = vmatprep.subr.mxu0 0.0
    %2829 = vmatpush1.xpose.msra.mxu0 0.0
    %2830 = vmatprep.subr.mxu0 0.0
    %2831 = vmatpush1.xpose.msra.mxu0 0.0
    %2832 = vmatprep.subr.mxu0 0.0
    %2833 = vmatpush1.xpose.msra.mxu0 0.0
    %2834 = vmatprep.subr.mxu0 0.0
    %2835 = vmatpush1.xpose.msra.mxu0 0.0
    %2836 = vmatprep.subr.mxu0 0.0
    %2837 = vmatpush1.xpose.msra.mxu0 0.0
    %2838 = vmatprep.subr.mxu0 0.0
    %2839 = vmatpush1.xpose.msra.mxu0 0.0
    %2840 = vmatprep.subr.mxu0 0.0
    %2841 = vmatpush1.xpose.msra.mxu0 0.0
    %2842 = vmatprep.subr.mxu0 0.0
    %2843 = vmatpush1.xpose.msra.mxu0 0.0
    %2844 = vmatprep.subr.mxu0 0.0
    %2845 = vmatpush1.xpose.msra.mxu0 0.0
    %2846 = vmatprep.subr.mxu0 0.0
    %2847 = vmatpush1.xpose.msra.mxu0 0.0
    %2848 = vmatprep.subr.mxu0 0.0
    %2849 = vmatpush1.xpose.msra.mxu0 0.0
    %2850 = vmatprep.subr.mxu0 0.0
    %2851 = vmatpush1.xpose.msra.mxu0 0.0
    %2852 = vmatprep.subr.mxu0 0.0
    %2853 = vmatpush1.xpose.msra.mxu0 0.0
    %2854 = vmatprep.subr.mxu0 0.0
    %2855 = vmatpush1.xpose.msra.mxu0 0.0
    %2856 = vmatprep.subr.mxu0 0.0
    %2857 = vmatpush1.xpose.msra.mxu0 0.0
    %2858 = vmatprep.subr.mxu0 0.0
    %2859 = vmatpush1.xpose.msra.mxu0 0.0
    %2860 = vmatprep.subr.mxu0 0.0
    %2861 = vmatpush1.xpose.msra.mxu0 0.0
    %2862 = vmatprep.mubr.f32.mxu0 0.0
    %2863 = vmatmul.mubr.f32.gmra.mrb[0].mxu0 %v2796
    %v2864 = vpop.f32.mrb[0].mxu0
    %v2865 = vadd.f32 0.0, %v2864
    %v2866 = vpop.f32.mrb[0].mxu0
    %2867 = vdwg.mxu0
    %v2868 = vlaneseq
    %v2869 = vshrl.u32 %v2868, 7
    %v2870 = vsub.s32 0, %v2869
    %v2871 = vrot.slane %v2865, %v2870
    %v2872 = vmul.f32 %v2713, %v2871
    %v2874 = vsel %vm2689, %v2872, 0
    %2876 = vmatprep.subr.mxu0 0.0
    %2877 = vmatpush1.xpose.msra.mxu0 %v2718
    %2878 = vmatprep.subr.mxu0 0.0
    %2879 = vmatpush1.xpose.msra.mxu0 0.0
    %2880 = vmatprep.subr.mxu0 0.0
    %2881 = vmatpush1.xpose.msra.mxu0 0.0
    %2882 = vmatprep.subr.mxu0 0.0
    %2883 = vmatpush1.xpose.msra.mxu0 0.0
    %2884 = vmatprep.subr.mxu0 0.0
    %2885 = vmatpush1.xpose.msra.mxu0 0.0
    %2886 = vmatprep.subr.mxu0 0.0
    %2887 = vmatpush1.xpose.msra.mxu0 0.0
    %2888 = vmatprep.subr.mxu0 0.0
    %2889 = vmatpush1.xpose.msra.mxu0 0.0
    %2890 = vmatprep.subr.mxu0 0.0
    %2891 = vmatpush1.xpose.msra.mxu0 0.0
    %2892 = vmatprep.subr.mxu0 0.0
    %2893 = vmatpush1.xpose.msra.mxu0 0.0
    %2894 = vmatprep.subr.mxu0 0.0
    %2895 = vmatpush1.xpose.msra.mxu0 0.0
    %2896 = vmatprep.subr.mxu0 0.0
    %2897 = vmatpush1.xpose.msra.mxu0 0.0
    %2898 = vmatprep.subr.mxu0 0.0
    %2899 = vmatpush1.xpose.msra.mxu0 0.0
    %2900 = vmatprep.subr.mxu0 0.0
    %2901 = vmatpush1.xpose.msra.mxu0 0.0
    %2902 = vmatprep.subr.mxu0 0.0
    %2903 = vmatpush1.xpose.msra.mxu0 0.0
    %2904 = vmatprep.subr.mxu0 0.0
    %2905 = vmatpush1.xpose.msra.mxu0 0.0
    %2906 = vmatprep.subr.mxu0 0.0
    %2907 = vmatpush1.xpose.msra.mxu0 0.0
    %2908 = vmatprep.subr.mxu0 0.0
    %2909 = vmatpush1.xpose.msra.mxu0 0.0
    %2910 = vmatprep.subr.mxu0 0.0
    %2911 = vmatpush1.xpose.msra.mxu0 0.0
    %2912 = vmatprep.subr.mxu0 0.0
    %2913 = vmatpush1.xpose.msra.mxu0 0.0
    %2914 = vmatprep.subr.mxu0 0.0
    %2915 = vmatpush1.xpose.msra.mxu0 0.0
    %2916 = vmatprep.subr.mxu0 0.0
    %2917 = vmatpush1.xpose.msra.mxu0 0.0
    %2918 = vmatprep.subr.mxu0 0.0
    %2919 = vmatpush1.xpose.msra.mxu0 0.0
    %2920 = vmatprep.subr.mxu0 0.0
    %2921 = vmatpush1.xpose.msra.mxu0 0.0
    %2922 = vmatprep.subr.mxu0 0.0
    %2923 = vmatpush1.xpose.msra.mxu0 0.0
    %2924 = vmatprep.subr.mxu0 0.0
    %2925 = vmatpush1.xpose.msra.mxu0 0.0
    %2926 = vmatprep.subr.mxu0 0.0
    %2927 = vmatpush1.xpose.msra.mxu0 0.0
    %2928 = vmatprep.subr.mxu0 0.0
    %2929 = vmatpush1.xpose.msra.mxu0 0.0
    %2930 = vmatprep.subr.mxu0 0.0
    %2931 = vmatpush1.xpose.msra.mxu0 0.0
    %2932 = vmatprep.subr.mxu0 0.0
    %2933 = vmatpush1.xpose.msra.mxu0 0.0
    %2934 = vmatprep.subr.mxu0 0.0
    %2935 = vmatpush1.xpose.msra.mxu0 0.0
    %2936 = vmatprep.subr.mxu0 0.0
    %2937 = vmatpush1.xpose.msra.mxu0 0.0
    %2938 = vmatprep.subr.mxu0 0.0
    %2939 = vmatpush1.xpose.msra.mxu0 0.0
    %2940 = vmatprep.mubr.f32.mxu0 0.0
    %2941 = vmatmul.mubr.f32.gmra.mrb[0].mxu0 %v2874
    %v2942 = vpop.f32.mrb[0].mxu0
    %v2943 = vadd.f32 0.0, %v2942
    %v2944 = vpop.f32.mrb[0].mxu0
    %2945 = vdwg.mxu0
    %v2946 = vmul.f32 %v2943, %v2793
    %v2947 = vlaneseq
    %v2948 = vshrl.u32 %v2947, 7
    %v2949 = vsub.s32 1, %v2948
    %v2950 = vrot.slane %v2865, %v2949
    %v2951 = vadd.f32 %v2946, %v2950
    %v2952 = vld [vmem:[#allocation2] sm:$0x1]
    %v2954 = vlaneseq
    %v2955 = vshrl.u32 %v2954, 7
    %v2956 = vsub.s32 0, %v2955
    %v2957 = vrot.slane %v2952, %v2956
    %2958 = vset.pattern.permute.xlu0 0
    %2959 = vperm.xlu0 %2958, %v2957
    %v2960 = vpop.permute.xlu0 %2959
    %v2962 = vadd.f32 %v2951, %v2960
    %v2963 = vxor.u32 %v2962, 2147483648
    %v2964 = vmul.f32 %v2963, 1.442695
    %v2965 = vpow.pop %v2964
    %v2966 = vadd.f32 %v2965, 1.0
    %v2967 = vrcp.pop %v2966
    %v2968 = vmul.f32 1.0, %v2967
    %v2969 = vmul.f32 %v2700, %v2968
    %v2970 = vsub.f32 %v2700, %v2969
    %v2971 = vmul.f32 %v2969, %v2793
    %v2973 = vsel %vm2689, %v2971, 0
    %2975 = vmatprep.subr.mxu0 0.0
    %2976 = vmatpush1.msra.mxu0 %v2017
    %2977 = vmatprep.subr.mxu0 0.0
    %2978 = vmatpush1.msra.mxu0 0.0
    %2979 = vmatprep.subr.mxu0 0.0
    %2980 = vmatpush1.msra.mxu0 0.0
    %2981 = vmatprep.subr.mxu0 0.0
    %2982 = vmatpush1.msra.mxu0 0.0
    %2983 = vmatprep.subr.mxu0 0.0
    %2984 = vmatpush1.msra.mxu0 0.0
    %2985 = vmatprep.subr.mxu0 0.0
    %2986 = vmatpush1.msra.mxu0 0.0
    %2987 = vmatprep.subr.mxu0 0.0
    %2988 = vmatpush1.msra.mxu0 0.0
    %2989 = vmatprep.subr.mxu0 0.0
    %2990 = vmatpush1.msra.mxu0 0.0
    %2991 = vmatprep.subr.mxu0 0.0
    %2992 = vmatpush1.msra.mxu0 0.0
    %2993 = vmatprep.subr.mxu0 0.0
    %2994 = vmatpush1.msra.mxu0 0.0
    %2995 = vmatprep.subr.mxu0 0.0
    %2996 = vmatpush1.msra.mxu0 0.0
    %2997 = vmatprep.subr.mxu0 0.0
    %2998 = vmatpush1.msra.mxu0 0.0
    %2999 = vmatprep.subr.mxu0 0.0
    %3000 = vmatpush1.msra.mxu0 0.0
    %3001 = vmatprep.subr.mxu0 0.0
    %3002 = vmatpush1.msra.mxu0 0.0
    %3003 = vmatprep.subr.mxu0 0.0
    %3004 = vmatpush1.msra.mxu0 0.0
    %3005 = vmatprep.subr.mxu0 0.0
    %3006 = vmatpush1.msra.mxu0 0.0
    %3007 = vmatprep.subr.mxu0 0.0
    %3008 = vmatpush1.msra.mxu0 0.0
    %3009 = vmatprep.subr.mxu0 0.0
    %3010 = vmatpush1.msra.mxu0 0.0
    %3011 = vmatprep.subr.mxu0 0.0
    %3012 = vmatpush1.msra.mxu0 0.0
    %3013 = vmatprep.subr.mxu0 0.0
    %3014 = vmatpush1.msra.mxu0 0.0
    %3015 = vmatprep.subr.mxu0 0.0
    %3016 = vmatpush1.msra.mxu0 0.0
    %3017 = vmatprep.subr.mxu0 0.0
    %3018 = vmatpush1.msra.mxu0 0.0
    %3019 = vmatprep.subr.mxu0 0.0
    %3020 = vmatpush1.msra.mxu0 0.0
    %3021 = vmatprep.subr.mxu0 0.0
    %3022 = vmatpush1.msra.mxu0 0.0
    %3023 = vmatprep.subr.mxu0 0.0
    %3024 = vmatpush1.msra.mxu0 0.0
    %3025 = vmatprep.subr.mxu0 0.0
    %3026 = vmatpush1.msra.mxu0 0.0
    %3027 = vmatprep.subr.mxu0 0.0
    %3028 = vmatpush1.msra.mxu0 0.0
    %3029 = vmatprep.subr.mxu0 0.0
    %3030 = vmatpush1.msra.mxu0 0.0
    %3031 = vmatprep.subr.mxu0 0.0
    %3032 = vmatpush1.msra.mxu0 0.0
    %3033 = vmatprep.subr.mxu0 0.0
    %3034 = vmatpush1.msra.mxu0 0.0
    %3035 = vmatprep.subr.mxu0 0.0
    %3036 = vmatpush1.msra.mxu0 0.0
    %3037 = vmatprep.subr.mxu0 0.0
    %3038 = vmatpush1.msra.mxu0 0.0
    %3039 = vmatprep.mubr.f32.mxu0 0.0
    %3040 = vmatmul.mubr.f32.gmra.mrb[0].mxu0 %v2973
    %v3041 = vpop.f32.mrb[0].mxu0
    %v3042 = vadd.f32 0.0, %v3041
    %v3043 = vpop.f32.mrb[0].mxu0
    %3044 = vdwg.mxu0
    %v3045 = vmul.f32 %v3042, %v2713
    %v3046 = vadd.f32 %v3045, %v2970
    %v3047 = vsel %vm2467, %v2700, 0.0
    %v3048 = vsel %vm2689, %v3047, 0.0
    %3049 = vadd.xlane.f32.xlu0 %v3048
    %v3050 = vpop.xlane.xlu0 %3049
    %v3051 = vlaneseq
    %v3052 = vshrl.u32 %v3051, 7
    %v3053 = vsub.s32 0, %v3052
    %v3054 = vrot.slane %v2015, %v3053
    %v3055 = vmul.f32 %v3050, %v3054
    %v3056 = vadd.f32 %v3055, 0.0
    %v3057 = vsel %vm2482, %v2700, 0.0
    %v3058 = vsel %vm2689, %v3057, 0.0
    %3059 = vadd.xlane.f32.xlu0 %v3058
    %v3060 = vpop.xlane.xlu0 %3059
    %v3061 = vlaneseq
    %v3062 = vshrl.u32 %v3061, 7
    %v3063 = vsub.s32 1, %v3062
    %v3064 = vrot.slane %v2015, %v3063
    %v3065 = vmul.f32 %v3060, %v3064
    %v3066 = vadd.f32 %v3056, %v3065
    %v3067 = vsel %vm2495, %v2700, 0.0
    %v3068 = vsel %vm2689, %v3067, 0.0
    %3069 = vadd.xlane.f32.xlu0 %v3068
    %v3070 = vpop.xlane.xlu0 %3069
    %v3071 = vlaneseq
    %v3072 = vshrl.u32 %v3071, 7
    %v3073 = vsub.s32 2, %v3072
    %v3074 = vrot.slane %v2015, %v3073
    %v3075 = vmul.f32 %v3070, %v3074
    %v3076 = vadd.f32 %v3066, %v3075
    %v3077 = vsel %vm2508, %v2700, 0.0
    %v3078 = vsel %vm2689, %v3077, 0.0
    %3079 = vadd.xlane.f32.xlu0 %v3078
    %v3080 = vpop.xlane.xlu0 %3079
    %v3081 = vlaneseq
    %v3082 = vshrl.u32 %v3081, 7
    %v3083 = vsub.s32 3, %v3082
    %v3084 = vrot.slane %v2015, %v3083
    %v3085 = vmul.f32 %v3080, %v3084
    %v3086 = vadd.f32 %v3076, %v3085
    %v3087 = vsel %vm2521, %v2700, 0.0
    %v3088 = vsel %vm2689, %v3087, 0.0
    %3089 = vadd.xlane.f32.xlu0 %v3088
    %v3090 = vpop.xlane.xlu0 %3089
    %v3091 = vlaneseq
    %v3092 = vshrl.u32 %v3091, 7
    %v3093 = vsub.s32 4, %v3092
    %v3094 = vrot.slane %v2015, %v3093
    %v3095 = vmul.f32 %v3090, %v3094
    %v3096 = vadd.f32 %v3086, %v3095
    %v3098 = vsel %vm2689, %v3046, 0
    %3100 = vmatprep.subr.mxu0 0.0
    %3101 = vmatpush1.msra.mxu0 %v2230
    %3102 = vmatprep.subr.mxu0 0.0
    %3103 = vmatpush1.msra.mxu0 0.0
    %3104 = vmatprep.subr.mxu0 0.0
    %3105 = vmatpush1.msra.mxu0 0.0
    %3106 = vmatprep.subr.mxu0 0.0
    %3107 = vmatpush1.msra.mxu0 0.0
    %3108 = vmatprep.subr.mxu0 0.0
    %3109 = vmatpush1.msra.mxu0 0.0
    %3110 = vmatprep.subr.mxu0 0.0
    %3111 = vmatpush1.msra.mxu0 0.0
    %3112 = vmatprep.subr.mxu0 0.0
    %3113 = vmatpush1.msra.mxu0 0.0
    %3114 = vmatprep.subr.mxu0 0.0
    %3115 = vmatpush1.msra.mxu0 0.0
    %3116 = vmatprep.subr.mxu0 0.0
    %3117 = vmatpush1.msra.mxu0 0.0
    %3118 = vmatprep.subr.mxu0 0.0
    %3119 = vmatpush1.msra.mxu0 0.0
    %3120 = vmatprep.subr.mxu0 0.0
    %3121 = vmatpush1.msra.mxu0 0.0
    %3122 = vmatprep.subr.mxu0 0.0
    %3123 = vmatpush1.msra.mxu0 0.0
    %3124 = vmatprep.subr.mxu0 0.0
    %3125 = vmatpush1.msra.mxu0 0.0
    %3126 = vmatprep.subr.mxu0 0.0
    %3127 = vmatpush1.msra.mxu0 0.0
    %3128 = vmatprep.subr.mxu0 0.0
    %3129 = vmatpush1.msra.mxu0 0.0
    %3130 = vmatprep.subr.mxu0 0.0
    %3131 = vmatpush1.msra.mxu0 0.0
    %3132 = vmatprep.subr.mxu0 0.0
    %3133 = vmatpush1.msra.mxu0 0.0
    %3134 = vmatprep.subr.mxu0 0.0
    %3135 = vmatpush1.msra.mxu0 0.0
    %3136 = vmatprep.subr.mxu0 0.0
    %3137 = vmatpush1.msra.mxu0 0.0
    %3138 = vmatprep.subr.mxu0 0.0
    %3139 = vmatpush1.msra.mxu0 0.0
    %3140 = vmatprep.subr.mxu0 0.0
    %3141 = vmatpush1.msra.mxu0 0.0
    %3142 = vmatprep.subr.mxu0 0.0
    %3143 = vmatpush1.msra.mxu0 0.0
    %3144 = vmatprep.subr.mxu0 0.0
    %3145 = vmatpush1.msra.mxu0 0.0
    %3146 = vmatprep.subr.mxu0 0.0
    %3147 = vmatpush1.msra.mxu0 0.0
    %3148 = vmatprep.subr.mxu0 0.0
    %3149 = vmatpush1.msra.mxu0 0.0
    %3150 = vmatprep.subr.mxu0 0.0
    %3151 = vmatpush1.msra.mxu0 0.0
    %3152 = vmatprep.subr.mxu0 0.0
    %3153 = vmatpush1.msra.mxu0 0.0
    %3154 = vmatprep.subr.mxu0 0.0
    %3155 = vmatpush1.msra.mxu0 0.0
    %3156 = vmatprep.subr.mxu0 0.0
    %3157 = vmatpush1.msra.mxu0 0.0
    %3158 = vmatprep.subr.mxu0 0.0
    %3159 = vmatpush1.msra.mxu0 0.0
    %3160 = vmatprep.subr.mxu0 0.0
    %3161 = vmatpush1.msra.mxu0 0.0
    %3162 = vmatprep.subr.mxu0 0.0
    %3163 = vmatpush1.msra.mxu0 0.0
    %3164 = vmatprep.mubr.f32.mxu0 0.0
    %3165 = vmatmul.mubr.f32.gmra.mrb[0].mxu0 %v3098
    %v3166 = vpop.f32.mrb[0].mxu0
    %v3167 = vadd.f32 %v3096, %v3166
    %v3168 = vpop.f32.mrb[0].mxu0
    %3169 = vdwg.mxu0
    %v3170 = vld [vmem:[#allocation28] sm:$0x3]
    %v3171 = vlaneseq
    %v3172 = vshrl.u32 %v3171, 7
    %v3173 = vsub.s32 0, %v3172
    %v3174 = vrot.slane %v3170, %v3173
    %v3175 = vmul.f32 %v3167, %v3174
    %v3176 = vsel %vm305, %v3175, 0.0
    %3177 = vadd.xlane.f32.xlu0 %v3176
    %v3178 = vpop.xlane.xlu0 %3177
    %v3179 = vlaneseq
    %v3180 = vshrl.u32 %v3179, 7
    %v3181 = vsub.s32 1, %v3180
    %v3182 = vrot.slane %v3170, %v3181
    %3184 = vrot.lane.b32.xlu0 %v3182, 32
    %v3185 = vpop.permute.xlu0 %3184
    %v3187 = vmul.f32 %v1160, %v3185
    %3189 = vrot.lane.b32.xlu0 %v3187, 96
    %v3190 = vpop.permute.xlu0 %3189
    %v3192 = vsel %vm305, %v3190, 0.0
    %3193 = vadd.xlane.f32.xlu0 %v3192
    %v3194 = vpop.xlane.xlu0 %3193
    %v3195 = vadd.f32 %v3178, %v3194
    %v3196 = vld [vmem:[#allocation3] sm:$0x1]
    %v3198 = vlaneseq
    %v3199 = vshrl.u32 %v3198, 7
    %v3200 = vsub.s32 0, %v3199
    %v3201 = vrot.slane %v3196, %v3200
    %v3203 = vadd.f32 %v3195, %v3201
    %v3204 = vxor.u32 %v3203, 2147483648
    %v3205 = vmul.f32 %v3204, 1.442695
    %v3206 = vpow.pop %v3205
    %v3207 = vadd.f32 %v3206, 1.0
    %v3208 = vrcp.pop %v3207
    %v3209 = vmul.f32 1.0, %v3208
    %3211 = vset.pattern.permute.xlu0 0
    %3212 = vperm.xlu0 %3211, %v3209
    %v3213 = vpop.permute.xlu0 %3212
    %v3215 = vmul.f32 %v3213, %v3167
    %v3216 = vsub.f32 1.0, %v3209
    %3218 = vset.pattern.permute.xlu0 0
    %3219 = vperm.xlu0 %3218, %v3216
    %v3220 = vpop.permute.xlu0 %3219
    %v3222 = vmul.f32 %v3220, %v1160
    %3224 = vrot.lane.b32.xlu0 %v3222, 96
    %v3225 = vpop.permute.xlu0 %3224
    %v3227 = vadd.f32 %v3215, %v3225
    %3228 = vst.msk [vmem:[#allocation30] sm:$0xff] %vm305, %v3227
    %s3229 = scalar_lea.vmem [#allocation9], 8
    %v3230 = vld [vmem:[%s3229] sm:$0xff]
    %s3231 = scalar_lea.vmem [#allocation10], 8
    %v3232 = vld [vmem:[%s3231] sm:$0xff]
    %s3233 = scalar_lea.vmem %s4, 8
    %v3234 = vld [vmem:[%s3233] sm:$0xff]
    %s3235 = scalar_lea.vmem [#allocation12], 1
    %v3236 = vld [vmem:[%s3235] sm:$0x1]
    %3238 = vset.pattern.permute.xlu0 0
    %3239 = vperm.xlu0 %3238, %v3234
    %v3240 = vpop.permute.xlu0 %3239
    %v3242 = vmul.f32 %v2013, %v3240
    %v3243 = vsel %vm2026, %v3242, 0.0
    %v3244 = vrot.slane %v3243, 4
    %v3245 = vadd.f32 %v3243, %v3244
    %v3246 = vrot.slane %v3245, 2
    %v3247 = vadd.f32 %v3245, %v3246
    %v3248 = vrot.slane %v3247, 1
    %v3249 = vadd.f32 %v3247, %v3248
    %v3250 = vld [vmem:[#allocation19] sm:$0xff]
    %v3251 = vld [vmem:[#allocation19 + $0x8] sm:$0xff]
    %v3252 = vld [vmem:[#allocation19 + $0x10] sm:$0xff]
    %v3253 = vld [vmem:[#allocation19 + $0x18] sm:$0xff]
    %v3254 = vld [vmem:[#allocation21] sm:$0x1]
    %3256 = vrot.lane.b32.xlu0 %v3249, 96
    %v3257 = vpop.permute.xlu0 %3256
    %v3258 = vsel %vm305, %v3257, 0
    %3260 = vmatprep.subr.mxu0 0.0
    %3261 = vmatpush1.msra.mxu0 %v3250
    %3262 = vmatprep.subr.mxu0 0.0
    %3263 = vmatpush1.msra.mxu0 %v3251
    %3264 = vmatprep.subr.mxu0 0.0
    %3265 = vmatpush1.msra.mxu0 %v3252
    %3266 = vmatprep.subr.mxu0 0.0
    %3267 = vmatpush1.msra.mxu0 %v3253
    %3268 = vmatprep.subr.mxu0 0.0
    %3269 = vmatpush1.msra.mxu0 0.0
    %3270 = vmatprep.subr.mxu0 0.0
    %3271 = vmatpush1.msra.mxu0 0.0
    %3272 = vmatprep.subr.mxu0 0.0
    %3273 = vmatpush1.msra.mxu0 0.0
    %3274 = vmatprep.subr.mxu0 0.0
    %3275 = vmatpush1.msra.mxu0 0.0
    %3276 = vmatprep.subr.mxu0 0.0
    %3277 = vmatpush1.msra.mxu0 0.0
    %3278 = vmatprep.subr.mxu0 0.0
    %3279 = vmatpush1.msra.mxu0 0.0
    %3280 = vmatprep.subr.mxu0 0.0
    %3281 = vmatpush1.msra.mxu0 0.0
    %3282 = vmatprep.subr.mxu0 0.0
    %3283 = vmatpush1.msra.mxu0 0.0
    %3284 = vmatprep.subr.mxu0 0.0
    %3285 = vmatpush1.msra.mxu0 0.0
    %3286 = vmatprep.subr.mxu0 0.0
    %3287 = vmatpush1.msra.mxu0 0.0
    %3288 = vmatprep.subr.mxu0 0.0
    %3289 = vmatpush1.msra.mxu0 0.0
    %3290 = vmatprep.subr.mxu0 0.0
    %3291 = vmatpush1.msra.mxu0 0.0
    %3292 = vmatprep.subr.mxu0 0.0
    %3293 = vmatpush1.msra.mxu0 0.0
    %3294 = vmatprep.subr.mxu0 0.0
    %3295 = vmatpush1.msra.mxu0 0.0
    %3296 = vmatprep.subr.mxu0 0.0
    %3297 = vmatpush1.msra.mxu0 0.0
    %3298 = vmatprep.subr.mxu0 0.0
    %3299 = vmatpush1.msra.mxu0 0.0
    %3300 = vmatprep.subr.mxu0 0.0
    %3301 = vmatpush1.msra.mxu0 0.0
    %3302 = vmatprep.subr.mxu0 0.0
    %3303 = vmatpush1.msra.mxu0 0.0
    %3304 = vmatprep.subr.mxu0 0.0
    %3305 = vmatpush1.msra.mxu0 0.0
    %3306 = vmatprep.subr.mxu0 0.0
    %3307 = vmatpush1.msra.mxu0 0.0
    %3308 = vmatprep.subr.mxu0 0.0
    %3309 = vmatpush1.msra.mxu0 0.0
    %3310 = vmatprep.subr.mxu0 0.0
    %3311 = vmatpush1.msra.mxu0 0.0
    %3312 = vmatprep.subr.mxu0 0.0
    %3313 = vmatpush1.msra.mxu0 0.0
    %3314 = vmatprep.subr.mxu0 0.0
    %3315 = vmatpush1.msra.mxu0 0.0
    %3316 = vmatprep.subr.mxu0 0.0
    %3317 = vmatpush1.msra.mxu0 0.0
    %3318 = vmatprep.subr.mxu0 0.0
    %3319 = vmatpush1.msra.mxu0 0.0
    %3320 = vmatprep.subr.mxu0 0.0
    %3321 = vmatpush1.msra.mxu0 0.0
    %3322 = vmatprep.subr.mxu0 0.0
    %3323 = vmatpush1.msra.mxu0 0.0
    %3324 = vmatprep.mubr.f32.mxu0 0.0
    %3325 = vmatmul.mubr.f32.gmra.mrb[0].mxu0 %v3258
    %v3326 = vpop.f32.mrb[0].mxu0
    %v3327 = vadd.f32 %v3254, %v3326
    %v3328 = vpop.f32.mrb[0].mxu0
    %3329 = vdwg.mxu0
    %v3330 = vlaneseq
    %v3331 = vshrl.u32 %v3330, 7
    %v3332 = vsub.s32 0, %v3331
    %v3333 = vrot.slane %v3327, %v3332
    %3335 = vrot.lane.b32.xlu0 %v3333, 32
    %v3336 = vpop.permute.xlu0 %3335
    %v3338 = vmul.f32 %v1160, %v3336
    %3340 = vrot.lane.b32.xlu0 %v3338, 96
    %v3341 = vpop.permute.xlu0 %3340
    %v3343 = vsel %vm305, %v3341, 0.0
    %3344 = vadd.xlane.f32.xlu0 %v3343
    %v3345 = vpop.xlane.xlu0 %3344
    %v3346 = vmul.f32 %v3345, 0.17677669
    %v3347 = vxor.u32 %v3346, 2147483648
    %v3348 = vmul.f32 %v3347, 1.442695
    %v3349 = vpow.pop %v3348
    %v3350 = vadd.f32 %v3349, 1.0
    %v3351 = vrcp.pop %v3350
    %v3352 = vmul.f32 1.0, %v3351
    %v3353 = vld [vmem:[#allocation22] sm:$0xff]
    %v3354 = vld [vmem:[#allocation22 + $0x8] sm:$0xff]
    %v3355 = vld [vmem:[#allocation22 + $0x10] sm:$0xff]
    %v3356 = vld [vmem:[#allocation22 + $0x18] sm:$0xff]
    %v3357 = vld [vmem:[#allocation24] sm:$0x1]
    %v3359 = vlaneseq
    %v3360 = vshrl.u32 %v3359, 7
    %v3361 = vsub.s32 0, %v3360
    %v3362 = vrot.slane %v3357, %v3361
    %3364 = vmatprep.subr.mxu0 0.0
    %3365 = vmatpush1.msra.mxu0 %v3353
    %3366 = vmatprep.subr.mxu0 0.0
    %3367 = vmatpush1.msra.mxu0 %v3354
    %3368 = vmatprep.subr.mxu0 0.0
    %3369 = vmatpush1.msra.mxu0 %v3355
    %3370 = vmatprep.subr.mxu0 0.0
    %3371 = vmatpush1.msra.mxu0 %v3356
    %3372 = vmatprep.subr.mxu0 0.0
    %3373 = vmatpush1.msra.mxu0 0.0
    %3374 = vmatprep.subr.mxu0 0.0
    %3375 = vmatpush1.msra.mxu0 0.0
    %3376 = vmatprep.subr.mxu0 0.0
    %3377 = vmatpush1.msra.mxu0 0.0
    %3378 = vmatprep.subr.mxu0 0.0
    %3379 = vmatpush1.msra.mxu0 0.0
    %3380 = vmatprep.subr.mxu0 0.0
    %3381 = vmatpush1.msra.mxu0 0.0
    %3382 = vmatprep.subr.mxu0 0.0
    %3383 = vmatpush1.msra.mxu0 0.0
    %3384 = vmatprep.subr.mxu0 0.0
    %3385 = vmatpush1.msra.mxu0 0.0
    %3386 = vmatprep.subr.mxu0 0.0
    %3387 = vmatpush1.msra.mxu0 0.0
    %3388 = vmatprep.subr.mxu0 0.0
    %3389 = vmatpush1.msra.mxu0 0.0
    %3390 = vmatprep.subr.mxu0 0.0
    %3391 = vmatpush1.msra.mxu0 0.0
    %3392 = vmatprep.subr.mxu0 0.0
    %3393 = vmatpush1.msra.mxu0 0.0
    %3394 = vmatprep.subr.mxu0 0.0
    %3395 = vmatpush1.msra.mxu0 0.0
    %3396 = vmatprep.subr.mxu0 0.0
    %3397 = vmatpush1.msra.mxu0 0.0
    %3398 = vmatprep.subr.mxu0 0.0
    %3399 = vmatpush1.msra.mxu0 0.0
    %3400 = vmatprep.subr.mxu0 0.0
    %3401 = vmatpush1.msra.mxu0 0.0
    %3402 = vmatprep.subr.mxu0 0.0
    %3403 = vmatpush1.msra.mxu0 0.0
    %3404 = vmatprep.subr.mxu0 0.0
    %3405 = vmatpush1.msra.mxu0 0.0
    %3406 = vmatprep.subr.mxu0 0.0
    %3407 = vmatpush1.msra.mxu0 0.0
    %3408 = vmatprep.subr.mxu0 0.0
    %3409 = vmatpush1.msra.mxu0 0.0
    %3410 = vmatprep.subr.mxu0 0.0
    %3411 = vmatpush1.msra.mxu0 0.0
    %3412 = vmatprep.subr.mxu0 0.0
    %3413 = vmatpush1.msra.mxu0 0.0
    %3414 = vmatprep.subr.mxu0 0.0
    %3415 = vmatpush1.msra.mxu0 0.0
    %3416 = vmatprep.subr.mxu0 0.0
    %3417 = vmatpush1.msra.mxu0 0.0
    %3418 = vmatprep.subr.mxu0 0.0
    %3419 = vmatpush1.msra.mxu0 0.0
    %3420 = vmatprep.subr.mxu0 0.0
    %3421 = vmatpush1.msra.mxu0 0.0
    %3422 = vmatprep.subr.mxu0 0.0
    %3423 = vmatpush1.msra.mxu0 0.0
    %3424 = vmatprep.subr.mxu0 0.0
    %3425 = vmatpush1.msra.mxu0 0.0
    %3426 = vmatprep.subr.mxu0 0.0
    %3427 = vmatpush1.msra.mxu0 0.0
    %3428 = vmatprep.mubr.f32.mxu0 0.0
    %3429 = vmatmul.mubr.f32.gmra.mrb[0].mxu0 %v2245
    %v3430 = vpop.f32.mrb[0].mxu0
    %v3431 = vadd.f32 %v3362, %v3430
    %v3432 = vpop.f32.mrb[0].mxu0
    %3433 = vdwg.mxu0
    %v3434 = vsub.f32 1.0, %v3352
    %v3435 = vmul.f32 %v3434, %v3431
    %v3436 = vmul.f32 %v3352, %v3333
    %3438 = vrot.lane.b32.xlu0 %v3436, 96
    %v3439 = vpop.permute.xlu0 %3438
    %v3441 = vadd.f32 %v3435, %v3439
    %v3442 = vld [vmem:[%s16] sm:$0xff]
    %v3443 = vld [vmem:[%s16 + $0x8] sm:$0xff]
    %v3444 = vld [vmem:[%s16 + $0x10] sm:$0xff]
    %v3445 = vld [vmem:[%s16 + $0x18] sm:$0xff]
    %v3446 = vld [vmem:[#allocation25] sm:$0x1]
    %v3448 = vlaneseq
    %v3449 = vshrl.u32 %v3448, 7
    %v3450 = vsub.s32 0, %v3449
    %v3451 = vrot.slane %v3446, %v3450
    %3453 = vmatprep.subr.mxu0 0.0
    %3454 = vmatpush1.msra.mxu0 %v3442
    %3455 = vmatprep.subr.mxu0 0.0
    %3456 = vmatpush1.msra.mxu0 %v3443
    %3457 = vmatprep.subr.mxu0 0.0
    %3458 = vmatpush1.msra.mxu0 %v3444
    %3459 = vmatprep.subr.mxu0 0.0
    %3460 = vmatpush1.msra.mxu0 %v3445
    %3461 = vmatprep.subr.mxu0 0.0
    %3462 = vmatpush1.msra.mxu0 0.0
    %3463 = vmatprep.subr.mxu0 0.0
    %3464 = vmatpush1.msra.mxu0 0.0
    %3465 = vmatprep.subr.mxu0 0.0
    %3466 = vmatpush1.msra.mxu0 0.0
    %3467 = vmatprep.subr.mxu0 0.0
    %3468 = vmatpush1.msra.mxu0 0.0
    %3469 = vmatprep.subr.mxu0 0.0
    %3470 = vmatpush1.msra.mxu0 0.0
    %3471 = vmatprep.subr.mxu0 0.0
    %3472 = vmatpush1.msra.mxu0 0.0
    %3473 = vmatprep.subr.mxu0 0.0
    %3474 = vmatpush1.msra.mxu0 0.0
    %3475 = vmatprep.subr.mxu0 0.0
    %3476 = vmatpush1.msra.mxu0 0.0
    %3477 = vmatprep.subr.mxu0 0.0
    %3478 = vmatpush1.msra.mxu0 0.0
    %3479 = vmatprep.subr.mxu0 0.0
    %3480 = vmatpush1.msra.mxu0 0.0
    %3481 = vmatprep.subr.mxu0 0.0
    %3482 = vmatpush1.msra.mxu0 0.0
    %3483 = vmatprep.subr.mxu0 0.0
    %3484 = vmatpush1.msra.mxu0 0.0
    %3485 = vmatprep.subr.mxu0 0.0
    %3486 = vmatpush1.msra.mxu0 0.0
    %3487 = vmatprep.subr.mxu0 0.0
    %3488 = vmatpush1.msra.mxu0 0.0
    %3489 = vmatprep.subr.mxu0 0.0
    %3490 = vmatpush1.msra.mxu0 0.0
    %3491 = vmatprep.subr.mxu0 0.0
    %3492 = vmatpush1.msra.mxu0 0.0
    %3493 = vmatprep.subr.mxu0 0.0
    %3494 = vmatpush1.msra.mxu0 0.0
    %3495 = vmatprep.subr.mxu0 0.0
    %3496 = vmatpush1.msra.mxu0 0.0
    %3497 = vmatprep.subr.mxu0 0.0
    %3498 = vmatpush1.msra.mxu0 0.0
    %3499 = vmatprep.subr.mxu0 0.0
    %3500 = vmatpush1.msra.mxu0 0.0
    %3501 = vmatprep.subr.mxu0 0.0
    %3502 = vmatpush1.msra.mxu0 0.0
    %3503 = vmatprep.subr.mxu0 0.0
    %3504 = vmatpush1.msra.mxu0 0.0
    %3505 = vmatprep.subr.mxu0 0.0
    %3506 = vmatpush1.msra.mxu0 0.0
    %3507 = vmatprep.subr.mxu0 0.0
    %3508 = vmatpush1.msra.mxu0 0.0
    %3509 = vmatprep.subr.mxu0 0.0
    %3510 = vmatpush1.msra.mxu0 0.0
    %3511 = vmatprep.subr.mxu0 0.0
    %3512 = vmatpush1.msra.mxu0 0.0
    %3513 = vmatprep.subr.mxu0 0.0
    %3514 = vmatpush1.msra.mxu0 0.0
    %3515 = vmatprep.subr.mxu0 0.0
    %3516 = vmatpush1.msra.mxu0 0.0
    %3517 = vmatprep.mubr.f32.mxu0 0.0
    %3518 = vmatmul.mubr.f32.gmra.mrb[0].mxu0 %v2151
    %v3519 = vpop.f32.mrb[0].mxu0
    %v3520 = vadd.f32 %v3451, %v3519
    %v3521 = vpop.f32.mrb[0].mxu0
    %3522 = vdwg.mxu0
    %v3524 = vsel %vm305, %v3520, 0
    %3526 = vmatprep.subr.mxu0 0.0
    %3527 = vmatpush1.xpose.msra.mxu0 %v2321
    %3528 = vmatprep.subr.mxu0 0.0
    %3529 = vmatpush1.xpose.msra.mxu0 0.0
    %3530 = vmatprep.subr.mxu0 0.0
    %3531 = vmatpush1.xpose.msra.mxu0 0.0
    %3532 = vmatprep.subr.mxu0 0.0
    %3533 = vmatpush1.xpose.msra.mxu0 0.0
    %3534 = vmatprep.subr.mxu0 0.0
    %3535 = vmatpush1.xpose.msra.mxu0 0.0
    %3536 = vmatprep.subr.mxu0 0.0
    %3537 = vmatpush1.xpose.msra.mxu0 0.0
    %3538 = vmatprep.subr.mxu0 0.0
    %3539 = vmatpush1.xpose.msra.mxu0 0.0
    %3540 = vmatprep.subr.mxu0 0.0
    %3541 = vmatpush1.xpose.msra.mxu0 0.0
    %3542 = vmatprep.subr.mxu0 0.0
    %3543 = vmatpush1.xpose.msra.mxu0 0.0
    %3544 = vmatprep.subr.mxu0 0.0
    %3545 = vmatpush1.xpose.msra.mxu0 0.0
    %3546 = vmatprep.subr.mxu0 0.0
    %3547 = vmatpush1.xpose.msra.mxu0 0.0
    %3548 = vmatprep.subr.mxu0 0.0
    %3549 = vmatpush1.xpose.msra.mxu0 0.0
    %3550 = vmatprep.subr.mxu0 0.0
    %3551 = vmatpush1.xpose.msra.mxu0 0.0
    %3552 = vmatprep.subr.mxu0 0.0
    %3553 = vmatpush1.xpose.msra.mxu0 0.0
    %3554 = vmatprep.subr.mxu0 0.0
    %3555 = vmatpush1.xpose.msra.mxu0 0.0
    %3556 = vmatprep.subr.mxu0 0.0
    %3557 = vmatpush1.xpose.msra.mxu0 0.0
    %3558 = vmatprep.subr.mxu0 0.0
    %3559 = vmatpush1.xpose.msra.mxu0 0.0
    %3560 = vmatprep.subr.mxu0 0.0
    %3561 = vmatpush1.xpose.msra.mxu0 0.0
    %3562 = vmatprep.subr.mxu0 0.0
    %3563 = vmatpush1.xpose.msra.mxu0 0.0
    %3564 = vmatprep.subr.mxu0 0.0
    %3565 = vmatpush1.xpose.msra.mxu0 0.0
    %3566 = vmatprep.subr.mxu0 0.0
    %3567 = vmatpush1.xpose.msra.mxu0 0.0
    %3568 = vmatprep.subr.mxu0 0.0
    %3569 = vmatpush1.xpose.msra.mxu0 0.0
    %3570 = vmatprep.subr.mxu0 0.0
    %3571 = vmatpush1.xpose.msra.mxu0 0.0
    %3572 = vmatprep.subr.mxu0 0.0
    %3573 = vmatpush1.xpose.msra.mxu0 0.0
    %3574 = vmatprep.subr.mxu0 0.0
    %3575 = vmatpush1.xpose.msra.mxu0 0.0
    %3576 = vmatprep.subr.mxu0 0.0
    %3577 = vmatpush1.xpose.msra.mxu0 0.0
    %3578 = vmatprep.subr.mxu0 0.0
    %3579 = vmatpush1.xpose.msra.mxu0 0.0
    %3580 = vmatprep.subr.mxu0 0.0
    %3581 = vmatpush1.xpose.msra.mxu0 0.0
    %3582 = vmatprep.subr.mxu0 0.0
    %3583 = vmatpush1.xpose.msra.mxu0 0.0
    %3584 = vmatprep.subr.mxu0 0.0
    %3585 = vmatpush1.xpose.msra.mxu0 0.0
    %3586 = vmatprep.subr.mxu0 0.0
    %3587 = vmatpush1.xpose.msra.mxu0 0.0
    %3588 = vmatprep.subr.mxu0 0.0
    %3589 = vmatpush1.xpose.msra.mxu0 0.0
    %3590 = vmatprep.mubr.f32.mxu0 0.0
    %3591 = vmatmul.mubr.f32.gmra.mrb[0].mxu0 %v3524
    %v3592 = vpop.f32.mrb[0].mxu0
    %v3593 = vadd.f32 0.0, %v3592
    %v3594 = vpop.f32.mrb[0].mxu0
    %3595 = vdwg.mxu0
    %3596 = vrot.lane.b32.xlu0 %v3520, 96
    %v3597 = vpop.permute.xlu0 %3596
    %v3598 = vsel %vm305, %v3597, 0
    %3600 = vmatprep.subr.mxu0 0.0
    %3601 = vmatpush1.xpose.msra.mxu0 %v2321
    %3602 = vmatprep.subr.mxu0 0.0
    %3603 = vmatpush1.xpose.msra.mxu0 0.0
    %3604 = vmatprep.subr.mxu0 0.0
    %3605 = vmatpush1.xpose.msra.mxu0 0.0
    %3606 = vmatprep.subr.mxu0 0.0
    %3607 = vmatpush1.xpose.msra.mxu0 0.0
    %3608 = vmatprep.subr.mxu0 0.0
    %3609 = vmatpush1.xpose.msra.mxu0 0.0
    %3610 = vmatprep.subr.mxu0 0.0
    %3611 = vmatpush1.xpose.msra.mxu0 0.0
    %3612 = vmatprep.subr.mxu0 0.0
    %3613 = vmatpush1.xpose.msra.mxu0 0.0
    %3614 = vmatprep.subr.mxu0 0.0
    %3615 = vmatpush1.xpose.msra.mxu0 0.0
    %3616 = vmatprep.subr.mxu0 0.0
    %3617 = vmatpush1.xpose.msra.mxu0 0.0
    %3618 = vmatprep.subr.mxu0 0.0
    %3619 = vmatpush1.xpose.msra.mxu0 0.0
    %3620 = vmatprep.subr.mxu0 0.0
    %3621 = vmatpush1.xpose.msra.mxu0 0.0
    %3622 = vmatprep.subr.mxu0 0.0
    %3623 = vmatpush1.xpose.msra.mxu0 0.0
    %3624 = vmatprep.subr.mxu0 0.0
    %3625 = vmatpush1.xpose.msra.mxu0 0.0
    %3626 = vmatprep.subr.mxu0 0.0
    %3627 = vmatpush1.xpose.msra.mxu0 0.0
    %3628 = vmatprep.subr.mxu0 0.0
    %3629 = vmatpush1.xpose.msra.mxu0 0.0
    %3630 = vmatprep.subr.mxu0 0.0
    %3631 = vmatpush1.xpose.msra.mxu0 0.0
    %3632 = vmatprep.subr.mxu0 0.0
    %3633 = vmatpush1.xpose.msra.mxu0 0.0
    %3634 = vmatprep.subr.mxu0 0.0
    %3635 = vmatpush1.xpose.msra.mxu0 0.0
    %3636 = vmatprep.subr.mxu0 0.0
    %3637 = vmatpush1.xpose.msra.mxu0 0.0
    %3638 = vmatprep.subr.mxu0 0.0
    %3639 = vmatpush1.xpose.msra.mxu0 0.0
    %3640 = vmatprep.subr.mxu0 0.0
    %3641 = vmatpush1.xpose.msra.mxu0 0.0
    %3642 = vmatprep.subr.mxu0 0.0
    %3643 = vmatpush1.xpose.msra.mxu0 0.0
    %3644 = vmatprep.subr.mxu0 0.0
    %3645 = vmatpush1.xpose.msra.mxu0 0.0
    %3646 = vmatprep.subr.mxu0 0.0
    %3647 = vmatpush1.xpose.msra.mxu0 0.0
    %3648 = vmatprep.subr.mxu0 0.0
    %3649 = vmatpush1.xpose.msra.mxu0 0.0
    %3650 = vmatprep.subr.mxu0 0.0
    %3651 = vmatpush1.xpose.msra.mxu0 0.0
    %3652 = vmatprep.subr.mxu0 0.0
    %3653 = vmatpush1.xpose.msra.mxu0 0.0
    %3654 = vmatprep.subr.mxu0 0.0
    %3655 = vmatpush1.xpose.msra.mxu0 0.0
    %3656 = vmatprep.subr.mxu0 0.0
    %3657 = vmatpush1.xpose.msra.mxu0 0.0
    %3658 = vmatprep.subr.mxu0 0.0
    %3659 = vmatpush1.xpose.msra.mxu0 0.0
    %3660 = vmatprep.subr.mxu0 0.0
    %3661 = vmatpush1.xpose.msra.mxu0 0.0
    %3662 = vmatprep.subr.mxu0 0.0
    %3663 = vmatpush1.xpose.msra.mxu0 0.0
    %3664 = vmatprep.mubr.f32.mxu0 0.0
    %3665 = vmatmul.mubr.f32.gmra.mrb[0].mxu0 %v3598
    %v3666 = vpop.f32.mrb[0].mxu0
    %v3667 = vadd.f32 0.0, %v3666
    %v3668 = vpop.f32.mrb[0].mxu0
    %3669 = vdwg.mxu0
    %vm3670 = vcmp.eq.s32.totalorder %v3230, 0
    %3672 = vset.pattern.permute.xlu0 0
    %3673 = vperm.xlu0 %3672, %v3593
    %v3674 = vpop.permute.xlu0 %3673
    %v3676 = vsel %vm3670, %v3674, 0.0
    %v3677 = vadd.f32 %v3676, 0.0
    %3679 = vset.pattern.permute.xlu0 0
    %3680 = vperm.xlu0 %3679, %v3667
    %v3681 = vpop.permute.xlu0 %3680
    %v3683 = vsel %vm3670, %v3681, 0.0
    %v3684 = vadd.f32 %v3683, 0.0
    %vm3685 = vcmp.eq.s32.totalorder %v3230, 1
    %3686 = vset.pattern.permute.xlu0 1
    %3687 = vperm.xlu0 %3686, %v3593
    %v3688 = vpop.permute.xlu0 %3687
    %v3690 = vsel %vm3685, %v3688, 0.0
    %v3691 = vadd.f32 %v3677, %v3690
    %3692 = vset.pattern.permute.xlu0 1
    %3693 = vperm.xlu0 %3692, %v3667
    %v3694 = vpop.permute.xlu0 %3693
    %v3696 = vsel %vm3685, %v3694, 0.0
    %v3697 = vadd.f32 %v3684, %v3696
    %vm3698 = vcmp.eq.s32.totalorder %v3230, 2
    %3699 = vset.pattern.permute.xlu0 2
    %3700 = vperm.xlu0 %3699, %v3593
    %v3701 = vpop.permute.xlu0 %3700
    %v3703 = vsel %vm3698, %v3701, 0.0
    %v3704 = vadd.f32 %v3691, %v3703
    %3705 = vset.pattern.permute.xlu0 2
    %3706 = vperm.xlu0 %3705, %v3667
    %v3707 = vpop.permute.xlu0 %3706
    %v3709 = vsel %vm3698, %v3707, 0.0
    %v3710 = vadd.f32 %v3697, %v3709
    %vm3711 = vcmp.eq.s32.totalorder %v3230, 3
    %3712 = vset.pattern.permute.xlu0 3
    %3713 = vperm.xlu0 %3712, %v3593
    %v3714 = vpop.permute.xlu0 %3713
    %v3716 = vsel %vm3711, %v3714, 0.0
    %v3717 = vadd.f32 %v3704, %v3716
    %3718 = vset.pattern.permute.xlu0 3
    %3719 = vperm.xlu0 %3718, %v3667
    %v3720 = vpop.permute.xlu0 %3719
    %v3722 = vsel %vm3711, %v3720, 0.0
    %v3723 = vadd.f32 %v3710, %v3722
    %vm3724 = vcmp.eq.s32.totalorder %v3230, 4
    %3725 = vset.pattern.permute.xlu0 4
    %3726 = vperm.xlu0 %3725, %v3593
    %v3727 = vpop.permute.xlu0 %3726
    %v3729 = vsel %vm3724, %v3727, 0.0
    %v3730 = vadd.f32 %v3717, %v3729
    %3731 = vset.pattern.permute.xlu0 4
    %3732 = vperm.xlu0 %3731, %v3667
    %v3733 = vpop.permute.xlu0 %3732
    %v3735 = vsel %vm3724, %v3733, 0.0
    %v3736 = vadd.f32 %v3723, %v3735
    %v3738 = vsel %vm305, %v3441, 0
    %3740 = vmatprep.subr.mxu0 0.0
    %3741 = vmatpush1.xpose.msra.mxu0 %v3738
    %3742 = vmatprep.subr.mxu0 0.0
    %3743 = vmatpush1.xpose.msra.mxu0 0.0
    %3744 = vmatprep.subr.mxu0 0.0
    %3745 = vmatpush1.xpose.msra.mxu0 0.0
    %3746 = vmatprep.subr.mxu0 0.0
    %3747 = vmatpush1.xpose.msra.mxu0 0.0
    %3748 = vmatprep.subr.mxu0 0.0
    %3749 = vmatpush1.xpose.msra.mxu0 0.0
    %3750 = vmatprep.subr.mxu0 0.0
    %3751 = vmatpush1.xpose.msra.mxu0 0.0
    %3752 = vmatprep.subr.mxu0 0.0
    %3753 = vmatpush1.xpose.msra.mxu0 0.0
    %3754 = vmatprep.subr.mxu0 0.0
    %3755 = vmatpush1.xpose.msra.mxu0 0.0
    %3756 = vmatprep.subr.mxu0 0.0
    %3757 = vmatpush1.xpose.msra.mxu0 0.0
    %3758 = vmatprep.subr.mxu0 0.0
    %3759 = vmatpush1.xpose.msra.mxu0 0.0
    %3760 = vmatprep.subr.mxu0 0.0
    %3761 = vmatpush1.xpose.msra.mxu0 0.0
    %3762 = vmatprep.subr.mxu0 0.0
    %3763 = vmatpush1.xpose.msra.mxu0 0.0
    %3764 = vmatprep.subr.mxu0 0.0
    %3765 = vmatpush1.xpose.msra.mxu0 0.0
    %3766 = vmatprep.subr.mxu0 0.0
    %3767 = vmatpush1.xpose.msra.mxu0 0.0
    %3768 = vmatprep.subr.mxu0 0.0
    %3769 = vmatpush1.xpose.msra.mxu0 0.0
    %3770 = vmatprep.subr.mxu0 0.0
    %3771 = vmatpush1.xpose.msra.mxu0 0.0
    %3772 = vmatprep.subr.mxu0 0.0
    %3773 = vmatpush1.xpose.msra.mxu0 0.0
    %3774 = vmatprep.subr.mxu0 0.0
    %3775 = vmatpush1.xpose.msra.mxu0 0.0
    %3776 = vmatprep.subr.mxu0 0.0
    %3777 = vmatpush1.xpose.msra.mxu0 0.0
    %3778 = vmatprep.subr.mxu0 0.0
    %3779 = vmatpush1.xpose.msra.mxu0 0.0
    %3780 = vmatprep.subr.mxu0 0.0
    %3781 = vmatpush1.xpose.msra.mxu0 0.0
    %3782 = vmatprep.subr.mxu0 0.0
    %3783 = vmatpush1.xpose.msra.mxu0 0.0
    %3784 = vmatprep.subr.mxu0 0.0
    %3785 = vmatpush1.xpose.msra.mxu0 0.0
    %3786 = vmatprep.subr.mxu0 0.0
    %3787 = vmatpush1.xpose.msra.mxu0 0.0
    %3788 = vmatprep.subr.mxu0 0.0
    %3789 = vmatpush1.xpose.msra.mxu0 0.0
    %3790 = vmatprep.subr.mxu0 0.0
    %3791 = vmatpush1.xpose.msra.mxu0 0.0
    %3792 = vmatprep.subr.mxu0 0.0
    %3793 = vmatpush1.xpose.msra.mxu0 0.0
    %3794 = vmatprep.subr.mxu0 0.0
    %3795 = vmatpush1.xpose.msra.mxu0 0.0
    %3796 = vmatprep.subr.mxu0 0.0
    %3797 = vmatpush1.xpose.msra.mxu0 0.0
    %3798 = vmatprep.subr.mxu0 0.0
    %3799 = vmatpush1.xpose.msra.mxu0 0.0
    %3800 = vmatprep.subr.mxu0 0.0
    %3801 = vmatpush1.xpose.msra.mxu0 0.0
    %3802 = vmatprep.subr.mxu0 0.0
    %3803 = vmatpush1.xpose.msra.mxu0 0.0
    %3804 = vmatprep.mubr.f32.mxu0 0.0
    %3805 = vmatmul.mubr.f32.gmra.mrb[0].mxu0 %v3524
    %v3806 = vpop.f32.mrb[0].mxu0
    %v3807 = vadd.f32 %v3730, %v3806
    %v3808 = vpop.f32.mrb[0].mxu0
    %3809 = vdwg.mxu0
    %v3810 = vmul.f32 %v3807, 0.17677669
    %v3811 = vtanh.pop %v3810
    %3812 = vmatprep.subr.mxu0 0.0
    %3813 = vmatpush1.xpose.msra.mxu0 %v3738
    %3814 = vmatprep.subr.mxu0 0.0
    %3815 = vmatpush1.xpose.msra.mxu0 0.0
    %3816 = vmatprep.subr.mxu0 0.0
    %3817 = vmatpush1.xpose.msra.mxu0 0.0
    %3818 = vmatprep.subr.mxu0 0.0
    %3819 = vmatpush1.xpose.msra.mxu0 0.0
    %3820 = vmatprep.subr.mxu0 0.0
    %3821 = vmatpush1.xpose.msra.mxu0 0.0
    %3822 = vmatprep.subr.mxu0 0.0
    %3823 = vmatpush1.xpose.msra.mxu0 0.0
    %3824 = vmatprep.subr.mxu0 0.0
    %3825 = vmatpush1.xpose.msra.mxu0 0.0
    %3826 = vmatprep.subr.mxu0 0.0
    %3827 = vmatpush1.xpose.msra.mxu0 0.0
    %3828 = vmatprep.subr.mxu0 0.0
    %3829 = vmatpush1.xpose.msra.mxu0 0.0
    %3830 = vmatprep.subr.mxu0 0.0
    %3831 = vmatpush1.xpose.msra.mxu0 0.0
    %3832 = vmatprep.subr.mxu0 0.0
    %3833 = vmatpush1.xpose.msra.mxu0 0.0
    %3834 = vmatprep.subr.mxu0 0.0
    %3835 = vmatpush1.xpose.msra.mxu0 0.0
    %3836 = vmatprep.subr.mxu0 0.0
    %3837 = vmatpush1.xpose.msra.mxu0 0.0
    %3838 = vmatprep.subr.mxu0 0.0
    %3839 = vmatpush1.xpose.msra.mxu0 0.0
    %3840 = vmatprep.subr.mxu0 0.0
    %3841 = vmatpush1.xpose.msra.mxu0 0.0
    %3842 = vmatprep.subr.mxu0 0.0
    %3843 = vmatpush1.xpose.msra.mxu0 0.0
    %3844 = vmatprep.subr.mxu0 0.0
    %3845 = vmatpush1.xpose.msra.mxu0 0.0
    %3846 = vmatprep.subr.mxu0 0.0
    %3847 = vmatpush1.xpose.msra.mxu0 0.0
    %3848 = vmatprep.subr.mxu0 0.0
    %3849 = vmatpush1.xpose.msra.mxu0 0.0
    %3850 = vmatprep.subr.mxu0 0.0
    %3851 = vmatpush1.xpose.msra.mxu0 0.0
    %3852 = vmatprep.subr.mxu0 0.0
    %3853 = vmatpush1.xpose.msra.mxu0 0.0
    %3854 = vmatprep.subr.mxu0 0.0
    %3855 = vmatpush1.xpose.msra.mxu0 0.0
    %3856 = vmatprep.subr.mxu0 0.0
    %3857 = vmatpush1.xpose.msra.mxu0 0.0
    %3858 = vmatprep.subr.mxu0 0.0
    %3859 = vmatpush1.xpose.msra.mxu0 0.0
    %3860 = vmatprep.subr.mxu0 0.0
    %3861 = vmatpush1.xpose.msra.mxu0 0.0
    %3862 = vmatprep.subr.mxu0 0.0
    %3863 = vmatpush1.xpose.msra.mxu0 0.0
    %3864 = vmatprep.subr.mxu0 0.0
    %3865 = vmatpush1.xpose.msra.mxu0 0.0
    %3866 = vmatprep.subr.mxu0 0.0
    %3867 = vmatpush1.xpose.msra.mxu0 0.0
    %3868 = vmatprep.subr.mxu0 0.0
    %3869 = vmatpush1.xpose.msra.mxu0 0.0
    %3870 = vmatprep.subr.mxu0 0.0
    %3871 = vmatpush1.xpose.msra.mxu0 0.0
    %3872 = vmatprep.subr.mxu0 0.0
    %3873 = vmatpush1.xpose.msra.mxu0 0.0
    %3874 = vmatprep.subr.mxu0 0.0
    %3875 = vmatpush1.xpose.msra.mxu0 0.0
    %3876 = vmatprep.mubr.f32.mxu0 0.0
    %3877 = vmatmul.mubr.f32.gmra.mrb[0].mxu0 %v3598
    %v3878 = vpop.f32.mrb[0].mxu0
    %v3879 = vadd.f32 %v3736, %v3878
    %v3880 = vpop.f32.mrb[0].mxu0
    %3881 = vdwg.mxu0
    %v3882 = vmul.f32 %v3879, 0.17677669
    %v3883 = vtanh.pop %v3882
    %vm3884 = vcmp.gt.f32.partialorder %v3236, 0.0
    %v3885 = vsel %vm3884, 1, 0
    %v3886 = vlaneseq
    %v3887 = vshrl.u32 %v3886, 7
    %v3888 = vsub.s32 0, %v3887
    %v3889 = vrot.slane %v3885, %v3888
    %vm3890 = vcmp.eq.s32.totalorder %v3889, 1
    %v3891 = vsel %vm3890, %v3811, -9e+15
    %v3892 = vsel %vm2689, %v3891, -inf
    %3893 = vmax.xlane.f32.xlu0 %v3892
    %v3894 = vpop.xlane.xlu0 %3893
    %v3895 = vsub.f32 %v3891, %v3894
    %v3896 = vmul.f32 %v3895, 1.442695
    %v3897 = vpow.pop %v3896
    %v3898 = vsel %vm2689, %v3897, 0.0
    %3899 = vadd.xlane.f32.xlu0 %v3898
    %v3900 = vpop.xlane.xlu0 %3899
    %v3901 = vrcp.pop %v3900
    %v3902 = vmul.f32 %v3897, %v3901
    %v3903 = vsel %vm2689, %v3883, -inf
    %3904 = vmax.xlane.f32.xlu0 %v3903
    %v3905 = vpop.xlane.xlu0 %3904
    %v3906 = vsub.f32 %v3883, %v3905
    %v3907 = vmul.f32 %v3906, 1.442695
    %v3908 = vpow.pop %v3907
    %v3910 = vlaneseq
    %v3911 = vshrl.u32 %v3910, 7
    %v3912 = vsub.s32 0, %v3911
    %v3913 = vrot.slane %v3236, %v3912
    %v3915 = vmul.f32 %v3908, %v3913
    %v3917 = vsel %vm2689, %v3915, 0
    %v3920 = vsel %vm2689, %v3232, 0
    %3922 = vmatprep.subr.mxu0 0.0
    %3923 = vmatpush1.xpose.msra.mxu0 %v3920
    %3924 = vmatprep.subr.mxu0 0.0
    %3925 = vmatpush1.xpose.msra.mxu0 0.0
    %3926 = vmatprep.subr.mxu0 0.0
    %3927 = vmatpush1.xpose.msra.mxu0 0.0
    %3928 = vmatprep.subr.mxu0 0.0
    %3929 = vmatpush1.xpose.msra.mxu0 0.0
    %3930 = vmatprep.subr.mxu0 0.0
    %3931 = vmatpush1.xpose.msra.mxu0 0.0
    %3932 = vmatprep.subr.mxu0 0.0
    %3933 = vmatpush1.xpose.msra.mxu0 0.0
    %3934 = vmatprep.subr.mxu0 0.0
    %3935 = vmatpush1.xpose.msra.mxu0 0.0
    %3936 = vmatprep.subr.mxu0 0.0
    %3937 = vmatpush1.xpose.msra.mxu0 0.0
    %3938 = vmatprep.subr.mxu0 0.0
    %3939 = vmatpush1.xpose.msra.mxu0 0.0
    %3940 = vmatprep.subr.mxu0 0.0
    %3941 = vmatpush1.xpose.msra.mxu0 0.0
    %3942 = vmatprep.subr.mxu0 0.0
    %3943 = vmatpush1.xpose.msra.mxu0 0.0
    %3944 = vmatprep.subr.mxu0 0.0
    %3945 = vmatpush1.xpose.msra.mxu0 0.0
    %3946 = vmatprep.subr.mxu0 0.0
    %3947 = vmatpush1.xpose.msra.mxu0 0.0
    %3948 = vmatprep.subr.mxu0 0.0
    %3949 = vmatpush1.xpose.msra.mxu0 0.0
    %3950 = vmatprep.subr.mxu0 0.0
    %3951 = vmatpush1.xpose.msra.mxu0 0.0
    %3952 = vmatprep.subr.mxu0 0.0
    %3953 = vmatpush1.xpose.msra.mxu0 0.0
    %3954 = vmatprep.subr.mxu0 0.0
    %3955 = vmatpush1.xpose.msra.mxu0 0.0
    %3956 = vmatprep.subr.mxu0 0.0
    %3957 = vmatpush1.xpose.msra.mxu0 0.0
    %3958 = vmatprep.subr.mxu0 0.0
    %3959 = vmatpush1.xpose.msra.mxu0 0.0
    %3960 = vmatprep.subr.mxu0 0.0
    %3961 = vmatpush1.xpose.msra.mxu0 0.0
    %3962 = vmatprep.subr.mxu0 0.0
    %3963 = vmatpush1.xpose.msra.mxu0 0.0
    %3964 = vmatprep.subr.mxu0 0.0
    %3965 = vmatpush1.xpose.msra.mxu0 0.0
    %3966 = vmatprep.subr.mxu0 0.0
    %3967 = vmatpush1.xpose.msra.mxu0 0.0
    %3968 = vmatprep.subr.mxu0 0.0
    %3969 = vmatpush1.xpose.msra.mxu0 0.0
    %3970 = vmatprep.subr.mxu0 0.0
    %3971 = vmatpush1.xpose.msra.mxu0 0.0
    %3972 = vmatprep.subr.mxu0 0.0
    %3973 = vmatpush1.xpose.msra.mxu0 0.0
    %3974 = vmatprep.subr.mxu0 0.0
    %3975 = vmatpush1.xpose.msra.mxu0 0.0
    %3976 = vmatprep.subr.mxu0 0.0
    %3977 = vmatpush1.xpose.msra.mxu0 0.0
    %3978 = vmatprep.subr.mxu0 0.0
    %3979 = vmatpush1.xpose.msra.mxu0 0.0
    %3980 = vmatprep.subr.mxu0 0.0
    %3981 = vmatpush1.xpose.msra.mxu0 0.0
    %3982 = vmatprep.subr.mxu0 0.0
    %3983 = vmatpush1.xpose.msra.mxu0 0.0
    %3984 = vmatprep.subr.mxu0 0.0
    %3985 = vmatpush1.xpose.msra.mxu0 0.0
    %3986 = vmatprep.mubr.f32.mxu0 0.0
    %3987 = vmatmul.mubr.f32.gmra.mrb[0].mxu0 %v3917
    %v3988 = vpop.f32.mrb[0].mxu0
    %v3989 = vadd.f32 0.0, %v3988
    %v3990 = vpop.f32.mrb[0].mxu0
    %3991 = vdwg.mxu0
    %vm3992 = vcmp.gt.f32.partialorder %v3989, 0.0
    %v3993 = vsel %vm3992, %v3989, 1.0
    %v3994 = vrcp.pop %v3993
    %v3995 = vmul.f32 1.0, %v3994
    %v3996 = vld [vmem:[#allocation27] sm:$0x3]
    %v3998 = vsel %vm305, %v3996, 0
    %4000 = vmatprep.subr.mxu0 0.0
    %4001 = vmatpush1.xpose.msra.mxu0 %v3738
    %4002 = vmatprep.subr.mxu0 0.0
    %4003 = vmatpush1.xpose.msra.mxu0 0.0
    %4004 = vmatprep.subr.mxu0 0.0
    %4005 = vmatpush1.xpose.msra.mxu0 0.0
    %4006 = vmatprep.subr.mxu0 0.0
    %4007 = vmatpush1.xpose.msra.mxu0 0.0
    %4008 = vmatprep.subr.mxu0 0.0
    %4009 = vmatpush1.xpose.msra.mxu0 0.0
    %4010 = vmatprep.subr.mxu0 0.0
    %4011 = vmatpush1.xpose.msra.mxu0 0.0
    %4012 = vmatprep.subr.mxu0 0.0
    %4013 = vmatpush1.xpose.msra.mxu0 0.0
    %4014 = vmatprep.subr.mxu0 0.0
    %4015 = vmatpush1.xpose.msra.mxu0 0.0
    %4016 = vmatprep.subr.mxu0 0.0
    %4017 = vmatpush1.xpose.msra.mxu0 0.0
    %4018 = vmatprep.subr.mxu0 0.0
    %4019 = vmatpush1.xpose.msra.mxu0 0.0
    %4020 = vmatprep.subr.mxu0 0.0
    %4021 = vmatpush1.xpose.msra.mxu0 0.0
    %4022 = vmatprep.subr.mxu0 0.0
    %4023 = vmatpush1.xpose.msra.mxu0 0.0
    %4024 = vmatprep.subr.mxu0 0.0
    %4025 = vmatpush1.xpose.msra.mxu0 0.0
    %4026 = vmatprep.subr.mxu0 0.0
    %4027 = vmatpush1.xpose.msra.mxu0 0.0
    %4028 = vmatprep.subr.mxu0 0.0
    %4029 = vmatpush1.xpose.msra.mxu0 0.0
    %4030 = vmatprep.subr.mxu0 0.0
    %4031 = vmatpush1.xpose.msra.mxu0 0.0
    %4032 = vmatprep.subr.mxu0 0.0
    %4033 = vmatpush1.xpose.msra.mxu0 0.0
    %4034 = vmatprep.subr.mxu0 0.0
    %4035 = vmatpush1.xpose.msra.mxu0 0.0
    %4036 = vmatprep.subr.mxu0 0.0
    %4037 = vmatpush1.xpose.msra.mxu0 0.0
    %4038 = vmatprep.subr.mxu0 0.0
    %4039 = vmatpush1.xpose.msra.mxu0 0.0
    %4040 = vmatprep.subr.mxu0 0.0
    %4041 = vmatpush1.xpose.msra.mxu0 0.0
    %4042 = vmatprep.subr.mxu0 0.0
    %4043 = vmatpush1.xpose.msra.mxu0 0.0
    %4044 = vmatprep.subr.mxu0 0.0
    %4045 = vmatpush1.xpose.msra.mxu0 0.0
    %4046 = vmatprep.subr.mxu0 0.0
    %4047 = vmatpush1.xpose.msra.mxu0 0.0
    %4048 = vmatprep.subr.mxu0 0.0
    %4049 = vmatpush1.xpose.msra.mxu0 0.0
    %4050 = vmatprep.subr.mxu0 0.0
    %4051 = vmatpush1.xpose.msra.mxu0 0.0
    %4052 = vmatprep.subr.mxu0 0.0
    %4053 = vmatpush1.xpose.msra.mxu0 0.0
    %4054 = vmatprep.subr.mxu0 0.0
    %4055 = vmatpush1.xpose.msra.mxu0 0.0
    %4056 = vmatprep.subr.mxu0 0.0
    %4057 = vmatpush1.xpose.msra.mxu0 0.0
    %4058 = vmatprep.subr.mxu0 0.0
    %4059 = vmatpush1.xpose.msra.mxu0 0.0
    %4060 = vmatprep.subr.mxu0 0.0
    %4061 = vmatpush1.xpose.msra.mxu0 0.0
    %4062 = vmatprep.subr.mxu0 0.0
    %4063 = vmatpush1.xpose.msra.mxu0 0.0
    %4064 = vmatprep.mubr.f32.mxu0 0.0
    %4065 = vmatmul.mubr.f32.gmra.mrb[0].mxu0 %v3998
    %v4066 = vpop.f32.mrb[0].mxu0
    %v4067 = vadd.f32 0.0, %v4066
    %v4068 = vpop.f32.mrb[0].mxu0
    %4069 = vdwg.mxu0
    %v4070 = vlaneseq
    %v4071 = vshrl.u32 %v4070, 7
    %v4072 = vsub.s32 0, %v4071
    %v4073 = vrot.slane %v4067, %v4072
    %v4074 = vmul.f32 %v3915, %v4073
    %v4076 = vsel %vm2689, %v4074, 0
    %4078 = vmatprep.subr.mxu0 0.0
    %4079 = vmatpush1.xpose.msra.mxu0 %v3920
    %4080 = vmatprep.subr.mxu0 0.0
    %4081 = vmatpush1.xpose.msra.mxu0 0.0
    %4082 = vmatprep.subr.mxu0 0.0
    %4083 = vmatpush1.xpose.msra.mxu0 0.0
    %4084 = vmatprep.subr.mxu0 0.0
    %4085 = vmatpush1.xpose.msra.mxu0 0.0
    %4086 = vmatprep.subr.mxu0 0.0
    %4087 = vmatpush1.xpose.msra.mxu0 0.0
    %4088 = vmatprep.subr.mxu0 0.0
    %4089 = vmatpush1.xpose.msra.mxu0 0.0
    %4090 = vmatprep.subr.mxu0 0.0
    %4091 = vmatpush1.xpose.msra.mxu0 0.0
    %4092 = vmatprep.subr.mxu0 0.0
    %4093 = vmatpush1.xpose.msra.mxu0 0.0
    %4094 = vmatprep.subr.mxu0 0.0
    %4095 = vmatpush1.xpose.msra.mxu0 0.0
    %4096 = vmatprep.subr.mxu0 0.0
    %4097 = vmatpush1.xpose.msra.mxu0 0.0
    %4098 = vmatprep.subr.mxu0 0.0
    %4099 = vmatpush1.xpose.msra.mxu0 0.0
    %4100 = vmatprep.subr.mxu0 0.0
    %4101 = vmatpush1.xpose.msra.mxu0 0.0
    %4102 = vmatprep.subr.mxu0 0.0
    %4103 = vmatpush1.xpose.msra.mxu0 0.0
    %4104 = vmatprep.subr.mxu0 0.0
    %4105 = vmatpush1.xpose.msra.mxu0 0.0
    %4106 = vmatprep.subr.mxu0 0.0
    %4107 = vmatpush1.xpose.msra.mxu0 0.0
    %4108 = vmatprep.subr.mxu0 0.0
    %4109 = vmatpush1.xpose.msra.mxu0 0.0
    %4110 = vmatprep.subr.mxu0 0.0
    %4111 = vmatpush1.xpose.msra.mxu0 0.0
    %4112 = vmatprep.subr.mxu0 0.0
    %4113 = vmatpush1.xpose.msra.mxu0 0.0
    %4114 = vmatprep.subr.mxu0 0.0
    %4115 = vmatpush1.xpose.msra.mxu0 0.0
    %4116 = vmatprep.subr.mxu0 0.0
    %4117 = vmatpush1.xpose.msra.mxu0 0.0
    %4118 = vmatprep.subr.mxu0 0.0
    %4119 = vmatpush1.xpose.msra.mxu0 0.0
    %4120 = vmatprep.subr.mxu0 0.0
    %4121 = vmatpush1.xpose.msra.mxu0 0.0
    %4122 = vmatprep.subr.mxu0 0.0
    %4123 = vmatpush1.xpose.msra.mxu0 0.0
    %4124 = vmatprep.subr.mxu0 0.0
    %4125 = vmatpush1.xpose.msra.mxu0 0.0
    %4126 = vmatprep.subr.mxu0 0.0
    %4127 = vmatpush1.xpose.msra.mxu0 0.0
    %4128 = vmatprep.subr.mxu0 0.0
    %4129 = vmatpush1.xpose.msra.mxu0 0.0
    %4130 = vmatprep.subr.mxu0 0.0
    %4131 = vmatpush1.xpose.msra.mxu0 0.0
    %4132 = vmatprep.subr.mxu0 0.0
    %4133 = vmatpush1.xpose.msra.mxu0 0.0
    %4134 = vmatprep.subr.mxu0 0.0
    %4135 = vmatpush1.xpose.msra.mxu0 0.0
    %4136 = vmatprep.subr.mxu0 0.0
    %4137 = vmatpush1.xpose.msra.mxu0 0.0
    %4138 = vmatprep.subr.mxu0 0.0
    %4139 = vmatpush1.xpose.msra.mxu0 0.0
    %4140 = vmatprep.subr.mxu0 0.0
    %4141 = vmatpush1.xpose.msra.mxu0 0.0
    %4142 = vmatprep.mubr.f32.mxu0 0.0
    %4143 = vmatmul.mubr.f32.gmra.mrb[0].mxu0 %v4076
    %v4144 = vpop.f32.mrb[0].mxu0
    %v4145 = vadd.f32 0.0, %v4144
    %v4146 = vpop.f32.mrb[0].mxu0
    %4147 = vdwg.mxu0
    %v4148 = vmul.f32 %v4145, %v3995
    %v4149 = vlaneseq
    %v4150 = vshrl.u32 %v4149, 7
    %v4151 = vsub.s32 1, %v4150
    %v4152 = vrot.slane %v4067, %v4151
    %v4153 = vadd.f32 %v4148, %v4152
    %v4154 = vld [vmem:[#allocation2] sm:$0x1]
    %v4156 = vlaneseq
    %v4157 = vshrl.u32 %v4156, 7
    %v4158 = vsub.s32 0, %v4157
    %v4159 = vrot.slane %v4154, %v4158
    %4160 = vset.pattern.permute.xlu0 0
    %4161 = vperm.xlu0 %4160, %v4159
    %v4162 = vpop.permute.xlu0 %4161
    %v4164 = vadd.f32 %v4153, %v4162
    %v4165 = vxor.u32 %v4164, 2147483648
    %v4166 = vmul.f32 %v4165, 1.442695
    %v4167 = vpow.pop %v4166
    %v4168 = vadd.f32 %v4167, 1.0
    %v4169 = vrcp.pop %v4168
    %v4170 = vmul.f32 1.0, %v4169
    %v4171 = vmul.f32 %v3902, %v4170
    %v4172 = vsub.f32 %v3902, %v4171
    %v4173 = vmul.f32 %v4171, %v3995
    %v4175 = vsel %vm2689, %v4173, 0
    %4177 = vmatprep.subr.mxu0 0.0
    %4178 = vmatpush1.msra.mxu0 %v3232
    %4179 = vmatprep.subr.mxu0 0.0
    %4180 = vmatpush1.msra.mxu0 0.0
    %4181 = vmatprep.subr.mxu0 0.0
    %4182 = vmatpush1.msra.mxu0 0.0
    %4183 = vmatprep.subr.mxu0 0.0
    %4184 = vmatpush1.msra.mxu0 0.0
    %4185 = vmatprep.subr.mxu0 0.0
    %4186 = vmatpush1.msra.mxu0 0.0
    %4187 = vmatprep.subr.mxu0 0.0
    %4188 = vmatpush1.msra.mxu0 0.0
    %4189 = vmatprep.subr.mxu0 0.0
    %4190 = vmatpush1.msra.mxu0 0.0
    %4191 = vmatprep.subr.mxu0 0.0
    %4192 = vmatpush1.msra.mxu0 0.0
    %4193 = vmatprep.subr.mxu0 0.0
    %4194 = vmatpush1.msra.mxu0 0.0
    %4195 = vmatprep.subr.mxu0 0.0
    %4196 = vmatpush1.msra.mxu0 0.0
    %4197 = vmatprep.subr.mxu0 0.0
    %4198 = vmatpush1.msra.mxu0 0.0
    %4199 = vmatprep.subr.mxu0 0.0
    %4200 = vmatpush1.msra.mxu0 0.0
    %4201 = vmatprep.subr.mxu0 0.0
    %4202 = vmatpush1.msra.mxu0 0.0
    %4203 = vmatprep.subr.mxu0 0.0
    %4204 = vmatpush1.msra.mxu0 0.0
    %4205 = vmatprep.subr.mxu0 0.0
    %4206 = vmatpush1.msra.mxu0 0.0
    %4207 = vmatprep.subr.mxu0 0.0
    %4208 = vmatpush1.msra.mxu0 0.0
    %4209 = vmatprep.subr.mxu0 0.0
    %4210 = vmatpush1.msra.mxu0 0.0
    %4211 = vmatprep.subr.mxu0 0.0
    %4212 = vmatpush1.msra.mxu0 0.0
    %4213 = vmatprep.subr.mxu0 0.0
    %4214 = vmatpush1.msra.mxu0 0.0
    %4215 = vmatprep.subr.mxu0 0.0
    %4216 = vmatpush1.msra.mxu0 0.0
    %4217 = vmatprep.subr.mxu0 0.0
    %4218 = vmatpush1.msra.mxu0 0.0
    %4219 = vmatprep.subr.mxu0 0.0
    %4220 = vmatpush1.msra.mxu0 0.0
    %4221 = vmatprep.subr.mxu0 0.0
    %4222 = vmatpush1.msra.mxu0 0.0
    %4223 = vmatprep.subr.mxu0 0.0
    %4224 = vmatpush1.msra.mxu0 0.0
    %4225 = vmatprep.subr.mxu0 0.0
    %4226 = vmatpush1.msra.mxu0 0.0
    %4227 = vmatprep.subr.mxu0 0.0
    %4228 = vmatpush1.msra.mxu0 0.0
    %4229 = vmatprep.subr.mxu0 0.0
    %4230 = vmatpush1.msra.mxu0 0.0
    %4231 = vmatprep.subr.mxu0 0.0
    %4232 = vmatpush1.msra.mxu0 0.0
    %4233 = vmatprep.subr.mxu0 0.0
    %4234 = vmatpush1.msra.mxu0 0.0
    %4235 = vmatprep.subr.mxu0 0.0
    %4236 = vmatpush1.msra.mxu0 0.0
    %4237 = vmatprep.subr.mxu0 0.0
    %4238 = vmatpush1.msra.mxu0 0.0
    %4239 = vmatprep.subr.mxu0 0.0
    %4240 = vmatpush1.msra.mxu0 0.0
    %4241 = vmatprep.mubr.f32.mxu0 0.0
    %4242 = vmatmul.mubr.f32.gmra.mrb[0].mxu0 %v4175
    %v4243 = vpop.f32.mrb[0].mxu0
    %v4244 = vadd.f32 0.0, %v4243
    %v4245 = vpop.f32.mrb[0].mxu0
    %4246 = vdwg.mxu0
    %v4247 = vmul.f32 %v4244, %v3915
    %v4248 = vadd.f32 %v4247, %v4172
    %v4249 = vsel %vm3670, %v3902, 0.0
    %v4250 = vsel %vm2689, %v4249, 0.0
    %4251 = vadd.xlane.f32.xlu0 %v4250
    %v4252 = vpop.xlane.xlu0 %4251
    %v4253 = vmul.f32 %v4252, %v3054
    %v4254 = vadd.f32 %v4253, 0.0
    %v4255 = vsel %vm3685, %v3902, 0.0
    %v4256 = vsel %vm2689, %v4255, 0.0
    %4257 = vadd.xlane.f32.xlu0 %v4256
    %v4258 = vpop.xlane.xlu0 %4257
    %v4259 = vmul.f32 %v4258, %v3064
    %v4260 = vadd.f32 %v4254, %v4259
    %v4261 = vsel %vm3698, %v3902, 0.0
    %v4262 = vsel %vm2689, %v4261, 0.0
    %4263 = vadd.xlane.f32.xlu0 %v4262
    %v4264 = vpop.xlane.xlu0 %4263
    %v4265 = vmul.f32 %v4264, %v3074
    %v4266 = vadd.f32 %v4260, %v4265
    %v4267 = vsel %vm3711, %v3902, 0.0
    %v4268 = vsel %vm2689, %v4267, 0.0
    %4269 = vadd.xlane.f32.xlu0 %v4268
    %v4270 = vpop.xlane.xlu0 %4269
    %v4271 = vmul.f32 %v4270, %v3084
    %v4272 = vadd.f32 %v4266, %v4271
    %v4273 = vsel %vm3724, %v3902, 0.0
    %v4274 = vsel %vm2689, %v4273, 0.0
    %4275 = vadd.xlane.f32.xlu0 %v4274
    %v4276 = vpop.xlane.xlu0 %4275
    %v4277 = vmul.f32 %v4276, %v3094
    %v4278 = vadd.f32 %v4272, %v4277
    %v4280 = vsel %vm2689, %v4248, 0
    %4282 = vmatprep.subr.mxu0 0.0
    %4283 = vmatpush1.msra.mxu0 %v3441
    %4284 = vmatprep.subr.mxu0 0.0
    %4285 = vmatpush1.msra.mxu0 0.0
    %4286 = vmatprep.subr.mxu0 0.0
    %4287 = vmatpush1.msra.mxu0 0.0
    %4288 = vmatprep.subr.mxu0 0.0
    %4289 = vmatpush1.msra.mxu0 0.0
    %4290 = vmatprep.subr.mxu0 0.0
    %4291 = vmatpush1.msra.mxu0 0.0
    %4292 = vmatprep.subr.mxu0 0.0
    %4293 = vmatpush1.msra.mxu0 0.0
    %4294 = vmatprep.subr.mxu0 0.0
    %4295 = vmatpush1.msra.mxu0 0.0
    %4296 = vmatprep.subr.mxu0 0.0
    %4297 = vmatpush1.msra.mxu0 0.0
    %4298 = vmatprep.subr.mxu0 0.0
    %4299 = vmatpush1.msra.mxu0 0.0
    %4300 = vmatprep.subr.mxu0 0.0
    %4301 = vmatpush1.msra.mxu0 0.0
    %4302 = vmatprep.subr.mxu0 0.0
    %4303 = vmatpush1.msra.mxu0 0.0
    %4304 = vmatprep.subr.mxu0 0.0
    %4305 = vmatpush1.msra.mxu0 0.0
    %4306 = vmatprep.subr.mxu0 0.0
    %4307 = vmatpush1.msra.mxu0 0.0
    %4308 = vmatprep.subr.mxu0 0.0
    %4309 = vmatpush1.msra.mxu0 0.0
    %4310 = vmatprep.subr.mxu0 0.0
    %4311 = vmatpush1.msra.mxu0 0.0
    %4312 = vmatprep.subr.mxu0 0.0
    %4313 = vmatpush1.msra.mxu0 0.0
    %4314 = vmatprep.subr.mxu0 0.0
    %4315 = vmatpush1.msra.mxu0 0.0
    %4316 = vmatprep.subr.mxu0 0.0
    %4317 = vmatpush1.msra.mxu0 0.0
    %4318 = vmatprep.subr.mxu0 0.0
    %4319 = vmatpush1.msra.mxu0 0.0
    %4320 = vmatprep.subr.mxu0 0.0
    %4321 = vmatpush1.msra.mxu0 0.0
    %4322 = vmatprep.subr.mxu0 0.0
    %4323 = vmatpush1.msra.mxu0 0.0
    %4324 = vmatprep.subr.mxu0 0.0
    %4325 = vmatpush1.msra.mxu0 0.0
    %4326 = vmatprep.subr.mxu0 0.0
    %4327 = vmatpush1.msra.mxu0 0.0
    %4328 = vmatprep.subr.mxu0 0.0
    %4329 = vmatpush1.msra.mxu0 0.0
    %4330 = vmatprep.subr.mxu0 0.0
    %4331 = vmatpush1.msra.mxu0 0.0
    %4332 = vmatprep.subr.mxu0 0.0
    %4333 = vmatpush1.msra.mxu0 0.0
    %4334 = vmatprep.subr.mxu0 0.0
    %4335 = vmatpush1.msra.mxu0 0.0
    %4336 = vmatprep.subr.mxu0 0.0
    %4337 = vmatpush1.msra.mxu0 0.0
    %4338 = vmatprep.subr.mxu0 0.0
    %4339 = vmatpush1.msra.mxu0 0.0
    %4340 = vmatprep.subr.mxu0 0.0
    %4341 = vmatpush1.msra.mxu0 0.0
    %4342 = vmatprep.subr.mxu0 0.0
    %4343 = vmatpush1.msra.mxu0 0.0
    %4344 = vmatprep.subr.mxu0 0.0
    %4345 = vmatpush1.msra.mxu0 0.0
    %4346 = vmatprep.mubr.f32.mxu0 0.0
    %4347 = vmatmul.mubr.f32.gmra.mrb[0].mxu0 %v4280
    %v4348 = vpop.f32.mrb[0].mxu0
    %v4349 = vadd.f32 %v4278, %v4348
    %v4350 = vpop.f32.mrb[0].mxu0
    %4351 = vdwg.mxu0
    %v4352 = vld [vmem:[#allocation28] sm:$0x3]
    %v4353 = vlaneseq
    %v4354 = vshrl.u32 %v4353, 7
    %v4355 = vsub.s32 0, %v4354
    %v4356 = vrot.slane %v4352, %v4355
    %v4357 = vmul.f32 %v4349, %v4356
    %v4358 = vsel %vm305, %v4357, 0.0
    %4359 = vadd.xlane.f32.xlu0 %v4358
    %v4360 = vpop.xlane.xlu0 %4359
    %v4361 = vlaneseq
    %v4362 = vshrl.u32 %v4361, 7
    %v4363 = vsub.s32 1, %v4362
    %v4364 = vrot.slane %v4352, %v4363
    %4366 = vrot.lane.b32.xlu0 %v4364, 32
    %v4367 = vpop.permute.xlu0 %4366
    %v4369 = vmul.f32 %v2013, %v4367
    %4371 = vrot.lane.b32.xlu0 %v4369, 96
    %v4372 = vpop.permute.xlu0 %4371
    %v4374 = vsel %vm305, %v4372, 0.0
    %4375 = vadd.xlane.f32.xlu0 %v4374
    %v4376 = vpop.xlane.xlu0 %4375
    %v4377 = vadd.f32 %v4360, %v4376
    %v4378 = vld [vmem:[#allocation3] sm:$0x1]
    %v4380 = vlaneseq
    %v4381 = vshrl.u32 %v4380, 7
    %v4382 = vsub.s32 0, %v4381
    %v4383 = vrot.slane %v4378, %v4382
    %v4385 = vadd.f32 %v4377, %v4383
    %v4386 = vxor.u32 %v4385, 2147483648
    %v4387 = vmul.f32 %v4386, 1.442695
    %v4388 = vpow.pop %v4387
    %v4389 = vadd.f32 %v4388, 1.0
    %v4390 = vrcp.pop %v4389
    %v4391 = vmul.f32 1.0, %v4390
    %4393 = vset.pattern.permute.xlu0 0
    %4394 = vperm.xlu0 %4393, %v4391
    %v4395 = vpop.permute.xlu0 %4394
    %v4397 = vmul.f32 %v4395, %v4349
    %v4398 = vsub.f32 1.0, %v4391
    %4400 = vset.pattern.permute.xlu0 0
    %4401 = vperm.xlu0 %4400, %v4398
    %v4402 = vpop.permute.xlu0 %4401
    %v4404 = vmul.f32 %v4402, %v2013
    %4406 = vrot.lane.b32.xlu0 %v4404, 96
    %v4407 = vpop.permute.xlu0 %4406
    %v4409 = vadd.f32 %v4397, %v4407
    %s4410 = scalar_lea.vmem [#allocation30], 8
    %4411 = vst.msk [vmem:[%s4410] sm:$0xff] %vm305, %v4409
    // Predicated region
    $region154: #{_device_forward.1} parent=1 // pred_check
      _
    $region155: #{_device_forward.1} parent=1 // pred_check_branch
      %4413 = sbr.rel (0) target = $region157
    $region156: #{_device_forward.1} parent=1 // pred_region
      %s4415 = ssub.s32 256, 256
      %4416 = vsyncadd [#allocation6], %s4415
      %s4417 = sshll.u32 [#allocation30], 4
      %s4418 = int_to_ptr.vmem [resolvable:$true] %s4417
      %4423 = dma.vmem_to_hbm [thread:$0]  %s4418, 256, %s22, [#allocation6], 128, 128, 8
    $region157: #{_device_forward.1} parent=1 // pred_fallthru
      _
    // Predicated region
    $region158: #{_device_forward.1} parent=1 // pred_check
      _
    $region159: #{_device_forward.1} parent=1 // pred_check_branch
      %4425 = sbr.rel (0) target = $region161
    $region160: #{_device_forward.1} parent=1 // pred_region
      %4426 = dma.done [#allocation6], 256
    $region161: #{_device_forward.1} parent=1 // pred_fallthru
      _
    %4427 = vsyncpa [#allocation5], 1
    %4428 = vsyncpa [#allocation8], 1
    %4429 = vsyncpa [#allocation11], 1
    %4430 = vsyncpa [#allocation14], 1
    %4431 = vsyncpa [#allocation17], 1
    %4432 = vsyncpa [#allocation20], 1
    %4433 = vsyncpa [#allocation23], 1
    %4434 = vsyncpa [#allocation26], 1
    %4435 = vsyncpa [#allocation29], 1
    %4436 = vsyncpa [#allocation6], 1

</llo_original>
